<compile_context>
chip_gen: v6e
topology: v6e:2x2x1
jax: 0.10.0
libtpu: 0.0.40
codegen_flags: <defaults>
</compile_context>

<pallas_src>
import functools
import math

import jax
import jax.numpy as jnp
import numpy as np
from jax.experimental import pallas as pl
from jax.experimental.pallas import tpu as pltpu


# ------------------------------ fused kernel --------------------------------

def _layer_norm(x, a, b, eps=1e-6):
    # Annotated-Transformer LayerNorm: unbiased std, divide by (std + eps).
    mean = jnp.mean(x, axis=-1, keepdims=True)
    var = jnp.sum((x - mean) ** 2, axis=-1, keepdims=True) / (x.shape[-1] - 1)
    std = jnp.sqrt(var)
    return a * (x - mean) * pl.reciprocal(std + eps, approx=True) + b


def _fused_kernel(p1_ref,
                  c1w_ref, c1b_ref, c2w_ref, c2b_ref,
                  wq_ref, bq_ref, wk_ref, bk_ref, wv_ref, bv_ref,
                  wo_ref, bo_ref, w1_ref, b1_ref, w2_ref, b2_ref,
                  ln1a_ref, ln1b_ref, ln2a_ref, ln2b_ref, lnfa_ref, lnfb_ref,
                  clsw_ref, clsb_ref,
                  o_ref, *, batch, seq, nheads, ntaps, naxes):
    B, T, H, K = batch, seq, nheads, ntaps
    G = naxes * B * T                       # rows per conv2 tap group

    # ---------------- conv stage (3 axis blocks batched, shared weights) ----
    # p1 rows are tap-major: row = k*G + axis*(B*T) + b*T + t, 10 samples each.
    h1 = jnp.dot(p1_ref[...], c1w_ref[...], preferred_element_type=jnp.float32)
    h1 = jnp.maximum(h1 + c1b_ref[...], 0.0)            # (K*G, 64)

    C2 = c2w_ref.shape[0] // K                           # 64 input channels/tap
    acc2 = jnp.zeros((G, c2w_ref.shape[1]), jnp.float32)
    for k in range(K):                                    # 5 accumulated matmuls
        acc2 += jnp.dot(h1[k * G:(k + 1) * G, :],
                        c2w_ref[k * C2:(k + 1) * C2, :],
                        preferred_element_type=jnp.float32)
    h2 = jnp.maximum(acc2 + c2b_ref[...], 0.0)           # (G, 128)

    # mean over the 3 axis blocks == torch.cat(dim=-1).mean(dim=-1)
    BT = B * T
    x = (h2[0:BT, :] + h2[BT:2 * BT, :] + h2[2 * BT:3 * BT, :]) * (1.0 / naxes)

    D = x.shape[-1]
    dk = D // H
    scale = 1.0 / math.sqrt(dk)

    # ---------------- encoder sublayer 1: x + MHA(LN(x)) --------------------
    xn = _layer_norm(x, ln1a_ref[...], ln1b_ref[...])
    q = jnp.dot(xn, wq_ref[...], preferred_element_type=jnp.float32) + bq_ref[...]
    k_ = jnp.dot(xn, wk_ref[...], preferred_element_type=jnp.float32) + bk_ref[...]
    v = jnp.dot(xn, wv_ref[...], preferred_element_type=jnp.float32) + bv_ref[...]

    batch_rows = []
    for b in range(B):
        r0 = b * T
        proj = jnp.zeros((T, D), jnp.float32)
        for h in range(H):
            c0 = h * dk
            qh = q[r0:r0 + T, c0:c0 + dk]
            kh = k_[r0:r0 + T, c0:c0 + dk]
            vh = v[r0:r0 + T, c0:c0 + dk]
            s = jnp.dot(qh, kh.T, preferred_element_type=jnp.float32) * scale
            s = s - jnp.max(s, axis=-1, keepdims=True)
            p = jnp.exp(s)
            p = p * pl.reciprocal(jnp.sum(p, axis=-1, keepdims=True), approx=True)
            pv = jnp.dot(p, vh, preferred_element_type=jnp.float32)       # (T, dk)
            # accumulate the output projection per head (avoids lane concat)
            proj += jnp.dot(pv, wo_ref[c0:c0 + dk, :],
                            preferred_element_type=jnp.float32)
        batch_rows.append(proj)
    attn = jnp.concatenate(batch_rows, axis=0) + bo_ref[...]
    x = x + attn

    # ---------------- encoder sublayer 2: x + FFN(LN(x)) --------------------
    xn2 = _layer_norm(x, ln2a_ref[...], ln2b_ref[...])
    hf = jnp.maximum(jnp.dot(xn2, w1_ref[...], preferred_element_type=jnp.float32)
                     + b1_ref[...], 0.0)
    x = x + jnp.dot(hf, w2_ref[...], preferred_element_type=jnp.float32) + b2_ref[...]

    # ---------------- final LN, mean-pool over seq, classifier --------------
    xf = _layer_norm(x, lnfa_ref[...], lnfb_ref[...])
    pooled = jnp.concatenate(
        [jnp.mean(xf[b * T:(b + 1) * T, :], axis=0, keepdims=True) for b in range(B)],
        axis=0)                                            # (B, D)
    o_ref[...] = (jnp.dot(pooled, clsw_ref[...], preferred_element_type=jnp.float32)
                  + clsb_ref[...])


# ------------------------------ model wrapper --------------------------------

def toy_model_forward(inp, params):
    """inp: (B, 1, L, 3) — PyTorch NCHW with Cin=1 and 3 'axis' columns."""
    B = inp.shape[0]
    L = inp.shape[2]
    T = L // 50

    # Host-side layout plumbing only: tap-major conv1 patches for all 3 axes.
    # p1 row = k*(3*B*T) + axis*(B*T) + b*T + t, content = x[(t*5+k)*10 : +10].
    x_axes = jnp.transpose(inp[:, 0, :, :], (2, 0, 1))             # (3, B, L)
    p1 = x_axes.reshape(3, B, T, 5, 10).transpose(3, 0, 1, 2, 4)   # (5, 3, B, T, 10)
    p1 = p1.reshape(5 * 3 * B * T, 10)

    a = params["axis"]
    e = params["enc"]
    D = e["wq"].shape[0]
    F = e["w1"].shape[1]
    N = params["cls_w"].shape[1]

    args = [
        p1,
        a["conv1_w"], a["conv1_b"].reshape(1, -1),
        a["conv2_w"], a["conv2_b"].reshape(1, -1),
        e["wq"], e["bq"].reshape(1, D), e["wk"], e["bk"].reshape(1, D),
        e["wv"], e["bv"].reshape(1, D), e["wo"], e["bo"].reshape(1, D),
        e["w1"], e["b1"].reshape(1, F), e["w2"], e["b2"].reshape(1, D),
        e["ln1_a"].reshape(1, D), e["ln1_b"].reshape(1, D),
        e["ln2_a"].reshape(1, D), e["ln2_b"].reshape(1, D),
        e["lnf_a"].reshape(1, D), e["lnf_b"].reshape(1, D),
        params["cls_w"], params["cls_b"].reshape(1, -1),
    ]
    in_specs = [pl.BlockSpec(t.shape, lambda i: (0, 0)) for t in args]

    return pl.pallas_call(
        functools.partial(_fused_kernel, batch=B, seq=T, nheads=4, ntaps=5, naxes=3),
        out_shape=jax.ShapeDtypeStruct((B, N), jnp.float32),
        grid=(1,),
        in_specs=in_specs,
        out_specs=pl.BlockSpec((B, N), lambda i: (0, 0)),
        compiler_params=pltpu.CompilerParams(dimension_semantics=("arbitrary",)),
    )(*args)


# ------------------------------ parameters ----------------------------------

def make_params(key):
    ks = jax.random.split(key, 24)
    scale = 0.05

    def rnd(k, shape):
        return scale * jax.random.normal(k, shape, dtype=jnp.float32)

    # Conv weights generated in PyTorch layout, then reshaped to matmul layout.
    conv1_w_t = rnd(ks[0], (64, 1, 10, 1))     # (Cout, Cin, Kh, Kw)
    conv2_w_t = rnd(ks[1], (128, 64, 5, 1))
    axis = dict(
        conv1_w=jnp.transpose(conv1_w_t[:, 0, :, 0], (1, 0)),                       # (10, 64)
        conv1_b=rnd(ks[2], (64,)),
        conv2_w=jnp.transpose(conv2_w_t[:, :, :, 0], (2, 1, 0)).reshape(320, 128),  # (320, 128)
        conv2_b=rnd(ks[3], (128,)),
    )

    D, F = 128, 512
    enc = dict(
        wq=rnd(ks[4], (D, D)), bq=rnd(ks[5], (D,)),
        wk=rnd(ks[6], (D, D)), bk=rnd(ks[7], (D,)),
        wv=rnd(ks[8], (D, D)), bv=rnd(ks[9], (D,)),
        wo=rnd(ks[10], (D, D)), bo=rnd(ks[11], (D,)),
        w1=rnd(ks[12], (D, F)), b1=rnd(ks[13], (F,)),
        w2=rnd(ks[14], (F, D)), b2=rnd(ks[15], (D,)),
        ln1_a=jnp.ones((D,), jnp.float32), ln1_b=jnp.zeros((D,), jnp.float32),
        ln2_a=jnp.ones((D,), jnp.float32), ln2_b=jnp.zeros((D,), jnp.float32),
        lnf_a=jnp.ones((D,), jnp.float32), lnf_b=jnp.zeros((D,), jnp.float32),
    )
    return dict(axis=axis, enc=enc,
                cls_w=rnd(ks[16], (128, 3)), cls_b=rnd(ks[17], (3,)))


# --------------------------- pure-JAX reference ------------------------------

def reference_forward(inp, params):
    def axis_ref(x_slice, p):
        B, L = x_slice.shape
        h1 = jnp.maximum(x_slice.reshape(B * (L // 10), 10) @ p["conv1_w"]
                         + p["conv1_b"], 0.0).reshape(B, L // 10, 64)
        T = L // 50
        h2 = jnp.maximum(h1.reshape(B * T, 320) @ p["conv2_w"] + p["conv2_b"], 0.0)
        return h2.reshape(B, T, 128)

    def ln(x, a, b, eps=1e-6):
        m = jnp.mean(x, -1, keepdims=True)
        var = jnp.sum((x - m) ** 2, -1, keepdims=True) / (x.shape[-1] - 1)
        return a * (x - m) / (jnp.sqrt(var) + eps) + b

    p = params
    e = p["enc"]
    outs = [axis_ref(inp[:, 0, :, a], p["axis"]) for a in range(3)]
    x = (outs[0] + outs[1] + outs[2]) / 3.0
    B, T, D = x.shape
    H, dk = 4, D // 4
    xn = ln(x, e["ln1_a"], e["ln1_b"])
    q = xn @ e["wq"] + e["bq"]
    k = xn @ e["wk"] + e["bk"]
    v = xn @ e["wv"] + e["bv"]
    qh = q.reshape(B, T, H, dk).transpose(0, 2, 1, 3)
    kh = k.reshape(B, T, H, dk).transpose(0, 2, 1, 3)
    vh = v.reshape(B, T, H, dk).transpose(0, 2, 1, 3)
    s = jnp.einsum("bhqd,bhkd->bhqk", qh, kh) / math.sqrt(dk)
    pa = jax.nn.softmax(s, axis=-1)
    a_out = jnp.einsum("bhqk,bhkd->bhqd", pa, vh).transpose(0, 2, 1, 3).reshape(B, T, D)
    x = x + (a_out @ e["wo"] + e["bo"])
    xn2 = ln(x, e["ln2_a"], e["ln2_b"])
    x = x + (jnp.maximum(xn2 @ e["w1"] + e["b1"], 0.0) @ e["w2"] + e["b2"])
    x = ln(x, e["lnf_a"], e["lnf_b"])
    pooled = jnp.mean(x, axis=1)
    return pooled @ p["cls_w"] + p["cls_b"]


# ---------------------------------- main -------------------------------------

if __name__ == "__main__":
    B, L = 2, 200                       # L must be a multiple of 50 (10 * 5 strides)
    key = jax.random.PRNGKey(0)
    kp, kx = jax.random.split(key)
    params = make_params(kp)
    inp = jax.random.normal(kx, (B, 1, L, 3), dtype=jnp.float32)

    out = jax.jit(lambda a: toy_model_forward(a, params))(inp)
    out = jax.block_until_ready(out)

    ref = reference_forward(inp, params)
    np.testing.assert_allclose(np.asarray(out), np.asarray(ref), rtol=2e-2, atol=2e-2)
    assert out.shape == (B, 3)
    print("KERNEL_OK")
</pallas_src>

<mosaic_0001>
module attributes {stable_mosaic.version = 11 : i64} {
  func.func @_fused_kernel(%arg0: i32, %arg1: memref<120x10xf32, #tpu.memory_space<vmem>>, %arg2: memref<10x64xf32, #tpu.memory_space<vmem>>, %arg3: memref<1x64xf32, #tpu.memory_space<vmem>>, %arg4: memref<320x128xf32, #tpu.memory_space<vmem>>, %arg5: memref<1x128xf32, #tpu.memory_space<vmem>>, %arg6: memref<128x128xf32, #tpu.memory_space<vmem>>, %arg7: memref<1x128xf32, #tpu.memory_space<vmem>>, %arg8: memref<128x128xf32, #tpu.memory_space<vmem>>, %arg9: memref<1x128xf32, #tpu.memory_space<vmem>>, %arg10: memref<128x128xf32, #tpu.memory_space<vmem>>, %arg11: memref<1x128xf32, #tpu.memory_space<vmem>>, %arg12: memref<128x128xf32, #tpu.memory_space<vmem>>, %arg13: memref<1x128xf32, #tpu.memory_space<vmem>>, %arg14: memref<128x512xf32, #tpu.memory_space<vmem>>, %arg15: memref<1x512xf32, #tpu.memory_space<vmem>>, %arg16: memref<512x128xf32, #tpu.memory_space<vmem>>, %arg17: memref<1x128xf32, #tpu.memory_space<vmem>>, %arg18: memref<1x128xf32, #tpu.memory_space<vmem>>, %arg19: memref<1x128xf32, #tpu.memory_space<vmem>>, %arg20: memref<1x128xf32, #tpu.memory_space<vmem>>, %arg21: memref<1x128xf32, #tpu.memory_space<vmem>>, %arg22: memref<1x128xf32, #tpu.memory_space<vmem>>, %arg23: memref<1x128xf32, #tpu.memory_space<vmem>>, %arg24: memref<128x3xf32, #tpu.memory_space<vmem>>, %arg25: memref<1x3xf32, #tpu.memory_space<vmem>>, %arg26: memref<2x3xf32, #tpu.memory_space<vmem>>) attributes {dimension_semantics = [#tpu.dimension_semantics<arbitrary>], iteration_bounds = array<i64: 1>, scalar_prefetch = 0 : i64, scratch_operands = 0 : i64, tpu.core_type = #tpu.core_type<tc>, window_params = [{pipeline_mode = #tpu.pipeline_mode<synchronous>, transform_indices = @transform_0, window_bounds = array<i64: 120, 10>}, {pipeline_mode = #tpu.pipeline_mode<synchronous>, transform_indices = @transform_1, window_bounds = array<i64: 10, 64>}, {pipeline_mode = #tpu.pipeline_mode<synchronous>, transform_indices = @transform_2, window_bounds = array<i64: 1, 64>}, {pipeline_mode = #tpu.pipeline_mode<synchronous>, transform_indices = @transform_3, window_bounds = array<i64: 320, 128>}, {pipeline_mode = #tpu.pipeline_mode<synchronous>, transform_indices = @transform_4, window_bounds = array<i64: 1, 128>}, {pipeline_mode = #tpu.pipeline_mode<synchronous>, transform_indices = @transform_5, window_bounds = array<i64: 128, 128>}, {pipeline_mode = #tpu.pipeline_mode<synchronous>, transform_indices = @transform_6, window_bounds = array<i64: 1, 128>}, {pipeline_mode = #tpu.pipeline_mode<synchronous>, transform_indices = @transform_7, window_bounds = array<i64: 128, 128>}, {pipeline_mode = #tpu.pipeline_mode<synchronous>, transform_indices = @transform_8, window_bounds = array<i64: 1, 128>}, {pipeline_mode = #tpu.pipeline_mode<synchronous>, transform_indices = @transform_9, window_bounds = array<i64: 128, 128>}, {pipeline_mode = #tpu.pipeline_mode<synchronous>, transform_indices = @transform_10, window_bounds = array<i64: 1, 128>}, {pipeline_mode = #tpu.pipeline_mode<synchronous>, transform_indices = @transform_11, window_bounds = array<i64: 128, 128>}, {pipeline_mode = #tpu.pipeline_mode<synchronous>, transform_indices = @transform_12, window_bounds = array<i64: 1, 128>}, {pipeline_mode = #tpu.pipeline_mode<synchronous>, transform_indices = @transform_13, window_bounds = array<i64: 128, 512>}, {pipeline_mode = #tpu.pipeline_mode<synchronous>, transform_indices = @transform_14, window_bounds = array<i64: 1, 512>}, {pipeline_mode = #tpu.pipeline_mode<synchronous>, transform_indices = @transform_15, window_bounds = array<i64: 512, 128>}, {pipeline_mode = #tpu.pipeline_mode<synchronous>, transform_indices = @transform_16, window_bounds = array<i64: 1, 128>}, {pipeline_mode = #tpu.pipeline_mode<synchronous>, transform_indices = @transform_17, window_bounds = array<i64: 1, 128>}, {pipeline_mode = #tpu.pipeline_mode<synchronous>, transform_indices = @transform_18, window_bounds = array<i64: 1, 128>}, {pipeline_mode = #tpu.pipeline_mode<synchronous>, transform_indices = @transform_19, window_bounds = array<i64: 1, 128>}, {pipeline_mode = #tpu.pipeline_mode<synchronous>, transform_indices = @transform_20, window_bounds = array<i64: 1, 128>}, {pipeline_mode = #tpu.pipeline_mode<synchronous>, transform_indices = @transform_21, window_bounds = array<i64: 1, 128>}, {pipeline_mode = #tpu.pipeline_mode<synchronous>, transform_indices = @transform_22, window_bounds = array<i64: 1, 128>}, {pipeline_mode = #tpu.pipeline_mode<synchronous>, transform_indices = @transform_23, window_bounds = array<i64: 128, 3>}, {pipeline_mode = #tpu.pipeline_mode<synchronous>, transform_indices = @transform_24, window_bounds = array<i64: 1, 3>}, {pipeline_mode = #tpu.pipeline_mode<synchronous>, transform_indices = @transform_25, window_bounds = array<i64: 2, 3>}]} {
    %c0 = arith.constant 0 : index
    %c0_0 = arith.constant 0 : index
    %0 = vector.load %arg1[%c0, %c0_0] : memref<120x10xf32, #tpu.memory_space<vmem>>, vector<120x10xf32>
    %c0_1 = arith.constant 0 : index
    %c0_2 = arith.constant 0 : index
    %1 = vector.load %arg2[%c0_1, %c0_2] : memref<10x64xf32, #tpu.memory_space<vmem>>, vector<10x64xf32>
    %cst = arith.constant dense<0.000000e+00> : vector<120x64xf32>
    %2 = tpu.matmul %0, %1, %cst {dimension_numbers = #tpu.dot_dimension_numbers<[1], [0], [0], [1], [0, 0, 1, 1], [], []>} : vector<120x10xf32>, vector<10x64xf32>, vector<120x64xf32> -> vector<120x64xf32>
    %c0_3 = arith.constant 0 : index
    %c0_4 = arith.constant 0 : index
    %3 = vector.load %arg3[%c0_3, %c0_4] : memref<1x64xf32, #tpu.memory_space<vmem>>, vector<1x64xf32>
    %4 = vector.broadcast %3 : vector<1x64xf32> to vector<120x64xf32>
    %5 = arith.addf %2, %4 : vector<120x64xf32>
    %cst_5 = arith.constant 0.000000e+00 : f32
    %6 = vector.broadcast %cst_5 : f32 to vector<120x64xf32>
    %7 = arith.maximumf %5, %6 : vector<120x64xf32>
    %cst_6 = arith.constant 0.000000e+00 : f32
    %8 = vector.broadcast %cst_6 : f32 to vector<24x128xf32>
    %9 = vector.extract_strided_slice %7 {offsets = [0, 0], sizes = [24, 64], strides = [1, 1]} : vector<120x64xf32> to vector<24x64xf32>
    %c0_7 = arith.constant 0 : index
    %c0_8 = arith.constant 0 : index
    %10 = vector.load %arg4[%c0_7, %c0_8] : memref<320x128xf32, #tpu.memory_space<vmem>>, vector<64x128xf32>
    %cst_9 = arith.constant dense<0.000000e+00> : vector<24x128xf32>
    %11 = tpu.matmul %9, %10, %cst_9 {dimension_numbers = #tpu.dot_dimension_numbers<[1], [0], [0], [1], [0, 0, 1, 1], [], []>} : vector<24x64xf32>, vector<64x128xf32>, vector<24x128xf32> -> vector<24x128xf32>
    %12 = arith.addf %8, %11 : vector<24x128xf32>
    %13 = vector.extract_strided_slice %7 {offsets = [24, 0], sizes = [24, 64], strides = [1, 1]} : vector<120x64xf32> to vector<24x64xf32>
    %c64 = arith.constant 64 : index
    %c0_10 = arith.constant 0 : index
    %14 = vector.load %arg4[%c64, %c0_10] : memref<320x128xf32, #tpu.memory_space<vmem>>, vector<64x128xf32>
    %cst_11 = arith.constant dense<0.000000e+00> : vector<24x128xf32>
    %15 = tpu.matmul %13, %14, %cst_11 {dimension_numbers = #tpu.dot_dimension_numbers<[1], [0], [0], [1], [0, 0, 1, 1], [], []>} : vector<24x64xf32>, vector<64x128xf32>, vector<24x128xf32> -> vector<24x128xf32>
    %16 = arith.addf %12, %15 : vector<24x128xf32>
    %17 = vector.extract_strided_slice %7 {offsets = [48, 0], sizes = [24, 64], strides = [1, 1]} : vector<120x64xf32> to vector<24x64xf32>
    %c128 = arith.constant 128 : index
    %c0_12 = arith.constant 0 : index
    %18 = vector.load %arg4[%c128, %c0_12] : memref<320x128xf32, #tpu.memory_space<vmem>>, vector<64x128xf32>
    %cst_13 = arith.constant dense<0.000000e+00> : vector<24x128xf32>
    %19 = tpu.matmul %17, %18, %cst_13 {dimension_numbers = #tpu.dot_dimension_numbers<[1], [0], [0], [1], [0, 0, 1, 1], [], []>} : vector<24x64xf32>, vector<64x128xf32>, vector<24x128xf32> -> vector<24x128xf32>
    %20 = arith.addf %16, %19 : vector<24x128xf32>
    %21 = vector.extract_strided_slice %7 {offsets = [72, 0], sizes = [24, 64], strides = [1, 1]} : vector<120x64xf32> to vector<24x64xf32>
    %c192 = arith.constant 192 : index
    %c0_14 = arith.constant 0 : index
    %22 = vector.load %arg4[%c192, %c0_14] : memref<320x128xf32, #tpu.memory_space<vmem>>, vector<64x128xf32>
    %cst_15 = arith.constant dense<0.000000e+00> : vector<24x128xf32>
    %23 = tpu.matmul %21, %22, %cst_15 {dimension_numbers = #tpu.dot_dimension_numbers<[1], [0], [0], [1], [0, 0, 1, 1], [], []>} : vector<24x64xf32>, vector<64x128xf32>, vector<24x128xf32> -> vector<24x128xf32>
    %24 = arith.addf %20, %23 : vector<24x128xf32>
    %25 = vector.extract_strided_slice %7 {offsets = [96, 0], sizes = [24, 64], strides = [1, 1]} : vector<120x64xf32> to vector<24x64xf32>
    %c256 = arith.constant 256 : index
    %c0_16 = arith.constant 0 : index
    %26 = vector.load %arg4[%c256, %c0_16] : memref<320x128xf32, #tpu.memory_space<vmem>>, vector<64x128xf32>
    %cst_17 = arith.constant dense<0.000000e+00> : vector<24x128xf32>
    %27 = tpu.matmul %25, %26, %cst_17 {dimension_numbers = #tpu.dot_dimension_numbers<[1], [0], [0], [1], [0, 0, 1, 1], [], []>} : vector<24x64xf32>, vector<64x128xf32>, vector<24x128xf32> -> vector<24x128xf32>
    %28 = arith.addf %24, %27 : vector<24x128xf32>
    %c0_18 = arith.constant 0 : index
    %c0_19 = arith.constant 0 : index
    %29 = vector.load %arg5[%c0_18, %c0_19] : memref<1x128xf32, #tpu.memory_space<vmem>>, vector<1x128xf32>
    %30 = vector.broadcast %29 : vector<1x128xf32> to vector<24x128xf32>
    %31 = arith.addf %28, %30 : vector<24x128xf32>
    %cst_20 = arith.constant 0.000000e+00 : f32
    %32 = vector.broadcast %cst_20 : f32 to vector<24x128xf32>
    %33 = arith.maximumf %31, %32 : vector<24x128xf32>
    %34 = vector.extract_strided_slice %33 {offsets = [0, 0], sizes = [8, 128], strides = [1, 1]} : vector<24x128xf32> to vector<8x128xf32>
    %35 = vector.extract_strided_slice %33 {offsets = [8, 0], sizes = [8, 128], strides = [1, 1]} : vector<24x128xf32> to vector<8x128xf32>
    %36 = arith.addf %34, %35 : vector<8x128xf32>
    %37 = vector.extract_strided_slice %33 {offsets = [16, 0], sizes = [8, 128], strides = [1, 1]} : vector<24x128xf32> to vector<8x128xf32>
    %38 = arith.addf %36, %37 : vector<8x128xf32>
    %cst_21 = arith.constant 0.333333343 : f32
    %39 = vector.broadcast %cst_21 : f32 to vector<8x128xf32>
    %40 = arith.mulf %38, %39 : vector<8x128xf32>
    %c0_22 = arith.constant 0 : index
    %c0_23 = arith.constant 0 : index
    %41 = vector.load %arg18[%c0_22, %c0_23] : memref<1x128xf32, #tpu.memory_space<vmem>>, vector<1x128xf32>
    %c0_24 = arith.constant 0 : index
    %c0_25 = arith.constant 0 : index
    %42 = vector.load %arg19[%c0_24, %c0_25] : memref<1x128xf32, #tpu.memory_space<vmem>>, vector<1x128xf32>
    %cst_26 = arith.constant dense<0.000000e+00> : vector<8xf32>
    %43 = vector.multi_reduction <add>, %40, %cst_26 [1] : vector<8x128xf32> to vector<8xf32>
    %44 = vector.shape_cast %43 : vector<8xf32> to vector<8x1xf32>
    %cst_27 = arith.constant 1.280000e+02 : f32
    %45 = vector.broadcast %cst_27 : f32 to vector<8x1xf32>
    %46 = arith.divf %44, %45 : vector<8x1xf32>
    %47 = vector.broadcast %46 : vector<8x1xf32> to vector<8x128xf32>
    %48 = arith.subf %40, %47 : vector<8x128xf32>
    %49 = arith.mulf %48, %48 : vector<8x128xf32>
    %cst_28 = arith.constant dense<0.000000e+00> : vector<8xf32>
    %50 = vector.multi_reduction <add>, %49, %cst_28 [1] : vector<8x128xf32> to vector<8xf32>
    %51 = vector.shape_cast %50 : vector<8xf32> to vector<8x1xf32>
    %cst_29 = arith.constant 1.270000e+02 : f32
    %52 = vector.broadcast %cst_29 : f32 to vector<8x1xf32>
    %53 = arith.divf %51, %52 : vector<8x1xf32>
    %54 = math.sqrt %53 : vector<8x1xf32>
    %55 = vector.broadcast %46 : vector<8x1xf32> to vector<8x128xf32>
    %56 = arith.subf %40, %55 : vector<8x128xf32>
    %57 = vector.broadcast %41 : vector<1x128xf32> to vector<8x128xf32>
    %58 = arith.mulf %57, %56 : vector<8x128xf32>
    %cst_30 = arith.constant 9.99999997E-7 : f32
    %59 = vector.broadcast %cst_30 : f32 to vector<8x1xf32>
    %60 = arith.addf %54, %59 : vector<8x1xf32>
    %61 = tpu.reciprocal %60 {approx = true} : vector<8x1xf32> -> vector<8x1xf32>
    %62 = vector.broadcast %61 : vector<8x1xf32> to vector<8x128xf32>
    %63 = arith.mulf %58, %62 : vector<8x128xf32>
    %64 = vector.broadcast %42 : vector<1x128xf32> to vector<8x128xf32>
    %65 = arith.addf %63, %64 : vector<8x128xf32>
    %c0_31 = arith.constant 0 : index
    %c0_32 = arith.constant 0 : index
    %66 = vector.load %arg6[%c0_31, %c0_32] : memref<128x128xf32, #tpu.memory_space<vmem>>, vector<128x128xf32>
    %cst_33 = arith.constant dense<0.000000e+00> : vector<8x128xf32>
    %67 = tpu.matmul %65, %66, %cst_33 {dimension_numbers = #tpu.dot_dimension_numbers<[1], [0], [0], [1], [0, 0, 1, 1], [], []>} : vector<8x128xf32>, vector<128x128xf32>, vector<8x128xf32> -> vector<8x128xf32>
    %c0_34 = arith.constant 0 : index
    %c0_35 = arith.constant 0 : index
    %68 = vector.load %arg7[%c0_34, %c0_35] : memref<1x128xf32, #tpu.memory_space<vmem>>, vector<1x128xf32>
    %69 = vector.broadcast %68 : vector<1x128xf32> to vector<8x128xf32>
    %70 = arith.addf %67, %69 : vector<8x128xf32>
    %c0_36 = arith.constant 0 : index
    %c0_37 = arith.constant 0 : index
    %71 = vector.load %arg8[%c0_36, %c0_37] : memref<128x128xf32, #tpu.memory_space<vmem>>, vector<128x128xf32>
    %cst_38 = arith.constant dense<0.000000e+00> : vector<8x128xf32>
    %72 = tpu.matmul %65, %71, %cst_38 {dimension_numbers = #tpu.dot_dimension_numbers<[1], [0], [0], [1], [0, 0, 1, 1], [], []>} : vector<8x128xf32>, vector<128x128xf32>, vector<8x128xf32> -> vector<8x128xf32>
    %c0_39 = arith.constant 0 : index
    %c0_40 = arith.constant 0 : index
    %73 = vector.load %arg9[%c0_39, %c0_40] : memref<1x128xf32, #tpu.memory_space<vmem>>, vector<1x128xf32>
    %74 = vector.broadcast %73 : vector<1x128xf32> to vector<8x128xf32>
    %75 = arith.addf %72, %74 : vector<8x128xf32>
    %c0_41 = arith.constant 0 : index
    %c0_42 = arith.constant 0 : index
    %76 = vector.load %arg10[%c0_41, %c0_42] : memref<128x128xf32, #tpu.memory_space<vmem>>, vector<128x128xf32>
    %cst_43 = arith.constant dense<0.000000e+00> : vector<8x128xf32>
    %77 = tpu.matmul %65, %76, %cst_43 {dimension_numbers = #tpu.dot_dimension_numbers<[1], [0], [0], [1], [0, 0, 1, 1], [], []>} : vector<8x128xf32>, vector<128x128xf32>, vector<8x128xf32> -> vector<8x128xf32>
    %c0_44 = arith.constant 0 : index
    %c0_45 = arith.constant 0 : index
    %78 = vector.load %arg11[%c0_44, %c0_45] : memref<1x128xf32, #tpu.memory_space<vmem>>, vector<1x128xf32>
    %79 = vector.broadcast %78 : vector<1x128xf32> to vector<8x128xf32>
    %80 = arith.addf %77, %79 : vector<8x128xf32>
    %cst_46 = arith.constant 0.000000e+00 : f32
    %81 = vector.broadcast %cst_46 : f32 to vector<4x128xf32>
    %82 = vector.extract_strided_slice %70 {offsets = [0, 0], sizes = [4, 32], strides = [1, 1]} : vector<8x128xf32> to vector<4x32xf32>
    %83 = vector.extract_strided_slice %75 {offsets = [0, 0], sizes = [4, 32], strides = [1, 1]} : vector<8x128xf32> to vector<4x32xf32>
    %84 = vector.extract_strided_slice %80 {offsets = [0, 0], sizes = [4, 32], strides = [1, 1]} : vector<8x128xf32> to vector<4x32xf32>
    %85 = tpu.transpose %83, [1, 0] : vector<4x32xf32> -> vector<32x4xf32>
    %cst_47 = arith.constant dense<0.000000e+00> : vector<4x4xf32>
    %86 = tpu.matmul %82, %85, %cst_47 {dimension_numbers = #tpu.dot_dimension_numbers<[1], [0], [0], [1], [0, 0, 1, 1], [], []>} : vector<4x32xf32>, vector<32x4xf32>, vector<4x4xf32> -> vector<4x4xf32>
    %cst_48 = arith.constant 0.176776692 : f32
    %87 = vector.broadcast %cst_48 : f32 to vector<4x4xf32>
    %88 = arith.mulf %86, %87 : vector<4x4xf32>
    %cst_49 = arith.constant dense<0xFF800000> : vector<4xf32>
    %89 = vector.multi_reduction <maximumf>, %88, %cst_49 [1] : vector<4x4xf32> to vector<4xf32>
    %90 = vector.shape_cast %89 : vector<4xf32> to vector<4x1xf32>
    %91 = vector.broadcast %90 : vector<4x1xf32> to vector<4x4xf32>
    %92 = arith.subf %88, %91 : vector<4x4xf32>
    %93 = math.exp %92 : vector<4x4xf32>
    %cst_50 = arith.constant dense<0.000000e+00> : vector<4xf32>
    %94 = vector.multi_reduction <add>, %93, %cst_50 [1] : vector<4x4xf32> to vector<4xf32>
    %95 = vector.shape_cast %94 : vector<4xf32> to vector<4x1xf32>
    %96 = tpu.reciprocal %95 {approx = true} : vector<4x1xf32> -> vector<4x1xf32>
    %97 = vector.broadcast %96 : vector<4x1xf32> to vector<4x4xf32>
    %98 = arith.mulf %93, %97 : vector<4x4xf32>
    %cst_51 = arith.constant dense<0.000000e+00> : vector<4x32xf32>
    %99 = tpu.matmul %98, %84, %cst_51 {dimension_numbers = #tpu.dot_dimension_numbers<[1], [0], [0], [1], [0, 0, 1, 1], [], []>} : vector<4x4xf32>, vector<4x32xf32>, vector<4x32xf32> -> vector<4x32xf32>
    %c0_52 = arith.constant 0 : index
    %c0_53 = arith.constant 0 : index
    %100 = vector.load %arg12[%c0_52, %c0_53] : memref<128x128xf32, #tpu.memory_space<vmem>>, vector<32x128xf32>
    %cst_54 = arith.constant dense<0.000000e+00> : vector<4x128xf32>
    %101 = tpu.matmul %99, %100, %cst_54 {dimension_numbers = #tpu.dot_dimension_numbers<[1], [0], [0], [1], [0, 0, 1, 1], [], []>} : vector<4x32xf32>, vector<32x128xf32>, vector<4x128xf32> -> vector<4x128xf32>
    %102 = arith.addf %81, %101 : vector<4x128xf32>
    %103 = vector.extract_strided_slice %70 {offsets = [0, 32], sizes = [4, 32], strides = [1, 1]} : vector<8x128xf32> to vector<4x32xf32>
    %104 = vector.extract_strided_slice %75 {offsets = [0, 32], sizes = [4, 32], strides = [1, 1]} : vector<8x128xf32> to vector<4x32xf32>
    %105 = vector.extract_strided_slice %80 {offsets = [0, 32], sizes = [4, 32], strides = [1, 1]} : vector<8x128xf32> to vector<4x32xf32>
    %106 = tpu.transpose %104, [1, 0] : vector<4x32xf32> -> vector<32x4xf32>
    %cst_55 = arith.constant dense<0.000000e+00> : vector<4x4xf32>
    %107 = tpu.matmul %103, %106, %cst_55 {dimension_numbers = #tpu.dot_dimension_numbers<[1], [0], [0], [1], [0, 0, 1, 1], [], []>} : vector<4x32xf32>, vector<32x4xf32>, vector<4x4xf32> -> vector<4x4xf32>
    %cst_56 = arith.constant 0.176776692 : f32
    %108 = vector.broadcast %cst_56 : f32 to vector<4x4xf32>
    %109 = arith.mulf %107, %108 : vector<4x4xf32>
    %cst_57 = arith.constant dense<0xFF800000> : vector<4xf32>
    %110 = vector.multi_reduction <maximumf>, %109, %cst_57 [1] : vector<4x4xf32> to vector<4xf32>
    %111 = vector.shape_cast %110 : vector<4xf32> to vector<4x1xf32>
    %112 = vector.broadcast %111 : vector<4x1xf32> to vector<4x4xf32>
    %113 = arith.subf %109, %112 : vector<4x4xf32>
    %114 = math.exp %113 : vector<4x4xf32>
    %cst_58 = arith.constant dense<0.000000e+00> : vector<4xf32>
    %115 = vector.multi_reduction <add>, %114, %cst_58 [1] : vector<4x4xf32> to vector<4xf32>
    %116 = vector.shape_cast %115 : vector<4xf32> to vector<4x1xf32>
    %117 = tpu.reciprocal %116 {approx = true} : vector<4x1xf32> -> vector<4x1xf32>
    %118 = vector.broadcast %117 : vector<4x1xf32> to vector<4x4xf32>
    %119 = arith.mulf %114, %118 : vector<4x4xf32>
    %cst_59 = arith.constant dense<0.000000e+00> : vector<4x32xf32>
    %120 = tpu.matmul %119, %105, %cst_59 {dimension_numbers = #tpu.dot_dimension_numbers<[1], [0], [0], [1], [0, 0, 1, 1], [], []>} : vector<4x4xf32>, vector<4x32xf32>, vector<4x32xf32> -> vector<4x32xf32>
    %c32 = arith.constant 32 : index
    %c0_60 = arith.constant 0 : index
    %121 = vector.load %arg12[%c32, %c0_60] : memref<128x128xf32, #tpu.memory_space<vmem>>, vector<32x128xf32>
    %cst_61 = arith.constant dense<0.000000e+00> : vector<4x128xf32>
    %122 = tpu.matmul %120, %121, %cst_61 {dimension_numbers = #tpu.dot_dimension_numbers<[1], [0], [0], [1], [0, 0, 1, 1], [], []>} : vector<4x32xf32>, vector<32x128xf32>, vector<4x128xf32> -> vector<4x128xf32>
    %123 = arith.addf %102, %122 : vector<4x128xf32>
    %124 = vector.extract_strided_slice %70 {offsets = [0, 64], sizes = [4, 32], strides = [1, 1]} : vector<8x128xf32> to vector<4x32xf32>
    %125 = vector.extract_strided_slice %75 {offsets = [0, 64], sizes = [4, 32], strides = [1, 1]} : vector<8x128xf32> to vector<4x32xf32>
    %126 = vector.extract_strided_slice %80 {offsets = [0, 64], sizes = [4, 32], strides = [1, 1]} : vector<8x128xf32> to vector<4x32xf32>
    %127 = tpu.transpose %125, [1, 0] : vector<4x32xf32> -> vector<32x4xf32>
    %cst_62 = arith.constant dense<0.000000e+00> : vector<4x4xf32>
    %128 = tpu.matmul %124, %127, %cst_62 {dimension_numbers = #tpu.dot_dimension_numbers<[1], [0], [0], [1], [0, 0, 1, 1], [], []>} : vector<4x32xf32>, vector<32x4xf32>, vector<4x4xf32> -> vector<4x4xf32>
    %cst_63 = arith.constant 0.176776692 : f32
    %129 = vector.broadcast %cst_63 : f32 to vector<4x4xf32>
    %130 = arith.mulf %128, %129 : vector<4x4xf32>
    %cst_64 = arith.constant dense<0xFF800000> : vector<4xf32>
    %131 = vector.multi_reduction <maximumf>, %130, %cst_64 [1] : vector<4x4xf32> to vector<4xf32>
    %132 = vector.shape_cast %131 : vector<4xf32> to vector<4x1xf32>
    %133 = vector.broadcast %132 : vector<4x1xf32> to vector<4x4xf32>
    %134 = arith.subf %130, %133 : vector<4x4xf32>
    %135 = math.exp %134 : vector<4x4xf32>
    %cst_65 = arith.constant dense<0.000000e+00> : vector<4xf32>
    %136 = vector.multi_reduction <add>, %135, %cst_65 [1] : vector<4x4xf32> to vector<4xf32>
    %137 = vector.shape_cast %136 : vector<4xf32> to vector<4x1xf32>
    %138 = tpu.reciprocal %137 {approx = true} : vector<4x1xf32> -> vector<4x1xf32>
    %139 = vector.broadcast %138 : vector<4x1xf32> to vector<4x4xf32>
    %140 = arith.mulf %135, %139 : vector<4x4xf32>
    %cst_66 = arith.constant dense<0.000000e+00> : vector<4x32xf32>
    %141 = tpu.matmul %140, %126, %cst_66 {dimension_numbers = #tpu.dot_dimension_numbers<[1], [0], [0], [1], [0, 0, 1, 1], [], []>} : vector<4x4xf32>, vector<4x32xf32>, vector<4x32xf32> -> vector<4x32xf32>
    %c64_67 = arith.constant 64 : index
    %c0_68 = arith.constant 0 : index
    %142 = vector.load %arg12[%c64_67, %c0_68] : memref<128x128xf32, #tpu.memory_space<vmem>>, vector<32x128xf32>
    %cst_69 = arith.constant dense<0.000000e+00> : vector<4x128xf32>
    %143 = tpu.matmul %141, %142, %cst_69 {dimension_numbers = #tpu.dot_dimension_numbers<[1], [0], [0], [1], [0, 0, 1, 1], [], []>} : vector<4x32xf32>, vector<32x128xf32>, vector<4x128xf32> -> vector<4x128xf32>
    %144 = arith.addf %123, %143 : vector<4x128xf32>
    %145 = vector.extract_strided_slice %70 {offsets = [0, 96], sizes = [4, 32], strides = [1, 1]} : vector<8x128xf32> to vector<4x32xf32>
    %146 = vector.extract_strided_slice %75 {offsets = [0, 96], sizes = [4, 32], strides = [1, 1]} : vector<8x128xf32> to vector<4x32xf32>
    %147 = vector.extract_strided_slice %80 {offsets = [0, 96], sizes = [4, 32], strides = [1, 1]} : vector<8x128xf32> to vector<4x32xf32>
    %148 = tpu.transpose %146, [1, 0] : vector<4x32xf32> -> vector<32x4xf32>
    %cst_70 = arith.constant dense<0.000000e+00> : vector<4x4xf32>
    %149 = tpu.matmul %145, %148, %cst_70 {dimension_numbers = #tpu.dot_dimension_numbers<[1], [0], [0], [1], [0, 0, 1, 1], [], []>} : vector<4x32xf32>, vector<32x4xf32>, vector<4x4xf32> -> vector<4x4xf32>
    %cst_71 = arith.constant 0.176776692 : f32
    %150 = vector.broadcast %cst_71 : f32 to vector<4x4xf32>
    %151 = arith.mulf %149, %150 : vector<4x4xf32>
    %cst_72 = arith.constant dense<0xFF800000> : vector<4xf32>
    %152 = vector.multi_reduction <maximumf>, %151, %cst_72 [1] : vector<4x4xf32> to vector<4xf32>
    %153 = vector.shape_cast %152 : vector<4xf32> to vector<4x1xf32>
    %154 = vector.broadcast %153 : vector<4x1xf32> to vector<4x4xf32>
    %155 = arith.subf %151, %154 : vector<4x4xf32>
    %156 = math.exp %155 : vector<4x4xf32>
    %cst_73 = arith.constant dense<0.000000e+00> : vector<4xf32>
    %157 = vector.multi_reduction <add>, %156, %cst_73 [1] : vector<4x4xf32> to vector<4xf32>
    %158 = vector.shape_cast %157 : vector<4xf32> to vector<4x1xf32>
    %159 = tpu.reciprocal %158 {approx = true} : vector<4x1xf32> -> vector<4x1xf32>
    %160 = vector.broadcast %159 : vector<4x1xf32> to vector<4x4xf32>
    %161 = arith.mulf %156, %160 : vector<4x4xf32>
    %cst_74 = arith.constant dense<0.000000e+00> : vector<4x32xf32>
    %162 = tpu.matmul %161, %147, %cst_74 {dimension_numbers = #tpu.dot_dimension_numbers<[1], [0], [0], [1], [0, 0, 1, 1], [], []>} : vector<4x4xf32>, vector<4x32xf32>, vector<4x32xf32> -> vector<4x32xf32>
    %c96 = arith.constant 96 : index
    %c0_75 = arith.constant 0 : index
    %163 = vector.load %arg12[%c96, %c0_75] : memref<128x128xf32, #tpu.memory_space<vmem>>, vector<32x128xf32>
    %cst_76 = arith.constant dense<0.000000e+00> : vector<4x128xf32>
    %164 = tpu.matmul %162, %163, %cst_76 {dimension_numbers = #tpu.dot_dimension_numbers<[1], [0], [0], [1], [0, 0, 1, 1], [], []>} : vector<4x32xf32>, vector<32x128xf32>, vector<4x128xf32> -> vector<4x128xf32>
    %165 = arith.addf %144, %164 : vector<4x128xf32>
    %cst_77 = arith.constant 0.000000e+00 : f32
    %166 = vector.broadcast %cst_77 : f32 to vector<4x128xf32>
    %167 = vector.extract_strided_slice %70 {offsets = [4, 0], sizes = [4, 32], strides = [1, 1]} : vector<8x128xf32> to vector<4x32xf32>
    %168 = vector.extract_strided_slice %75 {offsets = [4, 0], sizes = [4, 32], strides = [1, 1]} : vector<8x128xf32> to vector<4x32xf32>
    %169 = vector.extract_strided_slice %80 {offsets = [4, 0], sizes = [4, 32], strides = [1, 1]} : vector<8x128xf32> to vector<4x32xf32>
    %170 = tpu.transpose %168, [1, 0] : vector<4x32xf32> -> vector<32x4xf32>
    %cst_78 = arith.constant dense<0.000000e+00> : vector<4x4xf32>
    %171 = tpu.matmul %167, %170, %cst_78 {dimension_numbers = #tpu.dot_dimension_numbers<[1], [0], [0], [1], [0, 0, 1, 1], [], []>} : vector<4x32xf32>, vector<32x4xf32>, vector<4x4xf32> -> vector<4x4xf32>
    %cst_79 = arith.constant 0.176776692 : f32
    %172 = vector.broadcast %cst_79 : f32 to vector<4x4xf32>
    %173 = arith.mulf %171, %172 : vector<4x4xf32>
    %cst_80 = arith.constant dense<0xFF800000> : vector<4xf32>
    %174 = vector.multi_reduction <maximumf>, %173, %cst_80 [1] : vector<4x4xf32> to vector<4xf32>
    %175 = vector.shape_cast %174 : vector<4xf32> to vector<4x1xf32>
    %176 = vector.broadcast %175 : vector<4x1xf32> to vector<4x4xf32>
    %177 = arith.subf %173, %176 : vector<4x4xf32>
    %178 = math.exp %177 : vector<4x4xf32>
    %cst_81 = arith.constant dense<0.000000e+00> : vector<4xf32>
    %179 = vector.multi_reduction <add>, %178, %cst_81 [1] : vector<4x4xf32> to vector<4xf32>
    %180 = vector.shape_cast %179 : vector<4xf32> to vector<4x1xf32>
    %181 = tpu.reciprocal %180 {approx = true} : vector<4x1xf32> -> vector<4x1xf32>
    %182 = vector.broadcast %181 : vector<4x1xf32> to vector<4x4xf32>
    %183 = arith.mulf %178, %182 : vector<4x4xf32>
    %cst_82 = arith.constant dense<0.000000e+00> : vector<4x32xf32>
    %184 = tpu.matmul %183, %169, %cst_82 {dimension_numbers = #tpu.dot_dimension_numbers<[1], [0], [0], [1], [0, 0, 1, 1], [], []>} : vector<4x4xf32>, vector<4x32xf32>, vector<4x32xf32> -> vector<4x32xf32>
    %c0_83 = arith.constant 0 : index
    %c0_84 = arith.constant 0 : index
    %185 = vector.load %arg12[%c0_83, %c0_84] : memref<128x128xf32, #tpu.memory_space<vmem>>, vector<32x128xf32>
    %cst_85 = arith.constant dense<0.000000e+00> : vector<4x128xf32>
    %186 = tpu.matmul %184, %185, %cst_85 {dimension_numbers = #tpu.dot_dimension_numbers<[1], [0], [0], [1], [0, 0, 1, 1], [], []>} : vector<4x32xf32>, vector<32x128xf32>, vector<4x128xf32> -> vector<4x128xf32>
    %187 = arith.addf %166, %186 : vector<4x128xf32>
    %188 = vector.extract_strided_slice %70 {offsets = [4, 32], sizes = [4, 32], strides = [1, 1]} : vector<8x128xf32> to vector<4x32xf32>
    %189 = vector.extract_strided_slice %75 {offsets = [4, 32], sizes = [4, 32], strides = [1, 1]} : vector<8x128xf32> to vector<4x32xf32>
    %190 = vector.extract_strided_slice %80 {offsets = [4, 32], sizes = [4, 32], strides = [1, 1]} : vector<8x128xf32> to vector<4x32xf32>
    %191 = tpu.transpose %189, [1, 0] : vector<4x32xf32> -> vector<32x4xf32>
    %cst_86 = arith.constant dense<0.000000e+00> : vector<4x4xf32>
    %192 = tpu.matmul %188, %191, %cst_86 {dimension_numbers = #tpu.dot_dimension_numbers<[1], [0], [0], [1], [0, 0, 1, 1], [], []>} : vector<4x32xf32>, vector<32x4xf32>, vector<4x4xf32> -> vector<4x4xf32>
    %cst_87 = arith.constant 0.176776692 : f32
    %193 = vector.broadcast %cst_87 : f32 to vector<4x4xf32>
    %194 = arith.mulf %192, %193 : vector<4x4xf32>
    %cst_88 = arith.constant dense<0xFF800000> : vector<4xf32>
    %195 = vector.multi_reduction <maximumf>, %194, %cst_88 [1] : vector<4x4xf32> to vector<4xf32>
    %196 = vector.shape_cast %195 : vector<4xf32> to vector<4x1xf32>
    %197 = vector.broadcast %196 : vector<4x1xf32> to vector<4x4xf32>
    %198 = arith.subf %194, %197 : vector<4x4xf32>
    %199 = math.exp %198 : vector<4x4xf32>
    %cst_89 = arith.constant dense<0.000000e+00> : vector<4xf32>
    %200 = vector.multi_reduction <add>, %199, %cst_89 [1] : vector<4x4xf32> to vector<4xf32>
    %201 = vector.shape_cast %200 : vector<4xf32> to vector<4x1xf32>
    %202 = tpu.reciprocal %201 {approx = true} : vector<4x1xf32> -> vector<4x1xf32>
    %203 = vector.broadcast %202 : vector<4x1xf32> to vector<4x4xf32>
    %204 = arith.mulf %199, %203 : vector<4x4xf32>
    %cst_90 = arith.constant dense<0.000000e+00> : vector<4x32xf32>
    %205 = tpu.matmul %204, %190, %cst_90 {dimension_numbers = #tpu.dot_dimension_numbers<[1], [0], [0], [1], [0, 0, 1, 1], [], []>} : vector<4x4xf32>, vector<4x32xf32>, vector<4x32xf32> -> vector<4x32xf32>
    %c32_91 = arith.constant 32 : index
    %c0_92 = arith.constant 0 : index
    %206 = vector.load %arg12[%c32_91, %c0_92] : memref<128x128xf32, #tpu.memory_space<vmem>>, vector<32x128xf32>
    %cst_93 = arith.constant dense<0.000000e+00> : vector<4x128xf32>
    %207 = tpu.matmul %205, %206, %cst_93 {dimension_numbers = #tpu.dot_dimension_numbers<[1], [0], [0], [1], [0, 0, 1, 1], [], []>} : vector<4x32xf32>, vector<32x128xf32>, vector<4x128xf32> -> vector<4x128xf32>
    %208 = arith.addf %187, %207 : vector<4x128xf32>
    %209 = vector.extract_strided_slice %70 {offsets = [4, 64], sizes = [4, 32], strides = [1, 1]} : vector<8x128xf32> to vector<4x32xf32>
    %210 = vector.extract_strided_slice %75 {offsets = [4, 64], sizes = [4, 32], strides = [1, 1]} : vector<8x128xf32> to vector<4x32xf32>
    %211 = vector.extract_strided_slice %80 {offsets = [4, 64], sizes = [4, 32], strides = [1, 1]} : vector<8x128xf32> to vector<4x32xf32>
    %212 = tpu.transpose %210, [1, 0] : vector<4x32xf32> -> vector<32x4xf32>
    %cst_94 = arith.constant dense<0.000000e+00> : vector<4x4xf32>
    %213 = tpu.matmul %209, %212, %cst_94 {dimension_numbers = #tpu.dot_dimension_numbers<[1], [0], [0], [1], [0, 0, 1, 1], [], []>} : vector<4x32xf32>, vector<32x4xf32>, vector<4x4xf32> -> vector<4x4xf32>
    %cst_95 = arith.constant 0.176776692 : f32
    %214 = vector.broadcast %cst_95 : f32 to vector<4x4xf32>
    %215 = arith.mulf %213, %214 : vector<4x4xf32>
    %cst_96 = arith.constant dense<0xFF800000> : vector<4xf32>
    %216 = vector.multi_reduction <maximumf>, %215, %cst_96 [1] : vector<4x4xf32> to vector<4xf32>
    %217 = vector.shape_cast %216 : vector<4xf32> to vector<4x1xf32>
    %218 = vector.broadcast %217 : vector<4x1xf32> to vector<4x4xf32>
    %219 = arith.subf %215, %218 : vector<4x4xf32>
    %220 = math.exp %219 : vector<4x4xf32>
    %cst_97 = arith.constant dense<0.000000e+00> : vector<4xf32>
    %221 = vector.multi_reduction <add>, %220, %cst_97 [1] : vector<4x4xf32> to vector<4xf32>
    %222 = vector.shape_cast %221 : vector<4xf32> to vector<4x1xf32>
    %223 = tpu.reciprocal %222 {approx = true} : vector<4x1xf32> -> vector<4x1xf32>
    %224 = vector.broadcast %223 : vector<4x1xf32> to vector<4x4xf32>
    %225 = arith.mulf %220, %224 : vector<4x4xf32>
    %cst_98 = arith.constant dense<0.000000e+00> : vector<4x32xf32>
    %226 = tpu.matmul %225, %211, %cst_98 {dimension_numbers = #tpu.dot_dimension_numbers<[1], [0], [0], [1], [0, 0, 1, 1], [], []>} : vector<4x4xf32>, vector<4x32xf32>, vector<4x32xf32> -> vector<4x32xf32>
    %c64_99 = arith.constant 64 : index
    %c0_100 = arith.constant 0 : index
    %227 = vector.load %arg12[%c64_99, %c0_100] : memref<128x128xf32, #tpu.memory_space<vmem>>, vector<32x128xf32>
    %cst_101 = arith.constant dense<0.000000e+00> : vector<4x128xf32>
    %228 = tpu.matmul %226, %227, %cst_101 {dimension_numbers = #tpu.dot_dimension_numbers<[1], [0], [0], [1], [0, 0, 1, 1], [], []>} : vector<4x32xf32>, vector<32x128xf32>, vector<4x128xf32> -> vector<4x128xf32>
    %229 = arith.addf %208, %228 : vector<4x128xf32>
    %230 = vector.extract_strided_slice %70 {offsets = [4, 96], sizes = [4, 32], strides = [1, 1]} : vector<8x128xf32> to vector<4x32xf32>
    %231 = vector.extract_strided_slice %75 {offsets = [4, 96], sizes = [4, 32], strides = [1, 1]} : vector<8x128xf32> to vector<4x32xf32>
    %232 = vector.extract_strided_slice %80 {offsets = [4, 96], sizes = [4, 32], strides = [1, 1]} : vector<8x128xf32> to vector<4x32xf32>
    %233 = tpu.transpose %231, [1, 0] : vector<4x32xf32> -> vector<32x4xf32>
    %cst_102 = arith.constant dense<0.000000e+00> : vector<4x4xf32>
    %234 = tpu.matmul %230, %233, %cst_102 {dimension_numbers = #tpu.dot_dimension_numbers<[1], [0], [0], [1], [0, 0, 1, 1], [], []>} : vector<4x32xf32>, vector<32x4xf32>, vector<4x4xf32> -> vector<4x4xf32>
    %cst_103 = arith.constant 0.176776692 : f32
    %235 = vector.broadcast %cst_103 : f32 to vector<4x4xf32>
    %236 = arith.mulf %234, %235 : vector<4x4xf32>
    %cst_104 = arith.constant dense<0xFF800000> : vector<4xf32>
    %237 = vector.multi_reduction <maximumf>, %236, %cst_104 [1] : vector<4x4xf32> to vector<4xf32>
    %238 = vector.shape_cast %237 : vector<4xf32> to vector<4x1xf32>
    %239 = vector.broadcast %238 : vector<4x1xf32> to vector<4x4xf32>
    %240 = arith.subf %236, %239 : vector<4x4xf32>
    %241 = math.exp %240 : vector<4x4xf32>
    %cst_105 = arith.constant dense<0.000000e+00> : vector<4xf32>
    %242 = vector.multi_reduction <add>, %241, %cst_105 [1] : vector<4x4xf32> to vector<4xf32>
    %243 = vector.shape_cast %242 : vector<4xf32> to vector<4x1xf32>
    %244 = tpu.reciprocal %243 {approx = true} : vector<4x1xf32> -> vector<4x1xf32>
    %245 = vector.broadcast %244 : vector<4x1xf32> to vector<4x4xf32>
    %246 = arith.mulf %241, %245 : vector<4x4xf32>
    %cst_106 = arith.constant dense<0.000000e+00> : vector<4x32xf32>
    %247 = tpu.matmul %246, %232, %cst_106 {dimension_numbers = #tpu.dot_dimension_numbers<[1], [0], [0], [1], [0, 0, 1, 1], [], []>} : vector<4x4xf32>, vector<4x32xf32>, vector<4x32xf32> -> vector<4x32xf32>
    %c96_107 = arith.constant 96 : index
    %c0_108 = arith.constant 0 : index
    %248 = vector.load %arg12[%c96_107, %c0_108] : memref<128x128xf32, #tpu.memory_space<vmem>>, vector<32x128xf32>
    %cst_109 = arith.constant dense<0.000000e+00> : vector<4x128xf32>
    %249 = tpu.matmul %247, %248, %cst_109 {dimension_numbers = #tpu.dot_dimension_numbers<[1], [0], [0], [1], [0, 0, 1, 1], [], []>} : vector<4x32xf32>, vector<32x128xf32>, vector<4x128xf32> -> vector<4x128xf32>
    %250 = arith.addf %229, %249 : vector<4x128xf32>
    %251 = tpu.concatenate %165, %250 in 0 : vector<4x128xf32>, vector<4x128xf32> -> vector<8x128xf32>
    %c0_110 = arith.constant 0 : index
    %c0_111 = arith.constant 0 : index
    %252 = vector.load %arg13[%c0_110, %c0_111] : memref<1x128xf32, #tpu.memory_space<vmem>>, vector<1x128xf32>
    %253 = vector.broadcast %252 : vector<1x128xf32> to vector<8x128xf32>
    %254 = arith.addf %251, %253 : vector<8x128xf32>
    %255 = arith.addf %40, %254 : vector<8x128xf32>
    %c0_112 = arith.constant 0 : index
    %c0_113 = arith.constant 0 : index
    %256 = vector.load %arg20[%c0_112, %c0_113] : memref<1x128xf32, #tpu.memory_space<vmem>>, vector<1x128xf32>
    %c0_114 = arith.constant 0 : index
    %c0_115 = arith.constant 0 : index
    %257 = vector.load %arg21[%c0_114, %c0_115] : memref<1x128xf32, #tpu.memory_space<vmem>>, vector<1x128xf32>
    %cst_116 = arith.constant dense<0.000000e+00> : vector<8xf32>
    %258 = vector.multi_reduction <add>, %255, %cst_116 [1] : vector<8x128xf32> to vector<8xf32>
    %259 = vector.shape_cast %258 : vector<8xf32> to vector<8x1xf32>
    %cst_117 = arith.constant 1.280000e+02 : f32
    %260 = vector.broadcast %cst_117 : f32 to vector<8x1xf32>
    %261 = arith.divf %259, %260 : vector<8x1xf32>
    %262 = vector.broadcast %261 : vector<8x1xf32> to vector<8x128xf32>
    %263 = arith.subf %255, %262 : vector<8x128xf32>
    %264 = arith.mulf %263, %263 : vector<8x128xf32>
    %cst_118 = arith.constant dense<0.000000e+00> : vector<8xf32>
    %265 = vector.multi_reduction <add>, %264, %cst_118 [1] : vector<8x128xf32> to vector<8xf32>
    %266 = vector.shape_cast %265 : vector<8xf32> to vector<8x1xf32>
    %cst_119 = arith.constant 1.270000e+02 : f32
    %267 = vector.broadcast %cst_119 : f32 to vector<8x1xf32>
    %268 = arith.divf %266, %267 : vector<8x1xf32>
    %269 = math.sqrt %268 : vector<8x1xf32>
    %270 = vector.broadcast %261 : vector<8x1xf32> to vector<8x128xf32>
    %271 = arith.subf %255, %270 : vector<8x128xf32>
    %272 = vector.broadcast %256 : vector<1x128xf32> to vector<8x128xf32>
    %273 = arith.mulf %272, %271 : vector<8x128xf32>
    %cst_120 = arith.constant 9.99999997E-7 : f32
    %274 = vector.broadcast %cst_120 : f32 to vector<8x1xf32>
    %275 = arith.addf %269, %274 : vector<8x1xf32>
    %276 = tpu.reciprocal %275 {approx = true} : vector<8x1xf32> -> vector<8x1xf32>
    %277 = vector.broadcast %276 : vector<8x1xf32> to vector<8x128xf32>
    %278 = arith.mulf %273, %277 : vector<8x128xf32>
    %279 = vector.broadcast %257 : vector<1x128xf32> to vector<8x128xf32>
    %280 = arith.addf %278, %279 : vector<8x128xf32>
    %c0_121 = arith.constant 0 : index
    %c0_122 = arith.constant 0 : index
    %281 = vector.load %arg14[%c0_121, %c0_122] : memref<128x512xf32, #tpu.memory_space<vmem>>, vector<128x512xf32>
    %cst_123 = arith.constant dense<0.000000e+00> : vector<8x512xf32>
    %282 = tpu.matmul %280, %281, %cst_123 {dimension_numbers = #tpu.dot_dimension_numbers<[1], [0], [0], [1], [0, 0, 1, 1], [], []>} : vector<8x128xf32>, vector<128x512xf32>, vector<8x512xf32> -> vector<8x512xf32>
    %c0_124 = arith.constant 0 : index
    %c0_125 = arith.constant 0 : index
    %283 = vector.load %arg15[%c0_124, %c0_125] : memref<1x512xf32, #tpu.memory_space<vmem>>, vector<1x512xf32>
    %284 = vector.broadcast %283 : vector<1x512xf32> to vector<8x512xf32>
    %285 = arith.addf %282, %284 : vector<8x512xf32>
    %cst_126 = arith.constant 0.000000e+00 : f32
    %286 = vector.broadcast %cst_126 : f32 to vector<8x512xf32>
    %287 = arith.maximumf %285, %286 : vector<8x512xf32>
    %c0_127 = arith.constant 0 : index
    %c0_128 = arith.constant 0 : index
    %288 = vector.load %arg16[%c0_127, %c0_128] : memref<512x128xf32, #tpu.memory_space<vmem>>, vector<512x128xf32>
    %cst_129 = arith.constant dense<0.000000e+00> : vector<8x128xf32>
    %289 = tpu.matmul %287, %288, %cst_129 {dimension_numbers = #tpu.dot_dimension_numbers<[1], [0], [0], [1], [0, 0, 1, 1], [], []>} : vector<8x512xf32>, vector<512x128xf32>, vector<8x128xf32> -> vector<8x128xf32>
    %290 = arith.addf %255, %289 : vector<8x128xf32>
    %c0_130 = arith.constant 0 : index
    %c0_131 = arith.constant 0 : index
    %291 = vector.load %arg17[%c0_130, %c0_131] : memref<1x128xf32, #tpu.memory_space<vmem>>, vector<1x128xf32>
    %292 = vector.broadcast %291 : vector<1x128xf32> to vector<8x128xf32>
    %293 = arith.addf %290, %292 : vector<8x128xf32>
    %c0_132 = arith.constant 0 : index
    %c0_133 = arith.constant 0 : index
    %294 = vector.load %arg22[%c0_132, %c0_133] : memref<1x128xf32, #tpu.memory_space<vmem>>, vector<1x128xf32>
    %c0_134 = arith.constant 0 : index
    %c0_135 = arith.constant 0 : index
    %295 = vector.load %arg23[%c0_134, %c0_135] : memref<1x128xf32, #tpu.memory_space<vmem>>, vector<1x128xf32>
    %cst_136 = arith.constant dense<0.000000e+00> : vector<8xf32>
    %296 = vector.multi_reduction <add>, %293, %cst_136 [1] : vector<8x128xf32> to vector<8xf32>
    %297 = vector.shape_cast %296 : vector<8xf32> to vector<8x1xf32>
    %cst_137 = arith.constant 1.280000e+02 : f32
    %298 = vector.broadcast %cst_137 : f32 to vector<8x1xf32>
    %299 = arith.divf %297, %298 : vector<8x1xf32>
    %300 = vector.broadcast %299 : vector<8x1xf32> to vector<8x128xf32>
    %301 = arith.subf %293, %300 : vector<8x128xf32>
    %302 = arith.mulf %301, %301 : vector<8x128xf32>
    %cst_138 = arith.constant dense<0.000000e+00> : vector<8xf32>
    %303 = vector.multi_reduction <add>, %302, %cst_138 [1] : vector<8x128xf32> to vector<8xf32>
    %304 = vector.shape_cast %303 : vector<8xf32> to vector<8x1xf32>
    %cst_139 = arith.constant 1.270000e+02 : f32
    %305 = vector.broadcast %cst_139 : f32 to vector<8x1xf32>
    %306 = arith.divf %304, %305 : vector<8x1xf32>
    %307 = math.sqrt %306 : vector<8x1xf32>
    %308 = vector.broadcast %299 : vector<8x1xf32> to vector<8x128xf32>
    %309 = arith.subf %293, %308 : vector<8x128xf32>
    %310 = vector.broadcast %294 : vector<1x128xf32> to vector<8x128xf32>
    %311 = arith.mulf %310, %309 : vector<8x128xf32>
    %cst_140 = arith.constant 9.99999997E-7 : f32
    %312 = vector.broadcast %cst_140 : f32 to vector<8x1xf32>
    %313 = arith.addf %307, %312 : vector<8x1xf32>
    %314 = tpu.reciprocal %313 {approx = true} : vector<8x1xf32> -> vector<8x1xf32>
    %315 = vector.broadcast %314 : vector<8x1xf32> to vector<8x128xf32>
    %316 = arith.mulf %311, %315 : vector<8x128xf32>
    %317 = vector.broadcast %295 : vector<1x128xf32> to vector<8x128xf32>
    %318 = arith.addf %316, %317 : vector<8x128xf32>
    %319 = vector.extract_strided_slice %318 {offsets = [0, 0], sizes = [4, 128], strides = [1, 1]} : vector<8x128xf32> to vector<4x128xf32>
    %cst_141 = arith.constant dense<0.000000e+00> : vector<128xf32>
    %320 = vector.multi_reduction <add>, %319, %cst_141 [0] : vector<4x128xf32> to vector<128xf32>
    %321 = vector.shape_cast %320 : vector<128xf32> to vector<1x128xf32>
    %cst_142 = arith.constant 4.000000e+00 : f32
    %322 = vector.broadcast %cst_142 : f32 to vector<1x128xf32>
    %323 = arith.divf %321, %322 : vector<1x128xf32>
    %324 = vector.extract_strided_slice %318 {offsets = [4, 0], sizes = [4, 128], strides = [1, 1]} : vector<8x128xf32> to vector<4x128xf32>
    %cst_143 = arith.constant dense<0.000000e+00> : vector<128xf32>
    %325 = vector.multi_reduction <add>, %324, %cst_143 [0] : vector<4x128xf32> to vector<128xf32>
    %326 = vector.shape_cast %325 : vector<128xf32> to vector<1x128xf32>
    %cst_144 = arith.constant 4.000000e+00 : f32
    %327 = vector.broadcast %cst_144 : f32 to vector<1x128xf32>
    %328 = arith.divf %326, %327 : vector<1x128xf32>
    %329 = tpu.concatenate %323, %328 in 0 : vector<1x128xf32>, vector<1x128xf32> -> vector<2x128xf32>
    %c0_145 = arith.constant 0 : index
    %c0_146 = arith.constant 0 : index
    %330 = vector.load %arg24[%c0_145, %c0_146] : memref<128x3xf32, #tpu.memory_space<vmem>>, vector<128x3xf32>
    %cst_147 = arith.constant dense<0.000000e+00> : vector<2x3xf32>
    %331 = tpu.matmul %329, %330, %cst_147 {dimension_numbers = #tpu.dot_dimension_numbers<[1], [0], [0], [1], [0, 0, 1, 1], [], []>} : vector<2x128xf32>, vector<128x3xf32>, vector<2x3xf32> -> vector<2x3xf32>
    %c0_148 = arith.constant 0 : index
    %c0_149 = arith.constant 0 : index
    %332 = vector.load %arg25[%c0_148, %c0_149] : memref<1x3xf32, #tpu.memory_space<vmem>>, vector<1x3xf32>
    %333 = vector.broadcast %332 : vector<1x3xf32> to vector<2x3xf32>
    %334 = arith.addf %331, %333 : vector<2x3xf32>
    %c0_150 = arith.constant 0 : index
    %c0_151 = arith.constant 0 : index
    %335 = vector.load %arg26[%c0_150, %c0_151] : memref<2x3xf32, #tpu.memory_space<vmem>>, vector<2x3xf32>
    tpu.vector_store %arg26[%c0_150, %c0_151], %334 {strides = array<i32>} : memref<2x3xf32, #tpu.memory_space<vmem>>, vector<2x3xf32>,
    return
  }
  func.func @transform_0(%arg0: i32) -> (i32, i32) {
    %c0_i32 = arith.constant 0 : i32
    %c0_i32_0 = arith.constant 0 : i32
    %c0_i32_1 = arith.constant 0 : i32
    return %c0_i32, %c0_i32_0 : i32, i32
  }
  func.func @transform_1(%arg0: i32) -> (i32, i32) {
    %c0_i32 = arith.constant 0 : i32
    %c0_i32_0 = arith.constant 0 : i32
    %c0_i32_1 = arith.constant 0 : i32
    return %c0_i32, %c0_i32_0 : i32, i32
  }
  func.func @transform_2(%arg0: i32) -> (i32, i32) {
    %c0_i32 = arith.constant 0 : i32
    %c0_i32_0 = arith.constant 0 : i32
    %c0_i32_1 = arith.constant 0 : i32
    return %c0_i32, %c0_i32_0 : i32, i32
  }
  func.func @transform_3(%arg0: i32) -> (i32, i32) {
    %c0_i32 = arith.constant 0 : i32
    %c0_i32_0 = arith.constant 0 : i32
    %c0_i32_1 = arith.constant 0 : i32
    return %c0_i32, %c0_i32_0 : i32, i32
  }
  func.func @transform_4(%arg0: i32) -> (i32, i32) {
    %c0_i32 = arith.constant 0 : i32
    %c0_i32_0 = arith.constant 0 : i32
    %c0_i32_1 = arith.constant 0 : i32
    return %c0_i32, %c0_i32_0 : i32, i32
  }
  func.func @transform_5(%arg0: i32) -> (i32, i32) {
    %c0_i32 = arith.constant 0 : i32
    %c0_i32_0 = arith.constant 0 : i32
    %c0_i32_1 = arith.constant 0 : i32
    return %c0_i32, %c0_i32_0 : i32, i32
  }
  func.func @transform_6(%arg0: i32) -> (i32, i32) {
    %c0_i32 = arith.constant 0 : i32
    %c0_i32_0 = arith.constant 0 : i32
    %c0_i32_1 = arith.constant 0 : i32
    return %c0_i32, %c0_i32_0 : i32, i32
  }
  func.func @transform_7(%arg0: i32) -> (i32, i32) {
    %c0_i32 = arith.constant 0 : i32
    %c0_i32_0 = arith.constant 0 : i32
    %c0_i32_1 = arith.constant 0 : i32
    return %c0_i32, %c0_i32_0 : i32, i32
  }
  func.func @transform_8(%arg0: i32) -> (i32, i32) {
    %c0_i32 = arith.constant 0 : i32
    %c0_i32_0 = arith.constant 0 : i32
    %c0_i32_1 = arith.constant 0 : i32
    return %c0_i32, %c0_i32_0 : i32, i32
  }
  func.func @transform_9(%arg0: i32) -> (i32, i32) {
    %c0_i32 = arith.constant 0 : i32
    %c0_i32_0 = arith.constant 0 : i32
    %c0_i32_1 = arith.constant 0 : i32
    return %c0_i32, %c0_i32_0 : i32, i32
  }
  func.func @transform_10(%arg0: i32) -> (i32, i32) {
    %c0_i32 = arith.constant 0 : i32
    %c0_i32_0 = arith.constant 0 : i32
    %c0_i32_1 = arith.constant 0 : i32
    return %c0_i32, %c0_i32_0 : i32, i32
  }
  func.func @transform_11(%arg0: i32) -> (i32, i32) {
    %c0_i32 = arith.constant 0 : i32
    %c0_i32_0 = arith.constant 0 : i32
    %c0_i32_1 = arith.constant 0 : i32
    return %c0_i32, %c0_i32_0 : i32, i32
  }
  func.func @transform_12(%arg0: i32) -> (i32, i32) {
    %c0_i32 = arith.constant 0 : i32
    %c0_i32_0 = arith.constant 0 : i32
    %c0_i32_1 = arith.constant 0 : i32
    return %c0_i32, %c0_i32_0 : i32, i32
  }
  func.func @transform_13(%arg0: i32) -> (i32, i32) {
    %c0_i32 = arith.constant 0 : i32
    %c0_i32_0 = arith.constant 0 : i32
    %c0_i32_1 = arith.constant 0 : i32
    return %c0_i32, %c0_i32_0 : i32, i32
  }
  func.func @transform_14(%arg0: i32) -> (i32, i32) {
    %c0_i32 = arith.constant 0 : i32
    %c0_i32_0 = arith.constant 0 : i32
    %c0_i32_1 = arith.constant 0 : i32
    return %c0_i32, %c0_i32_0 : i32, i32
  }
  func.func @transform_15(%arg0: i32) -> (i32, i32) {
    %c0_i32 = arith.constant 0 : i32
    %c0_i32_0 = arith.constant 0 : i32
    %c0_i32_1 = arith.constant 0 : i32
    return %c0_i32, %c0_i32_0 : i32, i32
  }
  func.func @transform_16(%arg0: i32) -> (i32, i32) {
    %c0_i32 = arith.constant 0 : i32
    %c0_i32_0 = arith.constant 0 : i32
    %c0_i32_1 = arith.constant 0 : i32
    return %c0_i32, %c0_i32_0 : i32, i32
  }
  func.func @transform_17(%arg0: i32) -> (i32, i32) {
    %c0_i32 = arith.constant 0 : i32
    %c0_i32_0 = arith.constant 0 : i32
    %c0_i32_1 = arith.constant 0 : i32
    return %c0_i32, %c0_i32_0 : i32, i32
  }
  func.func @transform_18(%arg0: i32) -> (i32, i32) {
    %c0_i32 = arith.constant 0 : i32
    %c0_i32_0 = arith.constant 0 : i32
    %c0_i32_1 = arith.constant 0 : i32
    return %c0_i32, %c0_i32_0 : i32, i32
  }
  func.func @transform_19(%arg0: i32) -> (i32, i32) {
    %c0_i32 = arith.constant 0 : i32
    %c0_i32_0 = arith.constant 0 : i32
    %c0_i32_1 = arith.constant 0 : i32
    return %c0_i32, %c0_i32_0 : i32, i32
  }
  func.func @transform_20(%arg0: i32) -> (i32, i32) {
    %c0_i32 = arith.constant 0 : i32
    %c0_i32_0 = arith.constant 0 : i32
    %c0_i32_1 = arith.constant 0 : i32
    return %c0_i32, %c0_i32_0 : i32, i32
  }
  func.func @transform_21(%arg0: i32) -> (i32, i32) {
    %c0_i32 = arith.constant 0 : i32
    %c0_i32_0 = arith.constant 0 : i32
    %c0_i32_1 = arith.constant 0 : i32
    return %c0_i32, %c0_i32_0 : i32, i32
  }
  func.func @transform_22(%arg0: i32) -> (i32, i32) {
    %c0_i32 = arith.constant 0 : i32
    %c0_i32_0 = arith.constant 0 : i32
    %c0_i32_1 = arith.constant 0 : i32
    return %c0_i32, %c0_i32_0 : i32, i32
  }
  func.func @transform_23(%arg0: i32) -> (i32, i32) {
    %c0_i32 = arith.constant 0 : i32
    %c0_i32_0 = arith.constant 0 : i32
    %c0_i32_1 = arith.constant 0 : i32
    return %c0_i32, %c0_i32_0 : i32, i32
  }
  func.func @transform_24(%arg0: i32) -> (i32, i32) {
    %c0_i32 = arith.constant 0 : i32
    %c0_i32_0 = arith.constant 0 : i32
    %c0_i32_1 = arith.constant 0 : i32
    return %c0_i32, %c0_i32_0 : i32, i32
  }
  func.func @transform_25(%arg0: i32) -> (i32, i32) {
    %c0_i32 = arith.constant 0 : i32
    %c0_i32_0 = arith.constant 0 : i32
    %c0_i32_1 = arith.constant 0 : i32
    return %c0_i32, %c0_i32_0 : i32, i32
  }
}

</mosaic_0001>

<llo_original>
// kernel: _lambda_.1
$region0: #{_lambda_.1}
  #allocation0 [shape = 'u32[]', space=smem, size = 0x4, offset = 0x4, fixed_abs, tag = 'smem constant byte address 0x4 - core index']
  #allocation1 [shape = 'u32[144,128]{1,0:T(1,128)}', space=vmem, size = 0x12000, scoped, tag = 'internal scratch']
  %s0 = inlined_call_operand.vmem [shape: f32[120,10], index: 0, kind: input, shape index: {}]
  %s1 = inlined_call_operand.vmem [shape: f32[10,64], index: 1, kind: input, shape index: {}]
  %s2 = inlined_call_operand.vmem [shape: f32[1,64], index: 2, kind: input, shape index: {}]
  %s3 = inlined_call_operand.hbm [shape: f32[320,128], index: 3, kind: input, shape index: {}]
  %s4 = inlined_call_operand.vmem [shape: f32[1,128], index: 4, kind: input, shape index: {}]
  %s5 = inlined_call_operand.hbm [shape: f32[128,128], index: 5, kind: input, shape index: {}]
  %s6 = inlined_call_operand.vmem [shape: f32[1,128], index: 6, kind: input, shape index: {}]
  %s7 = inlined_call_operand.hbm [shape: f32[128,128], index: 7, kind: input, shape index: {}]
  %s8 = inlined_call_operand.vmem [shape: f32[1,128], index: 8, kind: input, shape index: {}]
  %s9 = inlined_call_operand.hbm [shape: f32[128,128], index: 9, kind: input, shape index: {}]
  %s10 = inlined_call_operand.vmem [shape: f32[1,128], index: 10, kind: input, shape index: {}]
  %s11 = inlined_call_operand.hbm [shape: f32[128,128], index: 11, kind: input, shape index: {}]
  %s12 = inlined_call_operand.vmem [shape: f32[1,128], index: 12, kind: input, shape index: {}]
  %s13 = inlined_call_operand.vmem [shape: f32[128,512], index: 13, kind: input, shape index: {}]
  %s14 = inlined_call_operand.vmem [shape: f32[1,512], index: 14, kind: input, shape index: {}]
  %s15 = inlined_call_operand.hbm [shape: f32[512,128], index: 15, kind: input, shape index: {}]
  %s16 = inlined_call_operand.vmem [shape: f32[1,128], index: 16, kind: input, shape index: {}]
  %s17 = inlined_call_operand.vmem [shape: f32[1,128], index: 17, kind: input, shape index: {}, may-alias: {17,19,21}]
  %s18 = inlined_call_operand.vmem [shape: f32[1,128], index: 18, kind: input, shape index: {}, may-alias: {18,20,22}]
  %s19 = inlined_call_operand.vmem [shape: f32[1,128], index: 19, kind: input, shape index: {}, may-alias: {17,19,21}]
  %s20 = inlined_call_operand.vmem [shape: f32[1,128], index: 20, kind: input, shape index: {}, may-alias: {18,20,22}]
  %s21 = inlined_call_operand.vmem [shape: f32[1,128], index: 21, kind: input, shape index: {}, may-alias: {17,19,21}]
  %s22 = inlined_call_operand.vmem [shape: f32[1,128], index: 22, kind: input, shape index: {}, may-alias: {18,20,22}]
  %s23 = inlined_call_operand.hbm [shape: f32[128,3], index: 23, kind: input, shape index: {}]
  %s24 = inlined_call_operand.vmem [shape: f32[1,3], index: 24, kind: input, shape index: {}]
  %s25 = inlined_call_operand.hbm [shape: f32[2,3], index: 25, kind: output, shape index: {}]
  %s26 = sld [smem:[#allocation0]]
  $region138: #{_lambda_.1} parent=0
    _
  %s28 = ssub.s32 1, %s26
  %s29 = scalar_select 0, %s28, %s26
  $region1: #{_lambda_.1} parent=0
    #allocation2 [shape = 'u8[163840]{0}', space=vmem, size = 0x28000, scoped, tag = 'input window, operand 3, single buffered']
    #allocation3 [shape = 's32[1]{0}', space=sflag, size = 0x4, scoped, tag = 'scoped memory for _lambda_.1']
    #allocation4 [shape = 's32[1]{0}', space=sflag, size = 0x4, scoped, tag = 'scoped memory for _lambda_.1']
    #allocation5 [shape = 'u8[65536]{0}', space=vmem, size = 0x10000, scoped, tag = 'input window, operand 5, single buffered']
    #allocation6 [shape = 's32[1]{0}', space=sflag, size = 0x4, scoped, tag = 'scoped memory for _lambda_.1']
    #allocation7 [shape = 'u8[65536]{0}', space=vmem, size = 0x10000, scoped, tag = 'input window, operand 7, single buffered']
    #allocation8 [shape = 'u8[65536]{0}', space=vmem, size = 0x10000, scoped, tag = 'input window, operand 9, single buffered']
    #allocation9 [shape = 's32[1]{0}', space=sflag, size = 0x4, scoped, tag = 'scoped memory for _lambda_.1']
    #allocation10 [shape = 'u8[65536]{0}', space=vmem, size = 0x10000, scoped, tag = 'input window, operand 11, single buffered']
    #allocation11 [shape = 'u8[262144]{0}', space=vmem, size = 0x40000, scoped, tag = 'input window, operand 15, single buffered']
    #allocation12 [shape = 's32[1]{0}', space=sflag, size = 0x4, scoped, tag = 'scoped memory for _lambda_.1']
    #allocation13 [shape = 'u8[65536]{0}', space=vmem, size = 0x10000, scoped, tag = 'input window, operand 23, single buffered']
    #allocation14 [shape = 'u8[1024]{0}', space=vmem, size = 0x400, scoped, tag = 'output window, operand 0, single buffered']
    %30 = vsyncpa [#allocation3], 0
    %31 = vsyncpa [#allocation6], 0
    %32 = vsyncpa [#allocation9], 0
    %33 = vsyncpa [#allocation12], 0
    %34 = vsyncpa [#allocation4], 0
    // Predicated region
    $region2: #{_lambda_.1} parent=1 // pred_check
      _
    $region3: #{_lambda_.1} parent=1 // pred_check_branch
      %36 = sbr.rel (0) target = $region5
    $region4: #{_lambda_.1} parent=1 // pred_region
      _
    $region5: #{_lambda_.1} parent=1 // pred_fallthru
      _
    // Predicated region
    $region6: #{_lambda_.1} parent=1 // pred_check
      _
    $region7: #{_lambda_.1} parent=1 // pred_check_branch
      %38 = sbr.rel (0) target = $region9
    $region8: #{_lambda_.1} parent=1 // pred_region
      _
    $region9: #{_lambda_.1} parent=1 // pred_fallthru
      _
    // Predicated region
    $region10: #{_lambda_.1} parent=1 // pred_check
      _
    $region11: #{_lambda_.1} parent=1 // pred_check_branch
      %40 = sbr.rel (0) target = $region13
    $region12: #{_lambda_.1} parent=1 // pred_region
      _
    $region13: #{_lambda_.1} parent=1 // pred_fallthru
      _
    // Predicated region
    $region14: #{_lambda_.1} parent=1 // pred_check
      _
    $region15: #{_lambda_.1} parent=1 // pred_check_branch
      %42 = sbr.rel (0) target = $region17
    $region16: #{_lambda_.1} parent=1 // pred_region
      %s44 = ssub.s32 5120, 5120
      %45 = vsyncadd [#allocation3], %s44
      %s46 = sshll.u32 [#allocation2], 4
      %s47 = int_to_ptr.vmem [resolvable:$true] %s46
      %52 = dma.hbm_to_vmem [thread:$0]  %s3, 5120, %s47, [#allocation3], 128, 128, 8
    $region17: #{_lambda_.1} parent=1 // pred_fallthru
      _
    // Predicated region
    $region18: #{_lambda_.1} parent=1 // pred_check
      _
    $region19: #{_lambda_.1} parent=1 // pred_check_branch
      %54 = sbr.rel (0) target = $region21
    $region20: #{_lambda_.1} parent=1 // pred_region
      _
    $region21: #{_lambda_.1} parent=1 // pred_fallthru
      _
    // Predicated region
    $region22: #{_lambda_.1} parent=1 // pred_check
      _
    $region23: #{_lambda_.1} parent=1 // pred_check_branch
      %56 = sbr.rel (0) target = $region25
    $region24: #{_lambda_.1} parent=1 // pred_region
      %s58 = ssub.s32 2048, 2048
      %59 = vsyncadd [#allocation6], %s58
      %s60 = sshll.u32 [#allocation5], 4
      %s61 = int_to_ptr.vmem [resolvable:$true] %s60
      %66 = dma.hbm_to_vmem [thread:$0]  %s5, 2048, %s61, [#allocation6], 128, 128, 8
    $region25: #{_lambda_.1} parent=1 // pred_fallthru
      _
    // Predicated region
    $region26: #{_lambda_.1} parent=1 // pred_check
      _
    $region27: #{_lambda_.1} parent=1 // pred_check_branch
      %68 = sbr.rel (0) target = $region29
    $region28: #{_lambda_.1} parent=1 // pred_region
      _
    $region29: #{_lambda_.1} parent=1 // pred_fallthru
      _
    // Predicated region
    $region30: #{_lambda_.1} parent=1 // pred_check
      _
    $region31: #{_lambda_.1} parent=1 // pred_check_branch
      %70 = sbr.rel (0) target = $region33
    $region32: #{_lambda_.1} parent=1 // pred_region
      %s72 = ssub.s32 2048, 2048
      %73 = vsyncadd [#allocation6], %s72
      %s74 = sshll.u32 [#allocation7], 4
      %s75 = int_to_ptr.vmem [resolvable:$true] %s74
      %80 = dma.hbm_to_vmem [thread:$0]  %s7, 2048, %s75, [#allocation6], 128, 128, 8
    $region33: #{_lambda_.1} parent=1 // pred_fallthru
      _
    // Predicated region
    $region34: #{_lambda_.1} parent=1 // pred_check
      _
    $region35: #{_lambda_.1} parent=1 // pred_check_branch
      %82 = sbr.rel (0) target = $region37
    $region36: #{_lambda_.1} parent=1 // pred_region
      _
    $region37: #{_lambda_.1} parent=1 // pred_fallthru
      _
    // Predicated region
    $region38: #{_lambda_.1} parent=1 // pred_check
      _
    $region39: #{_lambda_.1} parent=1 // pred_check_branch
      %84 = sbr.rel (0) target = $region41
    $region40: #{_lambda_.1} parent=1 // pred_region
      %s86 = ssub.s32 2048, 2048
      %87 = vsyncadd [#allocation9], %s86
      %s88 = sshll.u32 [#allocation8], 4
      %s89 = int_to_ptr.vmem [resolvable:$true] %s88
      %94 = dma.hbm_to_vmem [thread:$0]  %s9, 2048, %s89, [#allocation9], 128, 128, 8
    $region41: #{_lambda_.1} parent=1 // pred_fallthru
      _
    // Predicated region
    $region42: #{_lambda_.1} parent=1 // pred_check
      _
    $region43: #{_lambda_.1} parent=1 // pred_check_branch
      %96 = sbr.rel (0) target = $region45
    $region44: #{_lambda_.1} parent=1 // pred_region
      _
    $region45: #{_lambda_.1} parent=1 // pred_fallthru
      _
    // Predicated region
    $region46: #{_lambda_.1} parent=1 // pred_check
      _
    $region47: #{_lambda_.1} parent=1 // pred_check_branch
      %98 = sbr.rel (0) target = $region49
    $region48: #{_lambda_.1} parent=1 // pred_region
      %s100 = ssub.s32 2048, 2048
      %101 = vsyncadd [#allocation9], %s100
      %s102 = sshll.u32 [#allocation10], 4
      %s103 = int_to_ptr.vmem [resolvable:$true] %s102
      %108 = dma.hbm_to_vmem [thread:$0]  %s11, 2048, %s103, [#allocation9], 128, 128, 8
    $region49: #{_lambda_.1} parent=1 // pred_fallthru
      _
    // Predicated region
    $region50: #{_lambda_.1} parent=1 // pred_check
      _
    $region51: #{_lambda_.1} parent=1 // pred_check_branch
      %110 = sbr.rel (0) target = $region53
    $region52: #{_lambda_.1} parent=1 // pred_region
      _
    $region53: #{_lambda_.1} parent=1 // pred_fallthru
      _
    // Predicated region
    $region54: #{_lambda_.1} parent=1 // pred_check
      _
    $region55: #{_lambda_.1} parent=1 // pred_check_branch
      %112 = sbr.rel (0) target = $region57
    $region56: #{_lambda_.1} parent=1 // pred_region
      _
    $region57: #{_lambda_.1} parent=1 // pred_fallthru
      _
    // Predicated region
    $region58: #{_lambda_.1} parent=1 // pred_check
      _
    $region59: #{_lambda_.1} parent=1 // pred_check_branch
      %114 = sbr.rel (0) target = $region61
    $region60: #{_lambda_.1} parent=1 // pred_region
      _
    $region61: #{_lambda_.1} parent=1 // pred_fallthru
      _
    // Predicated region
    $region62: #{_lambda_.1} parent=1 // pred_check
      _
    $region63: #{_lambda_.1} parent=1 // pred_check_branch
      %116 = sbr.rel (0) target = $region65
    $region64: #{_lambda_.1} parent=1 // pred_region
      %s118 = ssub.s32 8192, 8192
      %119 = vsyncadd [#allocation12], %s118
      %s120 = sshll.u32 [#allocation11], 4
      %s121 = int_to_ptr.vmem [resolvable:$true] %s120
      %126 = dma.hbm_to_vmem [thread:$0]  %s15, 8192, %s121, [#allocation12], 128, 128, 8
    $region65: #{_lambda_.1} parent=1 // pred_fallthru
      _
    // Predicated region
    $region66: #{_lambda_.1} parent=1 // pred_check
      _
    $region67: #{_lambda_.1} parent=1 // pred_check_branch
      %128 = sbr.rel (0) target = $region69
    $region68: #{_lambda_.1} parent=1 // pred_region
      _
    $region69: #{_lambda_.1} parent=1 // pred_fallthru
      _
    // Predicated region
    $region70: #{_lambda_.1} parent=1 // pred_check
      _
    $region71: #{_lambda_.1} parent=1 // pred_check_branch
      %130 = sbr.rel (0) target = $region73
    $region72: #{_lambda_.1} parent=1 // pred_region
      _
    $region73: #{_lambda_.1} parent=1 // pred_fallthru
      _
    // Predicated region
    $region74: #{_lambda_.1} parent=1 // pred_check
      _
    $region75: #{_lambda_.1} parent=1 // pred_check_branch
      %132 = sbr.rel (0) target = $region77
    $region76: #{_lambda_.1} parent=1 // pred_region
      _
    $region77: #{_lambda_.1} parent=1 // pred_fallthru
      _
    // Predicated region
    $region78: #{_lambda_.1} parent=1 // pred_check
      _
    $region79: #{_lambda_.1} parent=1 // pred_check_branch
      %134 = sbr.rel (0) target = $region81
    $region80: #{_lambda_.1} parent=1 // pred_region
      _
    $region81: #{_lambda_.1} parent=1 // pred_fallthru
      _
    // Predicated region
    $region82: #{_lambda_.1} parent=1 // pred_check
      _
    $region83: #{_lambda_.1} parent=1 // pred_check_branch
      %136 = sbr.rel (0) target = $region85
    $region84: #{_lambda_.1} parent=1 // pred_region
      _
    $region85: #{_lambda_.1} parent=1 // pred_fallthru
      _
    // Predicated region
    $region86: #{_lambda_.1} parent=1 // pred_check
      _
    $region87: #{_lambda_.1} parent=1 // pred_check_branch
      %138 = sbr.rel (0) target = $region89
    $region88: #{_lambda_.1} parent=1 // pred_region
      _
    $region89: #{_lambda_.1} parent=1 // pred_fallthru
      _
    // Predicated region
    $region90: #{_lambda_.1} parent=1 // pred_check
      _
    $region91: #{_lambda_.1} parent=1 // pred_check_branch
      %140 = sbr.rel (0) target = $region93
    $region92: #{_lambda_.1} parent=1 // pred_region
      _
    $region93: #{_lambda_.1} parent=1 // pred_fallthru
      _
    // Predicated region
    $region94: #{_lambda_.1} parent=1 // pred_check
      _
    $region95: #{_lambda_.1} parent=1 // pred_check_branch
      %142 = sbr.rel (0) target = $region97
    $region96: #{_lambda_.1} parent=1 // pred_region
      %s144 = ssub.s32 2048, 2048
      %145 = vsyncadd [#allocation12], %s144
      %s146 = sshll.u32 [#allocation13], 4
      %s147 = int_to_ptr.vmem [resolvable:$true] %s146
      %152 = dma.hbm_to_vmem [thread:$0]  %s23, 2048, %s147, [#allocation12], 128, 128, 8
    $region97: #{_lambda_.1} parent=1 // pred_fallthru
      _
    // Predicated region
    $region98: #{_lambda_.1} parent=1 // pred_check
      _
    $region99: #{_lambda_.1} parent=1 // pred_check_branch
      %154 = sbr.rel (0) target = $region101
    $region100: #{_lambda_.1} parent=1 // pred_region
      _
    $region101: #{_lambda_.1} parent=1 // pred_fallthru
      _
    // Predicated region
    $region102: #{_lambda_.1} parent=1 // pred_check
      _
    $region103: #{_lambda_.1} parent=1 // pred_check_branch
      %156 = sbr.rel (0) target = $region105
    $region104: #{_lambda_.1} parent=1 // pred_region
      %157 = dma.done [#allocation3], 5120
    $region105: #{_lambda_.1} parent=1 // pred_fallthru
      _
    // Predicated region
    $region106: #{_lambda_.1} parent=1 // pred_check
      _
    $region107: #{_lambda_.1} parent=1 // pred_check_branch
      %159 = sbr.rel (0) target = $region109
    $region108: #{_lambda_.1} parent=1 // pred_region
      %160 = dma.done [#allocation6], 2048
    $region109: #{_lambda_.1} parent=1 // pred_fallthru
      _
    // Predicated region
    $region110: #{_lambda_.1} parent=1 // pred_check
      _
    $region111: #{_lambda_.1} parent=1 // pred_check_branch
      %162 = sbr.rel (0) target = $region113
    $region112: #{_lambda_.1} parent=1 // pred_region
      %163 = dma.done [#allocation6], 2048
    $region113: #{_lambda_.1} parent=1 // pred_fallthru
      _
    // Predicated region
    $region114: #{_lambda_.1} parent=1 // pred_check
      _
    $region115: #{_lambda_.1} parent=1 // pred_check_branch
      %165 = sbr.rel (0) target = $region117
    $region116: #{_lambda_.1} parent=1 // pred_region
      %166 = dma.done [#allocation9], 2048
    $region117: #{_lambda_.1} parent=1 // pred_fallthru
      _
    // Predicated region
    $region118: #{_lambda_.1} parent=1 // pred_check
      _
    $region119: #{_lambda_.1} parent=1 // pred_check_branch
      %168 = sbr.rel (0) target = $region121
    $region120: #{_lambda_.1} parent=1 // pred_region
      %169 = dma.done [#allocation9], 2048
    $region121: #{_lambda_.1} parent=1 // pred_fallthru
      _
    // Predicated region
    $region122: #{_lambda_.1} parent=1 // pred_check
      _
    $region123: #{_lambda_.1} parent=1 // pred_check_branch
      %171 = sbr.rel (0) target = $region125
    $region124: #{_lambda_.1} parent=1 // pred_region
      %172 = dma.done [#allocation12], 8192
    $region125: #{_lambda_.1} parent=1 // pred_fallthru
      _
    // Predicated region
    $region126: #{_lambda_.1} parent=1 // pred_check
      _
    $region127: #{_lambda_.1} parent=1 // pred_check_branch
      %174 = sbr.rel (0) target = $region129
    $region128: #{_lambda_.1} parent=1 // pred_region
      %175 = dma.done [#allocation12], 2048
    $region129: #{_lambda_.1} parent=1 // pred_fallthru
      _
    %v176 = vld [vmem:[%s0] sm:$0xff]
    %v177 = vld [vmem:[%s0 + $0x8] sm:$0xff]
    %v178 = vld [vmem:[%s0 + $0x10] sm:$0xff]
    %v179 = vld [vmem:[%s0 + $0x18] sm:$0xff]
    %v180 = vld [vmem:[%s0 + $0x20] sm:$0xff]
    %v181 = vld [vmem:[%s0 + $0x28] sm:$0xff]
    %v182 = vld [vmem:[%s0 + $0x30] sm:$0xff]
    %v183 = vld [vmem:[%s0 + $0x38] sm:$0xff]
    %v184 = vld [vmem:[%s0 + $0x40] sm:$0xff]
    %v185 = vld [vmem:[%s0 + $0x48] sm:$0xff]
    %v186 = vld [vmem:[%s0 + $0x50] sm:$0xff]
    %v187 = vld [vmem:[%s0 + $0x58] sm:$0xff]
    %v188 = vld [vmem:[%s0 + $0x60] sm:$0xff]
    %v189 = vld [vmem:[%s0 + $0x68] sm:$0xff]
    %v190 = vld [vmem:[%s0 + $0x70] sm:$0xff]
    %v191 = vld [vmem:[%s1] sm:$0xff]
    %v192 = vld [vmem:[%s1 + $0x8] sm:$0x3]
    %v193 = vld [vmem:[%s2] sm:$0x1]
    %v195 = vlaneseq
    %v196 = vshrl.u32 %v195, 7
    %v197 = vsub.s32 0, %v196
    %v198 = vrot.slane %v193, %v197
    %vm200 = vcmask 80896
    %v202 = vsel %vm200, %v176, 0
    %v205 = vsel %vm200, %v177, 0
    %v208 = vsel %vm200, %v178, 0
    %v211 = vsel %vm200, %v179, 0
    %v214 = vsel %vm200, %v180, 0
    %v217 = vsel %vm200, %v181, 0
    %v220 = vsel %vm200, %v182, 0
    %v223 = vsel %vm200, %v183, 0
    %v226 = vsel %vm200, %v184, 0
    %v229 = vsel %vm200, %v185, 0
    %v232 = vsel %vm200, %v186, 0
    %v235 = vsel %vm200, %v187, 0
    %v238 = vsel %vm200, %v188, 0
    %v241 = vsel %vm200, %v189, 0
    %v244 = vsel %vm200, %v190, 0
    %vm246 = vcmask 1041408
    %v248 = vsel %vm246, %v192, 0
    %250 = vmatprep.subr.mxu0 0.0
    %251 = vmatpush1.msra.mxu0 0.0
    %252 = vmatprep.subr.mxu0 0.0
    %253 = vmatpush1.msra.mxu0 0.0
    %254 = vmatprep.subr.mxu0 0.0
    %255 = vmatpush1.msra.mxu0 0.0
    %256 = vmatprep.subr.mxu0 0.0
    %257 = vmatpush1.msra.mxu0 0.0
    %258 = vmatprep.subr.mxu0 0.0
    %259 = vmatpush1.msra.mxu0 0.0
    %260 = vmatprep.subr.mxu0 0.0
    %261 = vmatpush1.msra.mxu0 0.0
    %262 = vmatprep.subr.mxu0 0.0
    %263 = vmatpush1.msra.mxu0 0.0
    %264 = vmatprep.subr.mxu0 0.0
    %265 = vmatpush1.msra.mxu0 0.0
    %266 = vmatprep.subr.mxu0 0.0
    %267 = vmatpush1.msra.mxu0 0.0
    %268 = vmatprep.subr.mxu0 0.0
    %269 = vmatpush1.msra.mxu0 0.0
    %270 = vmatprep.subr.mxu0 0.0
    %271 = vmatpush1.msra.mxu0 0.0
    %272 = vmatprep.subr.mxu0 0.0
    %273 = vmatpush1.msra.mxu0 0.0
    %274 = vmatprep.subr.mxu0 0.0
    %275 = vmatpush1.msra.mxu0 0.0
    %276 = vmatprep.subr.mxu0 0.0
    %277 = vmatpush1.msra.mxu0 0.0
    %278 = vmatprep.subr.mxu0 0.0
    %279 = vmatpush1.msra.mxu0 %v248
    %280 = vmatprep.subr.mxu0 0.0
    %281 = vmatpush1.msra.mxu0 %v191
    %282 = vmatprep.subr.mxu0 0.0
    %283 = vmatpush2.msra.mxu0 0.0
    %284 = vmatprep.subr.mxu0 0.0
    %285 = vmatpush2.msra.mxu0 0.0
    %286 = vmatprep.subr.mxu0 0.0
    %287 = vmatpush2.msra.mxu0 0.0
    %288 = vmatprep.subr.mxu0 0.0
    %289 = vmatpush2.msra.mxu0 0.0
    %290 = vmatprep.subr.mxu0 0.0
    %291 = vmatpush2.msra.mxu0 0.0
    %292 = vmatprep.subr.mxu0 0.0
    %293 = vmatpush2.msra.mxu0 0.0
    %294 = vmatprep.subr.mxu0 0.0
    %295 = vmatpush2.msra.mxu0 0.0
    %296 = vmatprep.subr.mxu0 0.0
    %297 = vmatpush2.msra.mxu0 0.0
    %298 = vmatprep.subr.mxu0 0.0
    %299 = vmatpush2.msra.mxu0 0.0
    %300 = vmatprep.subr.mxu0 0.0
    %301 = vmatpush2.msra.mxu0 0.0
    %302 = vmatprep.subr.mxu0 0.0
    %303 = vmatpush2.msra.mxu0 0.0
    %304 = vmatprep.subr.mxu0 0.0
    %305 = vmatpush2.msra.mxu0 0.0
    %306 = vmatprep.subr.mxu0 0.0
    %307 = vmatpush2.msra.mxu0 0.0
    %308 = vmatprep.subr.mxu0 0.0
    %309 = vmatpush2.msra.mxu0 0.0
    %310 = vmatprep.subr.mxu0 0.0
    %311 = vmatpush2.msra.mxu0 0.0
    %312 = vmatprep.subr.mxu0 0.0
    %313 = vmatpush2.msra.mxu0 0.0
    %314 = vmatprep.mubr.f32.mxu0 0.0
    %315 = vmatmul.mubr.f32.gmra.mxu0 %v202
    %v316 = vpop.f32.mrf.mxu0
    %v317 = vadd.f32 %v198, %v316
    %v318 = vpop.f32.mrf.mxu0
    %319 = vmatprep.mubr.f32.mxu0 0.0
    %320 = vmatmul.mubr.f32.gmra.mxu0 %v205
    %v321 = vpop.f32.mrf.mxu0
    %v322 = vadd.f32 %v198, %v321
    %v323 = vpop.f32.mrf.mxu0
    %324 = vmatprep.mubr.f32.mxu0 0.0
    %325 = vmatmul.mubr.f32.gmra.mxu0 %v208
    %v326 = vpop.f32.mrf.mxu0
    %v327 = vadd.f32 %v198, %v326
    %v328 = vpop.f32.mrf.mxu0
    %329 = vmatprep.mubr.f32.mxu0 0.0
    %330 = vmatmul.mubr.f32.gmra.mxu0 %v211
    %v331 = vpop.f32.mrf.mxu0
    %v332 = vadd.f32 %v198, %v331
    %v333 = vpop.f32.mrf.mxu0
    %334 = vmatprep.mubr.f32.mxu0 0.0
    %335 = vmatmul.mubr.f32.gmra.mxu0 %v214
    %v336 = vpop.f32.mrf.mxu0
    %v337 = vadd.f32 %v198, %v336
    %v338 = vpop.f32.mrf.mxu0
    %339 = vmatprep.mubr.f32.mxu0 0.0
    %340 = vmatmul.mubr.f32.gmra.mxu0 %v217
    %v341 = vpop.f32.mrf.mxu0
    %v342 = vadd.f32 %v198, %v341
    %v343 = vpop.f32.mrf.mxu0
    %344 = vmatprep.mubr.f32.mxu0 0.0
    %345 = vmatmul.mubr.f32.gmra.mxu0 %v220
    %v346 = vpop.f32.mrf.mxu0
    %v347 = vadd.f32 %v198, %v346
    %v348 = vpop.f32.mrf.mxu0
    %349 = vmatprep.mubr.f32.mxu0 0.0
    %350 = vmatmul.mubr.f32.gmra.mxu0 %v223
    %v351 = vpop.f32.mrf.mxu0
    %v352 = vadd.f32 %v198, %v351
    %v353 = vpop.f32.mrf.mxu0
    %354 = vmatprep.mubr.f32.mxu0 0.0
    %355 = vmatmul.mubr.f32.gmra.mxu0 %v226
    %v356 = vpop.f32.mrf.mxu0
    %v357 = vadd.f32 %v198, %v356
    %v358 = vpop.f32.mrf.mxu0
    %359 = vmatprep.mubr.f32.mxu0 0.0
    %360 = vmatmul.mubr.f32.gmra.mxu0 %v229
    %v361 = vpop.f32.mrf.mxu0
    %v362 = vadd.f32 %v198, %v361
    %v363 = vpop.f32.mrf.mxu0
    %364 = vmatprep.mubr.f32.mxu0 0.0
    %365 = vmatmul.mubr.f32.gmra.mxu0 %v232
    %v366 = vpop.f32.mrf.mxu0
    %v367 = vadd.f32 %v198, %v366
    %v368 = vpop.f32.mrf.mxu0
    %369 = vmatprep.mubr.f32.mxu0 0.0
    %370 = vmatmul.mubr.f32.gmra.mxu0 %v235
    %v371 = vpop.f32.mrf.mxu0
    %v372 = vadd.f32 %v198, %v371
    %v373 = vpop.f32.mrf.mxu0
    %374 = vmatprep.mubr.f32.mxu0 0.0
    %375 = vmatmul.mubr.f32.gmra.mxu0 %v238
    %v376 = vpop.f32.mrf.mxu0
    %v377 = vadd.f32 %v198, %v376
    %v378 = vpop.f32.mrf.mxu0
    %379 = vmatprep.mubr.f32.mxu0 0.0
    %380 = vmatmul.mubr.f32.gmra.mxu0 %v241
    %v381 = vpop.f32.mrf.mxu0
    %v382 = vadd.f32 %v198, %v381
    %v383 = vpop.f32.mrf.mxu0
    %384 = vmatprep.mubr.f32.mxu0 0.0
    %385 = vmatmul.mubr.f32.gmra.mxu0 %v244
    %v386 = vpop.f32.mrf.mxu0
    %v387 = vadd.f32 %v198, %v386
    %v388 = vpop.f32.mrf.mxu0
    %389 = vdwg.mxu0
    %v390 = vmax.f32 %v317, 0.0
    %v391 = vmax.f32 %v322, 0.0
    %v392 = vmax.f32 %v327, 0.0
    %v393 = vmax.f32 %v332, 0.0
    %v394 = vmax.f32 %v337, 0.0
    %v395 = vmax.f32 %v342, 0.0
    %v396 = vmax.f32 %v347, 0.0
    %v397 = vmax.f32 %v352, 0.0
    %v398 = vmax.f32 %v357, 0.0
    %v399 = vmax.f32 %v362, 0.0
    %v400 = vmax.f32 %v367, 0.0
    %v401 = vmax.f32 %v372, 0.0
    %v402 = vmax.f32 %v377, 0.0
    %v403 = vmax.f32 %v382, 0.0
    %v404 = vmax.f32 %v387, 0.0
    %v405 = vld [vmem:[#allocation2] sm:$0xff]
    %v406 = vld [vmem:[#allocation2 + $0x8] sm:$0xff]
    %v407 = vld [vmem:[#allocation2 + $0x10] sm:$0xff]
    %v408 = vld [vmem:[#allocation2 + $0x18] sm:$0xff]
    %v409 = vld [vmem:[#allocation2 + $0x20] sm:$0xff]
    %v410 = vld [vmem:[#allocation2 + $0x28] sm:$0xff]
    %v411 = vld [vmem:[#allocation2 + $0x30] sm:$0xff]
    %v412 = vld [vmem:[#allocation2 + $0x38] sm:$0xff]
    %v413 = vld [vmem:[#allocation2 + $0x40] sm:$0xff]
    %v414 = vld [vmem:[#allocation2 + $0x48] sm:$0xff]
    %v415 = vld [vmem:[#allocation2 + $0x50] sm:$0xff]
    %v416 = vld [vmem:[#allocation2 + $0x58] sm:$0xff]
    %v417 = vld [vmem:[#allocation2 + $0x60] sm:$0xff]
    %v418 = vld [vmem:[#allocation2 + $0x68] sm:$0xff]
    %v419 = vld [vmem:[#allocation2 + $0x70] sm:$0xff]
    %v420 = vld [vmem:[#allocation2 + $0x78] sm:$0xff]
    %vm421 = vcmask 523264
    %v423 = vsel %vm421, %v393, 0
    %v426 = vsel %vm421, %v394, 0
    %v429 = vsel %vm421, %v395, 0
    %431 = vmatprep.subr.mxu0 0.0
    %432 = vmatpush1.msra.mxu0 0.0
    %433 = vmatprep.subr.mxu0 0.0
    %434 = vmatpush1.msra.mxu0 0.0
    %435 = vmatprep.subr.mxu0 0.0
    %436 = vmatpush1.msra.mxu0 0.0
    %437 = vmatprep.subr.mxu0 0.0
    %438 = vmatpush1.msra.mxu0 0.0
    %439 = vmatprep.subr.mxu0 0.0
    %440 = vmatpush1.msra.mxu0 0.0
    %441 = vmatprep.subr.mxu0 0.0
    %442 = vmatpush1.msra.mxu0 0.0
    %443 = vmatprep.subr.mxu0 0.0
    %444 = vmatpush1.msra.mxu0 0.0
    %445 = vmatprep.subr.mxu0 0.0
    %446 = vmatpush1.msra.mxu0 0.0
    %447 = vmatprep.subr.mxu0 0.0
    %448 = vmatpush1.msra.mxu0 %v420
    %449 = vmatprep.subr.mxu0 0.0
    %450 = vmatpush1.msra.mxu0 %v419
    %451 = vmatprep.subr.mxu0 0.0
    %452 = vmatpush1.msra.mxu0 %v418
    %453 = vmatprep.subr.mxu0 0.0
    %454 = vmatpush1.msra.mxu0 %v417
    %455 = vmatprep.subr.mxu0 0.0
    %456 = vmatpush1.msra.mxu0 %v416
    %457 = vmatprep.subr.mxu0 0.0
    %458 = vmatpush1.msra.mxu0 %v415
    %459 = vmatprep.subr.mxu0 0.0
    %460 = vmatpush1.msra.mxu0 %v414
    %461 = vmatprep.subr.mxu0 0.0
    %462 = vmatpush1.msra.mxu0 %v413
    %463 = vmatprep.subr.mxu0 0.0
    %464 = vmatpush2.msra.mxu0 0.0
    %465 = vmatprep.subr.mxu0 0.0
    %466 = vmatpush2.msra.mxu0 0.0
    %467 = vmatprep.subr.mxu0 0.0
    %468 = vmatpush2.msra.mxu0 0.0
    %469 = vmatprep.subr.mxu0 0.0
    %470 = vmatpush2.msra.mxu0 0.0
    %471 = vmatprep.subr.mxu0 0.0
    %472 = vmatpush2.msra.mxu0 0.0
    %473 = vmatprep.subr.mxu0 0.0
    %474 = vmatpush2.msra.mxu0 0.0
    %475 = vmatprep.subr.mxu0 0.0
    %476 = vmatpush2.msra.mxu0 0.0
    %477 = vmatprep.subr.mxu0 0.0
    %478 = vmatpush2.msra.mxu0 0.0
    %479 = vmatprep.subr.mxu0 0.0
    %480 = vmatpush2.msra.mxu0 0.0
    %481 = vmatprep.subr.mxu0 0.0
    %482 = vmatpush2.msra.mxu0 0.0
    %483 = vmatprep.subr.mxu0 0.0
    %484 = vmatpush2.msra.mxu0 0.0
    %485 = vmatprep.subr.mxu0 0.0
    %486 = vmatpush2.msra.mxu0 0.0
    %487 = vmatprep.subr.mxu0 0.0
    %488 = vmatpush2.msra.mxu0 0.0
    %489 = vmatprep.subr.mxu0 0.0
    %490 = vmatpush2.msra.mxu0 0.0
    %491 = vmatprep.subr.mxu0 0.0
    %492 = vmatpush2.msra.mxu0 0.0
    %493 = vmatprep.subr.mxu0 0.0
    %494 = vmatpush2.msra.mxu0 0.0
    %495 = vmatprep.mubr.f32.mxu0 0.0
    %496 = vmatmul.mubr.f32.gmra.mxu0 %v423
    %v497 = vpop.f32.mrf.mxu0
    %v498 = vadd.f32 0.0, %v497
    %v499 = vpop.f32.mrf.mxu0
    %500 = vmatprep.mubr.f32.mxu0 0.0
    %501 = vmatmul.mubr.f32.gmra.mxu0 %v426
    %v502 = vpop.f32.mrf.mxu0
    %v503 = vadd.f32 0.0, %v502
    %v504 = vpop.f32.mrf.mxu0
    %505 = vmatprep.mubr.f32.mxu0 0.0
    %506 = vmatmul.mubr.f32.gmra.mxu0 %v429
    %v507 = vpop.f32.mrf.mxu0
    %v508 = vadd.f32 0.0, %v507
    %v509 = vpop.f32.mrf.mxu0
    %510 = vdwg.mxu0
    %v512 = vsel %vm421, %v390, 0
    %v515 = vsel %vm421, %v391, 0
    %v518 = vsel %vm421, %v392, 0
    %520 = vmatprep.subr.mxu0 0.0
    %521 = vmatpush1.msra.mxu0 0.0
    %522 = vmatprep.subr.mxu0 0.0
    %523 = vmatpush1.msra.mxu0 0.0
    %524 = vmatprep.subr.mxu0 0.0
    %525 = vmatpush1.msra.mxu0 0.0
    %526 = vmatprep.subr.mxu0 0.0
    %527 = vmatpush1.msra.mxu0 0.0
    %528 = vmatprep.subr.mxu0 0.0
    %529 = vmatpush1.msra.mxu0 0.0
    %530 = vmatprep.subr.mxu0 0.0
    %531 = vmatpush1.msra.mxu0 0.0
    %532 = vmatprep.subr.mxu0 0.0
    %533 = vmatpush1.msra.mxu0 0.0
    %534 = vmatprep.subr.mxu0 0.0
    %535 = vmatpush1.msra.mxu0 0.0
    %536 = vmatprep.subr.mxu0 0.0
    %537 = vmatpush1.msra.mxu0 %v412
    %538 = vmatprep.subr.mxu0 0.0
    %539 = vmatpush1.msra.mxu0 %v411
    %540 = vmatprep.subr.mxu0 0.0
    %541 = vmatpush1.msra.mxu0 %v410
    %542 = vmatprep.subr.mxu0 0.0
    %543 = vmatpush1.msra.mxu0 %v409
    %544 = vmatprep.subr.mxu0 0.0
    %545 = vmatpush1.msra.mxu0 %v408
    %546 = vmatprep.subr.mxu0 0.0
    %547 = vmatpush1.msra.mxu0 %v407
    %548 = vmatprep.subr.mxu0 0.0
    %549 = vmatpush1.msra.mxu0 %v406
    %550 = vmatprep.subr.mxu0 0.0
    %551 = vmatpush1.msra.mxu0 %v405
    %552 = vmatprep.subr.mxu0 0.0
    %553 = vmatpush2.msra.mxu0 0.0
    %554 = vmatprep.subr.mxu0 0.0
    %555 = vmatpush2.msra.mxu0 0.0
    %556 = vmatprep.subr.mxu0 0.0
    %557 = vmatpush2.msra.mxu0 0.0
    %558 = vmatprep.subr.mxu0 0.0
    %559 = vmatpush2.msra.mxu0 0.0
    %560 = vmatprep.subr.mxu0 0.0
    %561 = vmatpush2.msra.mxu0 0.0
    %562 = vmatprep.subr.mxu0 0.0
    %563 = vmatpush2.msra.mxu0 0.0
    %564 = vmatprep.subr.mxu0 0.0
    %565 = vmatpush2.msra.mxu0 0.0
    %566 = vmatprep.subr.mxu0 0.0
    %567 = vmatpush2.msra.mxu0 0.0
    %568 = vmatprep.subr.mxu0 0.0
    %569 = vmatpush2.msra.mxu0 0.0
    %570 = vmatprep.subr.mxu0 0.0
    %571 = vmatpush2.msra.mxu0 0.0
    %572 = vmatprep.subr.mxu0 0.0
    %573 = vmatpush2.msra.mxu0 0.0
    %574 = vmatprep.subr.mxu0 0.0
    %575 = vmatpush2.msra.mxu0 0.0
    %576 = vmatprep.subr.mxu0 0.0
    %577 = vmatpush2.msra.mxu0 0.0
    %578 = vmatprep.subr.mxu0 0.0
    %579 = vmatpush2.msra.mxu0 0.0
    %580 = vmatprep.subr.mxu0 0.0
    %581 = vmatpush2.msra.mxu0 0.0
    %582 = vmatprep.subr.mxu0 0.0
    %583 = vmatpush2.msra.mxu0 0.0
    %584 = vmatprep.mubr.f32.mxu0 0.0
    %585 = vmatmul.mubr.f32.gmra.mxu0 %v512
    %v586 = vpop.f32.mrf.mxu0
    %v587 = vadd.f32 %v498, %v586
    %v588 = vpop.f32.mrf.mxu0
    %589 = vmatprep.mubr.f32.mxu0 0.0
    %590 = vmatmul.mubr.f32.gmra.mxu0 %v515
    %v591 = vpop.f32.mrf.mxu0
    %v592 = vadd.f32 %v503, %v591
    %v593 = vpop.f32.mrf.mxu0
    %594 = vmatprep.mubr.f32.mxu0 0.0
    %595 = vmatmul.mubr.f32.gmra.mxu0 %v518
    %v596 = vpop.f32.mrf.mxu0
    %v597 = vadd.f32 %v508, %v596
    %v598 = vpop.f32.mrf.mxu0
    %599 = vdwg.mxu0
    %v600 = vld [vmem:[#allocation2 + $0x80] sm:$0xff]
    %v601 = vld [vmem:[#allocation2 + $0x88] sm:$0xff]
    %v602 = vld [vmem:[#allocation2 + $0x90] sm:$0xff]
    %v603 = vld [vmem:[#allocation2 + $0x98] sm:$0xff]
    %v604 = vld [vmem:[#allocation2 + $0xa0] sm:$0xff]
    %v605 = vld [vmem:[#allocation2 + $0xa8] sm:$0xff]
    %v606 = vld [vmem:[#allocation2 + $0xb0] sm:$0xff]
    %v607 = vld [vmem:[#allocation2 + $0xb8] sm:$0xff]
    %v609 = vsel %vm421, %v396, 0
    %v612 = vsel %vm421, %v397, 0
    %v615 = vsel %vm421, %v398, 0
    %617 = vmatprep.subr.mxu0 0.0
    %618 = vmatpush1.msra.mxu0 0.0
    %619 = vmatprep.subr.mxu0 0.0
    %620 = vmatpush1.msra.mxu0 0.0
    %621 = vmatprep.subr.mxu0 0.0
    %622 = vmatpush1.msra.mxu0 0.0
    %623 = vmatprep.subr.mxu0 0.0
    %624 = vmatpush1.msra.mxu0 0.0
    %625 = vmatprep.subr.mxu0 0.0
    %626 = vmatpush1.msra.mxu0 0.0
    %627 = vmatprep.subr.mxu0 0.0
    %628 = vmatpush1.msra.mxu0 0.0
    %629 = vmatprep.subr.mxu0 0.0
    %630 = vmatpush1.msra.mxu0 0.0
    %631 = vmatprep.subr.mxu0 0.0
    %632 = vmatpush1.msra.mxu0 0.0
    %633 = vmatprep.subr.mxu0 0.0
    %634 = vmatpush1.msra.mxu0 %v607
    %635 = vmatprep.subr.mxu0 0.0
    %636 = vmatpush1.msra.mxu0 %v606
    %637 = vmatprep.subr.mxu0 0.0
    %638 = vmatpush1.msra.mxu0 %v605
    %639 = vmatprep.subr.mxu0 0.0
    %640 = vmatpush1.msra.mxu0 %v604
    %641 = vmatprep.subr.mxu0 0.0
    %642 = vmatpush1.msra.mxu0 %v603
    %643 = vmatprep.subr.mxu0 0.0
    %644 = vmatpush1.msra.mxu0 %v602
    %645 = vmatprep.subr.mxu0 0.0
    %646 = vmatpush1.msra.mxu0 %v601
    %647 = vmatprep.subr.mxu0 0.0
    %648 = vmatpush1.msra.mxu0 %v600
    %649 = vmatprep.subr.mxu0 0.0
    %650 = vmatpush2.msra.mxu0 0.0
    %651 = vmatprep.subr.mxu0 0.0
    %652 = vmatpush2.msra.mxu0 0.0
    %653 = vmatprep.subr.mxu0 0.0
    %654 = vmatpush2.msra.mxu0 0.0
    %655 = vmatprep.subr.mxu0 0.0
    %656 = vmatpush2.msra.mxu0 0.0
    %657 = vmatprep.subr.mxu0 0.0
    %658 = vmatpush2.msra.mxu0 0.0
    %659 = vmatprep.subr.mxu0 0.0
    %660 = vmatpush2.msra.mxu0 0.0
    %661 = vmatprep.subr.mxu0 0.0
    %662 = vmatpush2.msra.mxu0 0.0
    %663 = vmatprep.subr.mxu0 0.0
    %664 = vmatpush2.msra.mxu0 0.0
    %665 = vmatprep.subr.mxu0 0.0
    %666 = vmatpush2.msra.mxu0 0.0
    %667 = vmatprep.subr.mxu0 0.0
    %668 = vmatpush2.msra.mxu0 0.0
    %669 = vmatprep.subr.mxu0 0.0
    %670 = vmatpush2.msra.mxu0 0.0
    %671 = vmatprep.subr.mxu0 0.0
    %672 = vmatpush2.msra.mxu0 0.0
    %673 = vmatprep.subr.mxu0 0.0
    %674 = vmatpush2.msra.mxu0 0.0
    %675 = vmatprep.subr.mxu0 0.0
    %676 = vmatpush2.msra.mxu0 0.0
    %677 = vmatprep.subr.mxu0 0.0
    %678 = vmatpush2.msra.mxu0 0.0
    %679 = vmatprep.subr.mxu0 0.0
    %680 = vmatpush2.msra.mxu0 0.0
    %681 = vmatprep.mubr.f32.mxu0 0.0
    %682 = vmatmul.mubr.f32.gmra.mxu0 %v609
    %v683 = vpop.f32.mrf.mxu0
    %v684 = vadd.f32 0.0, %v683
    %v685 = vpop.f32.mrf.mxu0
    %686 = vmatprep.mubr.f32.mxu0 0.0
    %687 = vmatmul.mubr.f32.gmra.mxu0 %v612
    %v688 = vpop.f32.mrf.mxu0
    %v689 = vadd.f32 0.0, %v688
    %v690 = vpop.f32.mrf.mxu0
    %691 = vmatprep.mubr.f32.mxu0 0.0
    %692 = vmatmul.mubr.f32.gmra.mxu0 %v615
    %v693 = vpop.f32.mrf.mxu0
    %v694 = vadd.f32 0.0, %v693
    %v695 = vpop.f32.mrf.mxu0
    %696 = vdwg.mxu0
    %v697 = vadd.f32 %v587, %v684
    %v698 = vadd.f32 %v592, %v689
    %v699 = vadd.f32 %v597, %v694
    %v700 = vld [vmem:[#allocation2 + $0xc0] sm:$0xff]
    %v701 = vld [vmem:[#allocation2 + $0xc8] sm:$0xff]
    %v702 = vld [vmem:[#allocation2 + $0xd0] sm:$0xff]
    %v703 = vld [vmem:[#allocation2 + $0xd8] sm:$0xff]
    %v704 = vld [vmem:[#allocation2 + $0xe0] sm:$0xff]
    %v705 = vld [vmem:[#allocation2 + $0xe8] sm:$0xff]
    %v706 = vld [vmem:[#allocation2 + $0xf0] sm:$0xff]
    %v707 = vld [vmem:[#allocation2 + $0xf8] sm:$0xff]
    %v709 = vsel %vm421, %v399, 0
    %v712 = vsel %vm421, %v400, 0
    %v715 = vsel %vm421, %v401, 0
    %717 = vmatprep.subr.mxu0 0.0
    %718 = vmatpush1.msra.mxu0 0.0
    %719 = vmatprep.subr.mxu0 0.0
    %720 = vmatpush1.msra.mxu0 0.0
    %721 = vmatprep.subr.mxu0 0.0
    %722 = vmatpush1.msra.mxu0 0.0
    %723 = vmatprep.subr.mxu0 0.0
    %724 = vmatpush1.msra.mxu0 0.0
    %725 = vmatprep.subr.mxu0 0.0
    %726 = vmatpush1.msra.mxu0 0.0
    %727 = vmatprep.subr.mxu0 0.0
    %728 = vmatpush1.msra.mxu0 0.0
    %729 = vmatprep.subr.mxu0 0.0
    %730 = vmatpush1.msra.mxu0 0.0
    %731 = vmatprep.subr.mxu0 0.0
    %732 = vmatpush1.msra.mxu0 0.0
    %733 = vmatprep.subr.mxu0 0.0
    %734 = vmatpush1.msra.mxu0 %v707
    %735 = vmatprep.subr.mxu0 0.0
    %736 = vmatpush1.msra.mxu0 %v706
    %737 = vmatprep.subr.mxu0 0.0
    %738 = vmatpush1.msra.mxu0 %v705
    %739 = vmatprep.subr.mxu0 0.0
    %740 = vmatpush1.msra.mxu0 %v704
    %741 = vmatprep.subr.mxu0 0.0
    %742 = vmatpush1.msra.mxu0 %v703
    %743 = vmatprep.subr.mxu0 0.0
    %744 = vmatpush1.msra.mxu0 %v702
    %745 = vmatprep.subr.mxu0 0.0
    %746 = vmatpush1.msra.mxu0 %v701
    %747 = vmatprep.subr.mxu0 0.0
    %748 = vmatpush1.msra.mxu0 %v700
    %749 = vmatprep.subr.mxu0 0.0
    %750 = vmatpush2.msra.mxu0 0.0
    %751 = vmatprep.subr.mxu0 0.0
    %752 = vmatpush2.msra.mxu0 0.0
    %753 = vmatprep.subr.mxu0 0.0
    %754 = vmatpush2.msra.mxu0 0.0
    %755 = vmatprep.subr.mxu0 0.0
    %756 = vmatpush2.msra.mxu0 0.0
    %757 = vmatprep.subr.mxu0 0.0
    %758 = vmatpush2.msra.mxu0 0.0
    %759 = vmatprep.subr.mxu0 0.0
    %760 = vmatpush2.msra.mxu0 0.0
    %761 = vmatprep.subr.mxu0 0.0
    %762 = vmatpush2.msra.mxu0 0.0
    %763 = vmatprep.subr.mxu0 0.0
    %764 = vmatpush2.msra.mxu0 0.0
    %765 = vmatprep.subr.mxu0 0.0
    %766 = vmatpush2.msra.mxu0 0.0
    %767 = vmatprep.subr.mxu0 0.0
    %768 = vmatpush2.msra.mxu0 0.0
    %769 = vmatprep.subr.mxu0 0.0
    %770 = vmatpush2.msra.mxu0 0.0
    %771 = vmatprep.subr.mxu0 0.0
    %772 = vmatpush2.msra.mxu0 0.0
    %773 = vmatprep.subr.mxu0 0.0
    %774 = vmatpush2.msra.mxu0 0.0
    %775 = vmatprep.subr.mxu0 0.0
    %776 = vmatpush2.msra.mxu0 0.0
    %777 = vmatprep.subr.mxu0 0.0
    %778 = vmatpush2.msra.mxu0 0.0
    %779 = vmatprep.subr.mxu0 0.0
    %780 = vmatpush2.msra.mxu0 0.0
    %781 = vmatprep.mubr.f32.mxu0 0.0
    %782 = vmatmul.mubr.f32.gmra.mxu0 %v709
    %v783 = vpop.f32.mrf.mxu0
    %v784 = vadd.f32 0.0, %v783
    %v785 = vpop.f32.mrf.mxu0
    %786 = vmatprep.mubr.f32.mxu0 0.0
    %787 = vmatmul.mubr.f32.gmra.mxu0 %v712
    %v788 = vpop.f32.mrf.mxu0
    %v789 = vadd.f32 0.0, %v788
    %v790 = vpop.f32.mrf.mxu0
    %791 = vmatprep.mubr.f32.mxu0 0.0
    %792 = vmatmul.mubr.f32.gmra.mxu0 %v715
    %v793 = vpop.f32.mrf.mxu0
    %v794 = vadd.f32 0.0, %v793
    %v795 = vpop.f32.mrf.mxu0
    %796 = vdwg.mxu0
    %v797 = vadd.f32 %v697, %v784
    %v798 = vadd.f32 %v698, %v789
    %v799 = vadd.f32 %v699, %v794
    %v800 = vld [vmem:[#allocation2 + $0x100] sm:$0xff]
    %v801 = vld [vmem:[#allocation2 + $0x108] sm:$0xff]
    %v802 = vld [vmem:[#allocation2 + $0x110] sm:$0xff]
    %v803 = vld [vmem:[#allocation2 + $0x118] sm:$0xff]
    %v804 = vld [vmem:[#allocation2 + $0x120] sm:$0xff]
    %v805 = vld [vmem:[#allocation2 + $0x128] sm:$0xff]
    %v806 = vld [vmem:[#allocation2 + $0x130] sm:$0xff]
    %v807 = vld [vmem:[#allocation2 + $0x138] sm:$0xff]
    %v809 = vsel %vm421, %v402, 0
    %v812 = vsel %vm421, %v403, 0
    %v815 = vsel %vm421, %v404, 0
    %817 = vmatprep.subr.mxu0 0.0
    %818 = vmatpush1.msra.mxu0 0.0
    %819 = vmatprep.subr.mxu0 0.0
    %820 = vmatpush1.msra.mxu0 0.0
    %821 = vmatprep.subr.mxu0 0.0
    %822 = vmatpush1.msra.mxu0 0.0
    %823 = vmatprep.subr.mxu0 0.0
    %824 = vmatpush1.msra.mxu0 0.0
    %825 = vmatprep.subr.mxu0 0.0
    %826 = vmatpush1.msra.mxu0 0.0
    %827 = vmatprep.subr.mxu0 0.0
    %828 = vmatpush1.msra.mxu0 0.0
    %829 = vmatprep.subr.mxu0 0.0
    %830 = vmatpush1.msra.mxu0 0.0
    %831 = vmatprep.subr.mxu0 0.0
    %832 = vmatpush1.msra.mxu0 0.0
    %833 = vmatprep.subr.mxu0 0.0
    %834 = vmatpush1.msra.mxu0 %v807
    %835 = vmatprep.subr.mxu0 0.0
    %836 = vmatpush1.msra.mxu0 %v806
    %837 = vmatprep.subr.mxu0 0.0
    %838 = vmatpush1.msra.mxu0 %v805
    %839 = vmatprep.subr.mxu0 0.0
    %840 = vmatpush1.msra.mxu0 %v804
    %841 = vmatprep.subr.mxu0 0.0
    %842 = vmatpush1.msra.mxu0 %v803
    %843 = vmatprep.subr.mxu0 0.0
    %844 = vmatpush1.msra.mxu0 %v802
    %845 = vmatprep.subr.mxu0 0.0
    %846 = vmatpush1.msra.mxu0 %v801
    %847 = vmatprep.subr.mxu0 0.0
    %848 = vmatpush1.msra.mxu0 %v800
    %849 = vmatprep.subr.mxu0 0.0
    %850 = vmatpush2.msra.mxu0 0.0
    %851 = vmatprep.subr.mxu0 0.0
    %852 = vmatpush2.msra.mxu0 0.0
    %853 = vmatprep.subr.mxu0 0.0
    %854 = vmatpush2.msra.mxu0 0.0
    %855 = vmatprep.subr.mxu0 0.0
    %856 = vmatpush2.msra.mxu0 0.0
    %857 = vmatprep.subr.mxu0 0.0
    %858 = vmatpush2.msra.mxu0 0.0
    %859 = vmatprep.subr.mxu0 0.0
    %860 = vmatpush2.msra.mxu0 0.0
    %861 = vmatprep.subr.mxu0 0.0
    %862 = vmatpush2.msra.mxu0 0.0
    %863 = vmatprep.subr.mxu0 0.0
    %864 = vmatpush2.msra.mxu0 0.0
    %865 = vmatprep.subr.mxu0 0.0
    %866 = vmatpush2.msra.mxu0 0.0
    %867 = vmatprep.subr.mxu0 0.0
    %868 = vmatpush2.msra.mxu0 0.0
    %869 = vmatprep.subr.mxu0 0.0
    %870 = vmatpush2.msra.mxu0 0.0
    %871 = vmatprep.subr.mxu0 0.0
    %872 = vmatpush2.msra.mxu0 0.0
    %873 = vmatprep.subr.mxu0 0.0
    %874 = vmatpush2.msra.mxu0 0.0
    %875 = vmatprep.subr.mxu0 0.0
    %876 = vmatpush2.msra.mxu0 0.0
    %877 = vmatprep.subr.mxu0 0.0
    %878 = vmatpush2.msra.mxu0 0.0
    %879 = vmatprep.subr.mxu0 0.0
    %880 = vmatpush2.msra.mxu0 0.0
    %881 = vmatprep.mubr.f32.mxu0 0.0
    %882 = vmatmul.mubr.f32.gmra.mxu0 %v809
    %v883 = vpop.f32.mrf.mxu0
    %v884 = vadd.f32 0.0, %v883
    %v885 = vpop.f32.mrf.mxu0
    %886 = vmatprep.mubr.f32.mxu0 0.0
    %887 = vmatmul.mubr.f32.gmra.mxu0 %v812
    %v888 = vpop.f32.mrf.mxu0
    %v889 = vadd.f32 0.0, %v888
    %v890 = vpop.f32.mrf.mxu0
    %891 = vmatprep.mubr.f32.mxu0 0.0
    %892 = vmatmul.mubr.f32.gmra.mxu0 %v815
    %v893 = vpop.f32.mrf.mxu0
    %v894 = vadd.f32 0.0, %v893
    %v895 = vpop.f32.mrf.mxu0
    %896 = vdwg.mxu0
    %v897 = vadd.f32 %v797, %v884
    %v898 = vadd.f32 %v798, %v889
    %v899 = vadd.f32 %v799, %v894
    %v900 = vld [vmem:[%s4] sm:$0x1]
    %v902 = vlaneseq
    %v903 = vshrl.u32 %v902, 7
    %v904 = vsub.s32 0, %v903
    %v905 = vrot.slane %v900, %v904
    %v907 = vadd.f32 %v897, %v905
    %v908 = vadd.f32 %v898, %v905
    %v909 = vadd.f32 %v899, %v905
    %v910 = vmax.f32 %v907, 0.0
    %v911 = vmax.f32 %v908, 0.0
    %v912 = vmax.f32 %v909, 0.0
    %v913 = vadd.f32 %v910, %v911
    %v914 = vadd.f32 %v913, %v912
    %v915 = vmul.f32 %v914, 0.33333334
    %v916 = vld [vmem:[%s17] sm:$0x1]
    %v917 = vld [vmem:[%s18] sm:$0x1]
    %918 = vadd.xlane.f32.xlu0 %v915
    %v919 = vpop.xlane.xlu0 %918
    %v920 = vrcp.pop 128.0
    %v921 = vmul.f32 %v919, %v920
    %v922 = vsub.f32 %v915, %v921
    %v923 = vmul.f32 %v922, %v922
    %924 = vadd.xlane.f32.xlu0 %v923
    %v925 = vpop.xlane.xlu0 %924
    %v926 = vrcp.pop 127.0
    %v927 = vmul.f32 %v925, %v926
    %v928 = vrsqrt.pop %v927
    %v929 = vmul.f32 %v927, %v928
    %vm930 = vcmp.eq.f32.partialorder %v927, inf
    %v931 = vsel %vm930, %v927, %v929
    %vm932 = vcmp.eq.f32.partialorder %v927, 0.0
    %v933 = vand.u32 %v927, 2147483648
    %v934 = vsel %vm932, %v933, %v931
    %v936 = vlaneseq
    %v937 = vshrl.u32 %v936, 7
    %v938 = vsub.s32 0, %v937
    %v939 = vrot.slane %v916, %v938
    %v941 = vmul.f32 %v939, %v922
    %v942 = vadd.f32 %v934, 1e-06
    %v943 = vrcp.pop %v942
    %v944 = vmul.f32 %v941, %v943
    %v946 = vlaneseq
    %v947 = vshrl.u32 %v946, 7
    %v948 = vsub.s32 0, %v947
    %v949 = vrot.slane %v917, %v948
    %v951 = vadd.f32 %v944, %v949
    %v952 = vld [vmem:[#allocation5] sm:$0xff]
    %v953 = vld [vmem:[#allocation5 + $0x8] sm:$0xff]
    %v954 = vld [vmem:[#allocation5 + $0x10] sm:$0xff]
    %v955 = vld [vmem:[#allocation5 + $0x18] sm:$0xff]
    %v956 = vld [vmem:[#allocation5 + $0x20] sm:$0xff]
    %v957 = vld [vmem:[#allocation5 + $0x28] sm:$0xff]
    %v958 = vld [vmem:[#allocation5 + $0x30] sm:$0xff]
    %v959 = vld [vmem:[#allocation5 + $0x38] sm:$0xff]
    %v960 = vld [vmem:[#allocation5 + $0x40] sm:$0xff]
    %v961 = vld [vmem:[#allocation5 + $0x48] sm:$0xff]
    %v962 = vld [vmem:[#allocation5 + $0x50] sm:$0xff]
    %v963 = vld [vmem:[#allocation5 + $0x58] sm:$0xff]
    %v964 = vld [vmem:[#allocation5 + $0x60] sm:$0xff]
    %v965 = vld [vmem:[#allocation5 + $0x68] sm:$0xff]
    %v966 = vld [vmem:[#allocation5 + $0x70] sm:$0xff]
    %v967 = vld [vmem:[#allocation5 + $0x78] sm:$0xff]
    %v968 = vld [vmem:[%s6] sm:$0x1]
    %v970 = vlaneseq
    %v971 = vshrl.u32 %v970, 7
    %v972 = vsub.s32 0, %v971
    %v973 = vrot.slane %v968, %v972
    %975 = vmatprep.subr.mxu0 0.0
    %976 = vmatpush1.msra.mxu0 %v967
    %977 = vmatprep.subr.mxu0 0.0
    %978 = vmatpush1.msra.mxu0 %v966
    %979 = vmatprep.subr.mxu0 0.0
    %980 = vmatpush1.msra.mxu0 %v965
    %981 = vmatprep.subr.mxu0 0.0
    %982 = vmatpush1.msra.mxu0 %v964
    %983 = vmatprep.subr.mxu0 0.0
    %984 = vmatpush1.msra.mxu0 %v963
    %985 = vmatprep.subr.mxu0 0.0
    %986 = vmatpush1.msra.mxu0 %v962
    %987 = vmatprep.subr.mxu0 0.0
    %988 = vmatpush1.msra.mxu0 %v961
    %989 = vmatprep.subr.mxu0 0.0
    %990 = vmatpush1.msra.mxu0 %v960
    %991 = vmatprep.subr.mxu0 0.0
    %992 = vmatpush1.msra.mxu0 %v959
    %993 = vmatprep.subr.mxu0 0.0
    %994 = vmatpush1.msra.mxu0 %v958
    %995 = vmatprep.subr.mxu0 0.0
    %996 = vmatpush1.msra.mxu0 %v957
    %997 = vmatprep.subr.mxu0 0.0
    %998 = vmatpush1.msra.mxu0 %v956
    %999 = vmatprep.subr.mxu0 0.0
    %1000 = vmatpush1.msra.mxu0 %v955
    %1001 = vmatprep.subr.mxu0 0.0
    %1002 = vmatpush1.msra.mxu0 %v954
    %1003 = vmatprep.subr.mxu0 0.0
    %1004 = vmatpush1.msra.mxu0 %v953
    %1005 = vmatprep.subr.mxu0 0.0
    %1006 = vmatpush1.msra.mxu0 %v952
    %1007 = vmatprep.subr.mxu0 0.0
    %1008 = vmatpush2.msra.mxu0 0.0
    %1009 = vmatprep.subr.mxu0 0.0
    %1010 = vmatpush2.msra.mxu0 0.0
    %1011 = vmatprep.subr.mxu0 0.0
    %1012 = vmatpush2.msra.mxu0 0.0
    %1013 = vmatprep.subr.mxu0 0.0
    %1014 = vmatpush2.msra.mxu0 0.0
    %1015 = vmatprep.subr.mxu0 0.0
    %1016 = vmatpush2.msra.mxu0 0.0
    %1017 = vmatprep.subr.mxu0 0.0
    %1018 = vmatpush2.msra.mxu0 0.0
    %1019 = vmatprep.subr.mxu0 0.0
    %1020 = vmatpush2.msra.mxu0 0.0
    %1021 = vmatprep.subr.mxu0 0.0
    %1022 = vmatpush2.msra.mxu0 0.0
    %1023 = vmatprep.subr.mxu0 0.0
    %1024 = vmatpush2.msra.mxu0 0.0
    %1025 = vmatprep.subr.mxu0 0.0
    %1026 = vmatpush2.msra.mxu0 0.0
    %1027 = vmatprep.subr.mxu0 0.0
    %1028 = vmatpush2.msra.mxu0 0.0
    %1029 = vmatprep.subr.mxu0 0.0
    %1030 = vmatpush2.msra.mxu0 0.0
    %1031 = vmatprep.subr.mxu0 0.0
    %1032 = vmatpush2.msra.mxu0 0.0
    %1033 = vmatprep.subr.mxu0 0.0
    %1034 = vmatpush2.msra.mxu0 0.0
    %1035 = vmatprep.subr.mxu0 0.0
    %1036 = vmatpush2.msra.mxu0 0.0
    %1037 = vmatprep.subr.mxu0 0.0
    %1038 = vmatpush2.msra.mxu0 0.0
    %1039 = vmatprep.mubr.f32.mxu0 0.0
    %1040 = vmatmul.mubr.f32.gmra.mxu0 %v951
    %v1041 = vpop.f32.mrf.mxu0
    %v1042 = vadd.f32 %v973, %v1041
    %v1043 = vpop.f32.mrf.mxu0
    %1044 = vdwg.mxu0
    %v1045 = vld [vmem:[#allocation7] sm:$0xff]
    %v1046 = vld [vmem:[#allocation7 + $0x8] sm:$0xff]
    %v1047 = vld [vmem:[#allocation7 + $0x10] sm:$0xff]
    %v1048 = vld [vmem:[#allocation7 + $0x18] sm:$0xff]
    %v1049 = vld [vmem:[#allocation7 + $0x20] sm:$0xff]
    %v1050 = vld [vmem:[#allocation7 + $0x28] sm:$0xff]
    %v1051 = vld [vmem:[#allocation7 + $0x30] sm:$0xff]
    %v1052 = vld [vmem:[#allocation7 + $0x38] sm:$0xff]
    %v1053 = vld [vmem:[#allocation7 + $0x40] sm:$0xff]
    %v1054 = vld [vmem:[#allocation7 + $0x48] sm:$0xff]
    %v1055 = vld [vmem:[#allocation7 + $0x50] sm:$0xff]
    %v1056 = vld [vmem:[#allocation7 + $0x58] sm:$0xff]
    %v1057 = vld [vmem:[#allocation7 + $0x60] sm:$0xff]
    %v1058 = vld [vmem:[#allocation7 + $0x68] sm:$0xff]
    %v1059 = vld [vmem:[#allocation7 + $0x70] sm:$0xff]
    %v1060 = vld [vmem:[#allocation7 + $0x78] sm:$0xff]
    %v1061 = vld [vmem:[%s8] sm:$0x1]
    %v1063 = vlaneseq
    %v1064 = vshrl.u32 %v1063, 7
    %v1065 = vsub.s32 0, %v1064
    %v1066 = vrot.slane %v1061, %v1065
    %1068 = vmatprep.subr.mxu0 0.0
    %1069 = vmatpush1.msra.mxu0 %v1060
    %1070 = vmatprep.subr.mxu0 0.0
    %1071 = vmatpush1.msra.mxu0 %v1059
    %1072 = vmatprep.subr.mxu0 0.0
    %1073 = vmatpush1.msra.mxu0 %v1058
    %1074 = vmatprep.subr.mxu0 0.0
    %1075 = vmatpush1.msra.mxu0 %v1057
    %1076 = vmatprep.subr.mxu0 0.0
    %1077 = vmatpush1.msra.mxu0 %v1056
    %1078 = vmatprep.subr.mxu0 0.0
    %1079 = vmatpush1.msra.mxu0 %v1055
    %1080 = vmatprep.subr.mxu0 0.0
    %1081 = vmatpush1.msra.mxu0 %v1054
    %1082 = vmatprep.subr.mxu0 0.0
    %1083 = vmatpush1.msra.mxu0 %v1053
    %1084 = vmatprep.subr.mxu0 0.0
    %1085 = vmatpush1.msra.mxu0 %v1052
    %1086 = vmatprep.subr.mxu0 0.0
    %1087 = vmatpush1.msra.mxu0 %v1051
    %1088 = vmatprep.subr.mxu0 0.0
    %1089 = vmatpush1.msra.mxu0 %v1050
    %1090 = vmatprep.subr.mxu0 0.0
    %1091 = vmatpush1.msra.mxu0 %v1049
    %1092 = vmatprep.subr.mxu0 0.0
    %1093 = vmatpush1.msra.mxu0 %v1048
    %1094 = vmatprep.subr.mxu0 0.0
    %1095 = vmatpush1.msra.mxu0 %v1047
    %1096 = vmatprep.subr.mxu0 0.0
    %1097 = vmatpush1.msra.mxu0 %v1046
    %1098 = vmatprep.subr.mxu0 0.0
    %1099 = vmatpush1.msra.mxu0 %v1045
    %1100 = vmatprep.subr.mxu0 0.0
    %1101 = vmatpush2.msra.mxu0 0.0
    %1102 = vmatprep.subr.mxu0 0.0
    %1103 = vmatpush2.msra.mxu0 0.0
    %1104 = vmatprep.subr.mxu0 0.0
    %1105 = vmatpush2.msra.mxu0 0.0
    %1106 = vmatprep.subr.mxu0 0.0
    %1107 = vmatpush2.msra.mxu0 0.0
    %1108 = vmatprep.subr.mxu0 0.0
    %1109 = vmatpush2.msra.mxu0 0.0
    %1110 = vmatprep.subr.mxu0 0.0
    %1111 = vmatpush2.msra.mxu0 0.0
    %1112 = vmatprep.subr.mxu0 0.0
    %1113 = vmatpush2.msra.mxu0 0.0
    %1114 = vmatprep.subr.mxu0 0.0
    %1115 = vmatpush2.msra.mxu0 0.0
    %1116 = vmatprep.subr.mxu0 0.0
    %1117 = vmatpush2.msra.mxu0 0.0
    %1118 = vmatprep.subr.mxu0 0.0
    %1119 = vmatpush2.msra.mxu0 0.0
    %1120 = vmatprep.subr.mxu0 0.0
    %1121 = vmatpush2.msra.mxu0 0.0
    %1122 = vmatprep.subr.mxu0 0.0
    %1123 = vmatpush2.msra.mxu0 0.0
    %1124 = vmatprep.subr.mxu0 0.0
    %1125 = vmatpush2.msra.mxu0 0.0
    %1126 = vmatprep.subr.mxu0 0.0
    %1127 = vmatpush2.msra.mxu0 0.0
    %1128 = vmatprep.subr.mxu0 0.0
    %1129 = vmatpush2.msra.mxu0 0.0
    %1130 = vmatprep.subr.mxu0 0.0
    %1131 = vmatpush2.msra.mxu0 0.0
    %1132 = vmatprep.mubr.f32.mxu0 0.0
    %1133 = vmatmul.mubr.f32.gmra.mxu0 %v951
    %v1134 = vpop.f32.mrf.mxu0
    %v1135 = vadd.f32 %v1066, %v1134
    %v1136 = vpop.f32.mrf.mxu0
    %1137 = vdwg.mxu0
    %v1138 = vld [vmem:[#allocation8] sm:$0xff]
    %v1139 = vld [vmem:[#allocation8 + $0x8] sm:$0xff]
    %v1140 = vld [vmem:[#allocation8 + $0x10] sm:$0xff]
    %v1141 = vld [vmem:[#allocation8 + $0x18] sm:$0xff]
    %v1142 = vld [vmem:[#allocation8 + $0x20] sm:$0xff]
    %v1143 = vld [vmem:[#allocation8 + $0x28] sm:$0xff]
    %v1144 = vld [vmem:[#allocation8 + $0x30] sm:$0xff]
    %v1145 = vld [vmem:[#allocation8 + $0x38] sm:$0xff]
    %v1146 = vld [vmem:[#allocation8 + $0x40] sm:$0xff]
    %v1147 = vld [vmem:[#allocation8 + $0x48] sm:$0xff]
    %v1148 = vld [vmem:[#allocation8 + $0x50] sm:$0xff]
    %v1149 = vld [vmem:[#allocation8 + $0x58] sm:$0xff]
    %v1150 = vld [vmem:[#allocation8 + $0x60] sm:$0xff]
    %v1151 = vld [vmem:[#allocation8 + $0x68] sm:$0xff]
    %v1152 = vld [vmem:[#allocation8 + $0x70] sm:$0xff]
    %v1153 = vld [vmem:[#allocation8 + $0x78] sm:$0xff]
    %v1154 = vld [vmem:[%s10] sm:$0x1]
    %v1156 = vlaneseq
    %v1157 = vshrl.u32 %v1156, 7
    %v1158 = vsub.s32 0, %v1157
    %v1159 = vrot.slane %v1154, %v1158
    %1161 = vmatprep.subr.mxu0 0.0
    %1162 = vmatpush1.msra.mxu0 %v1153
    %1163 = vmatprep.subr.mxu0 0.0
    %1164 = vmatpush1.msra.mxu0 %v1152
    %1165 = vmatprep.subr.mxu0 0.0
    %1166 = vmatpush1.msra.mxu0 %v1151
    %1167 = vmatprep.subr.mxu0 0.0
    %1168 = vmatpush1.msra.mxu0 %v1150
    %1169 = vmatprep.subr.mxu0 0.0
    %1170 = vmatpush1.msra.mxu0 %v1149
    %1171 = vmatprep.subr.mxu0 0.0
    %1172 = vmatpush1.msra.mxu0 %v1148
    %1173 = vmatprep.subr.mxu0 0.0
    %1174 = vmatpush1.msra.mxu0 %v1147
    %1175 = vmatprep.subr.mxu0 0.0
    %1176 = vmatpush1.msra.mxu0 %v1146
    %1177 = vmatprep.subr.mxu0 0.0
    %1178 = vmatpush1.msra.mxu0 %v1145
    %1179 = vmatprep.subr.mxu0 0.0
    %1180 = vmatpush1.msra.mxu0 %v1144
    %1181 = vmatprep.subr.mxu0 0.0
    %1182 = vmatpush1.msra.mxu0 %v1143
    %1183 = vmatprep.subr.mxu0 0.0
    %1184 = vmatpush1.msra.mxu0 %v1142
    %1185 = vmatprep.subr.mxu0 0.0
    %1186 = vmatpush1.msra.mxu0 %v1141
    %1187 = vmatprep.subr.mxu0 0.0
    %1188 = vmatpush1.msra.mxu0 %v1140
    %1189 = vmatprep.subr.mxu0 0.0
    %1190 = vmatpush1.msra.mxu0 %v1139
    %1191 = vmatprep.subr.mxu0 0.0
    %1192 = vmatpush1.msra.mxu0 %v1138
    %1193 = vmatprep.subr.mxu0 0.0
    %1194 = vmatpush2.msra.mxu0 0.0
    %1195 = vmatprep.subr.mxu0 0.0
    %1196 = vmatpush2.msra.mxu0 0.0
    %1197 = vmatprep.subr.mxu0 0.0
    %1198 = vmatpush2.msra.mxu0 0.0
    %1199 = vmatprep.subr.mxu0 0.0
    %1200 = vmatpush2.msra.mxu0 0.0
    %1201 = vmatprep.subr.mxu0 0.0
    %1202 = vmatpush2.msra.mxu0 0.0
    %1203 = vmatprep.subr.mxu0 0.0
    %1204 = vmatpush2.msra.mxu0 0.0
    %1205 = vmatprep.subr.mxu0 0.0
    %1206 = vmatpush2.msra.mxu0 0.0
    %1207 = vmatprep.subr.mxu0 0.0
    %1208 = vmatpush2.msra.mxu0 0.0
    %1209 = vmatprep.subr.mxu0 0.0
    %1210 = vmatpush2.msra.mxu0 0.0
    %1211 = vmatprep.subr.mxu0 0.0
    %1212 = vmatpush2.msra.mxu0 0.0
    %1213 = vmatprep.subr.mxu0 0.0
    %1214 = vmatpush2.msra.mxu0 0.0
    %1215 = vmatprep.subr.mxu0 0.0
    %1216 = vmatpush2.msra.mxu0 0.0
    %1217 = vmatprep.subr.mxu0 0.0
    %1218 = vmatpush2.msra.mxu0 0.0
    %1219 = vmatprep.subr.mxu0 0.0
    %1220 = vmatpush2.msra.mxu0 0.0
    %1221 = vmatprep.subr.mxu0 0.0
    %1222 = vmatpush2.msra.mxu0 0.0
    %1223 = vmatprep.subr.mxu0 0.0
    %1224 = vmatpush2.msra.mxu0 0.0
    %1225 = vmatprep.mubr.f32.mxu0 0.0
    %1226 = vmatmul.mubr.f32.gmra.mxu0 %v951
    %v1227 = vpop.f32.mrf.mxu0
    %v1228 = vadd.f32 %v1159, %v1227
    %v1229 = vpop.f32.mrf.mxu0
    %1230 = vdwg.mxu0
    %vm1231 = vcmask 261120
    %v1233 = vsel %vm1231, %v1042, 0
    %v1236 = vsel %vm1231, %v1135, 0
    %1238 = vmatprep.subr.mxu0 0.0
    %1239 = vmatpush1.xpose.msra.mxu0 0.0
    %1240 = vmatprep.subr.mxu0 0.0
    %1241 = vmatpush1.xpose.msra.mxu0 0.0
    %1242 = vmatprep.subr.mxu0 0.0
    %1243 = vmatpush1.xpose.msra.mxu0 0.0
    %1244 = vmatprep.subr.mxu0 0.0
    %1245 = vmatpush1.xpose.msra.mxu0 0.0
    %1246 = vmatprep.subr.mxu0 0.0
    %1247 = vmatpush1.xpose.msra.mxu0 0.0
    %1248 = vmatprep.subr.mxu0 0.0
    %1249 = vmatpush1.xpose.msra.mxu0 0.0
    %1250 = vmatprep.subr.mxu0 0.0
    %1251 = vmatpush1.xpose.msra.mxu0 0.0
    %1252 = vmatprep.subr.mxu0 0.0
    %1253 = vmatpush1.xpose.msra.mxu0 0.0
    %1254 = vmatprep.subr.mxu0 0.0
    %1255 = vmatpush1.xpose.msra.mxu0 0.0
    %1256 = vmatprep.subr.mxu0 0.0
    %1257 = vmatpush1.xpose.msra.mxu0 0.0
    %1258 = vmatprep.subr.mxu0 0.0
    %1259 = vmatpush1.xpose.msra.mxu0 0.0
    %1260 = vmatprep.subr.mxu0 0.0
    %1261 = vmatpush1.xpose.msra.mxu0 0.0
    %1262 = vmatprep.subr.mxu0 0.0
    %1263 = vmatpush1.xpose.msra.mxu0 0.0
    %1264 = vmatprep.subr.mxu0 0.0
    %1265 = vmatpush1.xpose.msra.mxu0 0.0
    %1266 = vmatprep.subr.mxu0 0.0
    %1267 = vmatpush1.xpose.msra.mxu0 0.0
    %1268 = vmatprep.subr.mxu0 0.0
    %1269 = vmatpush1.xpose.msra.mxu0 %v1236
    %1270 = vmatprep.subr.mxu0 0.0
    %1271 = vmatpush2.xpose.msra.mxu0 0.0
    %1272 = vmatprep.subr.mxu0 0.0
    %1273 = vmatpush2.xpose.msra.mxu0 0.0
    %1274 = vmatprep.subr.mxu0 0.0
    %1275 = vmatpush2.xpose.msra.mxu0 0.0
    %1276 = vmatprep.subr.mxu0 0.0
    %1277 = vmatpush2.xpose.msra.mxu0 0.0
    %1278 = vmatprep.subr.mxu0 0.0
    %1279 = vmatpush2.xpose.msra.mxu0 0.0
    %1280 = vmatprep.subr.mxu0 0.0
    %1281 = vmatpush2.xpose.msra.mxu0 0.0
    %1282 = vmatprep.subr.mxu0 0.0
    %1283 = vmatpush2.xpose.msra.mxu0 0.0
    %1284 = vmatprep.subr.mxu0 0.0
    %1285 = vmatpush2.xpose.msra.mxu0 0.0
    %1286 = vmatprep.subr.mxu0 0.0
    %1287 = vmatpush2.xpose.msra.mxu0 0.0
    %1288 = vmatprep.subr.mxu0 0.0
    %1289 = vmatpush2.xpose.msra.mxu0 0.0
    %1290 = vmatprep.subr.mxu0 0.0
    %1291 = vmatpush2.xpose.msra.mxu0 0.0
    %1292 = vmatprep.subr.mxu0 0.0
    %1293 = vmatpush2.xpose.msra.mxu0 0.0
    %1294 = vmatprep.subr.mxu0 0.0
    %1295 = vmatpush2.xpose.msra.mxu0 0.0
    %1296 = vmatprep.subr.mxu0 0.0
    %1297 = vmatpush2.xpose.msra.mxu0 0.0
    %1298 = vmatprep.subr.mxu0 0.0
    %1299 = vmatpush2.xpose.msra.mxu0 0.0
    %1300 = vmatprep.subr.mxu0 0.0
    %1301 = vmatpush2.xpose.msra.mxu0 0.0
    %1302 = vmatprep.mubr.f32.mxu0 0.0
    %1303 = vmatmul.mubr.f32.gmra.mxu0 %v1233
    %v1304 = vpop.f32.mrf.mxu0
    %v1305 = vadd.f32 0.0, %v1304
    %v1306 = vpop.f32.mrf.mxu0
    %1307 = vdwg.mxu0
    %v1308 = vmul.f32 %v1305, 0.17677669
    %vm1309 = vcmask 27648
    %v1310 = vsel %vm1309, %v1308, -inf
    %1311 = vmax.xlane.f32.xlu0 %v1310
    %v1312 = vpop.xlane.xlu0 %1311
    %v1313 = vsub.f32 %v1308, %v1312
    %v1314 = vmul.f32 %v1313, 1.442695
    %v1315 = vpow.pop %v1314
    %v1316 = vsel %vm1309, %v1315, 0.0
    %1317 = vadd.xlane.f32.xlu0 %v1316
    %v1318 = vpop.xlane.xlu0 %1317
    %v1319 = vrcp.pop %v1318
    %v1320 = vmul.f32 %v1315, %v1319
    %vm1321 = vcmask 31744
    %v1323 = vsel %vm1321, %v1320, 0
    %vm1325 = vcmask 1043456
    %v1327 = vsel %vm1325, %v1228, 0
    %1329 = vmatprep.subr.mxu0 0.0
    %1330 = vmatpush1.msra.mxu0 0.0
    %1331 = vmatprep.subr.mxu0 0.0
    %1332 = vmatpush1.msra.mxu0 0.0
    %1333 = vmatprep.subr.mxu0 0.0
    %1334 = vmatpush1.msra.mxu0 0.0
    %1335 = vmatprep.subr.mxu0 0.0
    %1336 = vmatpush1.msra.mxu0 0.0
    %1337 = vmatprep.subr.mxu0 0.0
    %1338 = vmatpush1.msra.mxu0 0.0
    %1339 = vmatprep.subr.mxu0 0.0
    %1340 = vmatpush1.msra.mxu0 0.0
    %1341 = vmatprep.subr.mxu0 0.0
    %1342 = vmatpush1.msra.mxu0 0.0
    %1343 = vmatprep.subr.mxu0 0.0
    %1344 = vmatpush1.msra.mxu0 0.0
    %1345 = vmatprep.subr.mxu0 0.0
    %1346 = vmatpush1.msra.mxu0 0.0
    %1347 = vmatprep.subr.mxu0 0.0
    %1348 = vmatpush1.msra.mxu0 0.0
    %1349 = vmatprep.subr.mxu0 0.0
    %1350 = vmatpush1.msra.mxu0 0.0
    %1351 = vmatprep.subr.mxu0 0.0
    %1352 = vmatpush1.msra.mxu0 0.0
    %1353 = vmatprep.subr.mxu0 0.0
    %1354 = vmatpush1.msra.mxu0 0.0
    %1355 = vmatprep.subr.mxu0 0.0
    %1356 = vmatpush1.msra.mxu0 0.0
    %1357 = vmatprep.subr.mxu0 0.0
    %1358 = vmatpush1.msra.mxu0 0.0
    %1359 = vmatprep.subr.mxu0 0.0
    %1360 = vmatpush1.msra.mxu0 %v1327
    %1361 = vmatprep.subr.mxu0 0.0
    %1362 = vmatpush2.msra.mxu0 0.0
    %1363 = vmatprep.subr.mxu0 0.0
    %1364 = vmatpush2.msra.mxu0 0.0
    %1365 = vmatprep.subr.mxu0 0.0
    %1366 = vmatpush2.msra.mxu0 0.0
    %1367 = vmatprep.subr.mxu0 0.0
    %1368 = vmatpush2.msra.mxu0 0.0
    %1369 = vmatprep.subr.mxu0 0.0
    %1370 = vmatpush2.msra.mxu0 0.0
    %1371 = vmatprep.subr.mxu0 0.0
    %1372 = vmatpush2.msra.mxu0 0.0
    %1373 = vmatprep.subr.mxu0 0.0
    %1374 = vmatpush2.msra.mxu0 0.0
    %1375 = vmatprep.subr.mxu0 0.0
    %1376 = vmatpush2.msra.mxu0 0.0
    %1377 = vmatprep.subr.mxu0 0.0
    %1378 = vmatpush2.msra.mxu0 0.0
    %1379 = vmatprep.subr.mxu0 0.0
    %1380 = vmatpush2.msra.mxu0 0.0
    %1381 = vmatprep.subr.mxu0 0.0
    %1382 = vmatpush2.msra.mxu0 0.0
    %1383 = vmatprep.subr.mxu0 0.0
    %1384 = vmatpush2.msra.mxu0 0.0
    %1385 = vmatprep.subr.mxu0 0.0
    %1386 = vmatpush2.msra.mxu0 0.0
    %1387 = vmatprep.subr.mxu0 0.0
    %1388 = vmatpush2.msra.mxu0 0.0
    %1389 = vmatprep.subr.mxu0 0.0
    %1390 = vmatpush2.msra.mxu0 0.0
    %1391 = vmatprep.subr.mxu0 0.0
    %1392 = vmatpush2.msra.mxu0 0.0
    %1393 = vmatprep.mubr.f32.mxu0 0.0
    %1394 = vmatmul.mubr.f32.gmra.mxu0 %v1323
    %v1395 = vpop.f32.mrf.mxu0
    %v1396 = vadd.f32 0.0, %v1395
    %v1397 = vpop.f32.mrf.mxu0
    %1398 = vdwg.mxu0
    %v1399 = vld [vmem:[#allocation10] sm:$0xff]
    %v1400 = vld [vmem:[#allocation10 + $0x8] sm:$0xff]
    %v1401 = vld [vmem:[#allocation10 + $0x10] sm:$0xff]
    %v1402 = vld [vmem:[#allocation10 + $0x18] sm:$0xff]
    %1403 = vrot.lane.b32.xlu0 %v1042, 96
    %v1404 = vpop.permute.xlu0 %1403
    %1405 = vrot.lane.b32.xlu0 %v1135, 96
    %v1406 = vpop.permute.xlu0 %1405
    %v1407 = vsel %vm1231, %v1404, 0
    %v1409 = vsel %vm1231, %v1406, 0
    %1411 = vmatprep.subr.mxu0 0.0
    %1412 = vmatpush1.xpose.msra.mxu0 0.0
    %1413 = vmatprep.subr.mxu0 0.0
    %1414 = vmatpush1.xpose.msra.mxu0 0.0
    %1415 = vmatprep.subr.mxu0 0.0
    %1416 = vmatpush1.xpose.msra.mxu0 0.0
    %1417 = vmatprep.subr.mxu0 0.0
    %1418 = vmatpush1.xpose.msra.mxu0 0.0
    %1419 = vmatprep.subr.mxu0 0.0
    %1420 = vmatpush1.xpose.msra.mxu0 0.0
    %1421 = vmatprep.subr.mxu0 0.0
    %1422 = vmatpush1.xpose.msra.mxu0 0.0
    %1423 = vmatprep.subr.mxu0 0.0
    %1424 = vmatpush1.xpose.msra.mxu0 0.0
    %1425 = vmatprep.subr.mxu0 0.0
    %1426 = vmatpush1.xpose.msra.mxu0 0.0
    %1427 = vmatprep.subr.mxu0 0.0
    %1428 = vmatpush1.xpose.msra.mxu0 0.0
    %1429 = vmatprep.subr.mxu0 0.0
    %1430 = vmatpush1.xpose.msra.mxu0 0.0
    %1431 = vmatprep.subr.mxu0 0.0
    %1432 = vmatpush1.xpose.msra.mxu0 0.0
    %1433 = vmatprep.subr.mxu0 0.0
    %1434 = vmatpush1.xpose.msra.mxu0 0.0
    %1435 = vmatprep.subr.mxu0 0.0
    %1436 = vmatpush1.xpose.msra.mxu0 0.0
    %1437 = vmatprep.subr.mxu0 0.0
    %1438 = vmatpush1.xpose.msra.mxu0 0.0
    %1439 = vmatprep.subr.mxu0 0.0
    %1440 = vmatpush1.xpose.msra.mxu0 0.0
    %1441 = vmatprep.subr.mxu0 0.0
    %1442 = vmatpush1.xpose.msra.mxu0 %v1409
    %1443 = vmatprep.subr.mxu0 0.0
    %1444 = vmatpush2.xpose.msra.mxu0 0.0
    %1445 = vmatprep.subr.mxu0 0.0
    %1446 = vmatpush2.xpose.msra.mxu0 0.0
    %1447 = vmatprep.subr.mxu0 0.0
    %1448 = vmatpush2.xpose.msra.mxu0 0.0
    %1449 = vmatprep.subr.mxu0 0.0
    %1450 = vmatpush2.xpose.msra.mxu0 0.0
    %1451 = vmatprep.subr.mxu0 0.0
    %1452 = vmatpush2.xpose.msra.mxu0 0.0
    %1453 = vmatprep.subr.mxu0 0.0
    %1454 = vmatpush2.xpose.msra.mxu0 0.0
    %1455 = vmatprep.subr.mxu0 0.0
    %1456 = vmatpush2.xpose.msra.mxu0 0.0
    %1457 = vmatprep.subr.mxu0 0.0
    %1458 = vmatpush2.xpose.msra.mxu0 0.0
    %1459 = vmatprep.subr.mxu0 0.0
    %1460 = vmatpush2.xpose.msra.mxu0 0.0
    %1461 = vmatprep.subr.mxu0 0.0
    %1462 = vmatpush2.xpose.msra.mxu0 0.0
    %1463 = vmatprep.subr.mxu0 0.0
    %1464 = vmatpush2.xpose.msra.mxu0 0.0
    %1465 = vmatprep.subr.mxu0 0.0
    %1466 = vmatpush2.xpose.msra.mxu0 0.0
    %1467 = vmatprep.subr.mxu0 0.0
    %1468 = vmatpush2.xpose.msra.mxu0 0.0
    %1469 = vmatprep.subr.mxu0 0.0
    %1470 = vmatpush2.xpose.msra.mxu0 0.0
    %1471 = vmatprep.subr.mxu0 0.0
    %1472 = vmatpush2.xpose.msra.mxu0 0.0
    %1473 = vmatprep.subr.mxu0 0.0
    %1474 = vmatpush2.xpose.msra.mxu0 0.0
    %1475 = vmatprep.mubr.f32.mxu0 0.0
    %1476 = vmatmul.mubr.f32.gmra.mxu0 %v1407
    %v1477 = vpop.f32.mrf.mxu0
    %v1478 = vadd.f32 0.0, %v1477
    %v1479 = vpop.f32.mrf.mxu0
    %1480 = vdwg.mxu0
    %v1481 = vmul.f32 %v1478, 0.17677669
    %v1482 = vsel %vm1309, %v1481, -inf
    %1483 = vmax.xlane.f32.xlu0 %v1482
    %v1484 = vpop.xlane.xlu0 %1483
    %v1485 = vsub.f32 %v1481, %v1484
    %v1486 = vmul.f32 %v1485, 1.442695
    %v1487 = vpow.pop %v1486
    %v1488 = vsel %vm1309, %v1487, 0.0
    %1489 = vadd.xlane.f32.xlu0 %v1488
    %v1490 = vpop.xlane.xlu0 %1489
    %v1491 = vrcp.pop %v1490
    %v1492 = vmul.f32 %v1487, %v1491
    %1493 = vrot.lane.b32.xlu0 %v1228, 96
    %v1494 = vpop.permute.xlu0 %1493
    %v1496 = vsel %vm1321, %v1492, 0
    %v1498 = vsel %vm1325, %v1494, 0
    %1500 = vmatprep.subr.mxu0 0.0
    %1501 = vmatpush1.msra.mxu0 0.0
    %1502 = vmatprep.subr.mxu0 0.0
    %1503 = vmatpush1.msra.mxu0 0.0
    %1504 = vmatprep.subr.mxu0 0.0
    %1505 = vmatpush1.msra.mxu0 0.0
    %1506 = vmatprep.subr.mxu0 0.0
    %1507 = vmatpush1.msra.mxu0 0.0
    %1508 = vmatprep.subr.mxu0 0.0
    %1509 = vmatpush1.msra.mxu0 0.0
    %1510 = vmatprep.subr.mxu0 0.0
    %1511 = vmatpush1.msra.mxu0 0.0
    %1512 = vmatprep.subr.mxu0 0.0
    %1513 = vmatpush1.msra.mxu0 0.0
    %1514 = vmatprep.subr.mxu0 0.0
    %1515 = vmatpush1.msra.mxu0 0.0
    %1516 = vmatprep.subr.mxu0 0.0
    %1517 = vmatpush1.msra.mxu0 0.0
    %1518 = vmatprep.subr.mxu0 0.0
    %1519 = vmatpush1.msra.mxu0 0.0
    %1520 = vmatprep.subr.mxu0 0.0
    %1521 = vmatpush1.msra.mxu0 0.0
    %1522 = vmatprep.subr.mxu0 0.0
    %1523 = vmatpush1.msra.mxu0 0.0
    %1524 = vmatprep.subr.mxu0 0.0
    %1525 = vmatpush1.msra.mxu0 0.0
    %1526 = vmatprep.subr.mxu0 0.0
    %1527 = vmatpush1.msra.mxu0 0.0
    %1528 = vmatprep.subr.mxu0 0.0
    %1529 = vmatpush1.msra.mxu0 0.0
    %1530 = vmatprep.subr.mxu0 0.0
    %1531 = vmatpush1.msra.mxu0 %v1498
    %1532 = vmatprep.subr.mxu0 0.0
    %1533 = vmatpush2.msra.mxu0 0.0
    %1534 = vmatprep.subr.mxu0 0.0
    %1535 = vmatpush2.msra.mxu0 0.0
    %1536 = vmatprep.subr.mxu0 0.0
    %1537 = vmatpush2.msra.mxu0 0.0
    %1538 = vmatprep.subr.mxu0 0.0
    %1539 = vmatpush2.msra.mxu0 0.0
    %1540 = vmatprep.subr.mxu0 0.0
    %1541 = vmatpush2.msra.mxu0 0.0
    %1542 = vmatprep.subr.mxu0 0.0
    %1543 = vmatpush2.msra.mxu0 0.0
    %1544 = vmatprep.subr.mxu0 0.0
    %1545 = vmatpush2.msra.mxu0 0.0
    %1546 = vmatprep.subr.mxu0 0.0
    %1547 = vmatpush2.msra.mxu0 0.0
    %1548 = vmatprep.subr.mxu0 0.0
    %1549 = vmatpush2.msra.mxu0 0.0
    %1550 = vmatprep.subr.mxu0 0.0
    %1551 = vmatpush2.msra.mxu0 0.0
    %1552 = vmatprep.subr.mxu0 0.0
    %1553 = vmatpush2.msra.mxu0 0.0
    %1554 = vmatprep.subr.mxu0 0.0
    %1555 = vmatpush2.msra.mxu0 0.0
    %1556 = vmatprep.subr.mxu0 0.0
    %1557 = vmatpush2.msra.mxu0 0.0
    %1558 = vmatprep.subr.mxu0 0.0
    %1559 = vmatpush2.msra.mxu0 0.0
    %1560 = vmatprep.subr.mxu0 0.0
    %1561 = vmatpush2.msra.mxu0 0.0
    %1562 = vmatprep.subr.mxu0 0.0
    %1563 = vmatpush2.msra.mxu0 0.0
    %1564 = vmatprep.mubr.f32.mxu0 0.0
    %1565 = vmatmul.mubr.f32.gmra.mxu0 %v1496
    %v1566 = vpop.f32.mrf.mxu0
    %v1567 = vadd.f32 0.0, %v1566
    %v1568 = vpop.f32.mrf.mxu0
    %1569 = vdwg.mxu0
    %v1570 = vld [vmem:[#allocation10 + $0x20] sm:$0xff]
    %v1571 = vld [vmem:[#allocation10 + $0x28] sm:$0xff]
    %v1572 = vld [vmem:[#allocation10 + $0x30] sm:$0xff]
    %v1573 = vld [vmem:[#allocation10 + $0x38] sm:$0xff]
    %v1575 = vsel %vm1231, %v1567, 0
    %1577 = vmatprep.subr.mxu0 0.0
    %1578 = vmatpush1.msra.mxu0 0.0
    %1579 = vmatprep.subr.mxu0 0.0
    %1580 = vmatpush1.msra.mxu0 0.0
    %1581 = vmatprep.subr.mxu0 0.0
    %1582 = vmatpush1.msra.mxu0 0.0
    %1583 = vmatprep.subr.mxu0 0.0
    %1584 = vmatpush1.msra.mxu0 0.0
    %1585 = vmatprep.subr.mxu0 0.0
    %1586 = vmatpush1.msra.mxu0 0.0
    %1587 = vmatprep.subr.mxu0 0.0
    %1588 = vmatpush1.msra.mxu0 0.0
    %1589 = vmatprep.subr.mxu0 0.0
    %1590 = vmatpush1.msra.mxu0 0.0
    %1591 = vmatprep.subr.mxu0 0.0
    %1592 = vmatpush1.msra.mxu0 0.0
    %1593 = vmatprep.subr.mxu0 0.0
    %1594 = vmatpush1.msra.mxu0 0.0
    %1595 = vmatprep.subr.mxu0 0.0
    %1596 = vmatpush1.msra.mxu0 0.0
    %1597 = vmatprep.subr.mxu0 0.0
    %1598 = vmatpush1.msra.mxu0 0.0
    %1599 = vmatprep.subr.mxu0 0.0
    %1600 = vmatpush1.msra.mxu0 0.0
    %1601 = vmatprep.subr.mxu0 0.0
    %1602 = vmatpush1.msra.mxu0 %v1573
    %1603 = vmatprep.subr.mxu0 0.0
    %1604 = vmatpush1.msra.mxu0 %v1572
    %1605 = vmatprep.subr.mxu0 0.0
    %1606 = vmatpush1.msra.mxu0 %v1571
    %1607 = vmatprep.subr.mxu0 0.0
    %1608 = vmatpush1.msra.mxu0 %v1570
    %1609 = vmatprep.subr.mxu0 0.0
    %1610 = vmatpush2.msra.mxu0 0.0
    %1611 = vmatprep.subr.mxu0 0.0
    %1612 = vmatpush2.msra.mxu0 0.0
    %1613 = vmatprep.subr.mxu0 0.0
    %1614 = vmatpush2.msra.mxu0 0.0
    %1615 = vmatprep.subr.mxu0 0.0
    %1616 = vmatpush2.msra.mxu0 0.0
    %1617 = vmatprep.subr.mxu0 0.0
    %1618 = vmatpush2.msra.mxu0 0.0
    %1619 = vmatprep.subr.mxu0 0.0
    %1620 = vmatpush2.msra.mxu0 0.0
    %1621 = vmatprep.subr.mxu0 0.0
    %1622 = vmatpush2.msra.mxu0 0.0
    %1623 = vmatprep.subr.mxu0 0.0
    %1624 = vmatpush2.msra.mxu0 0.0
    %1625 = vmatprep.subr.mxu0 0.0
    %1626 = vmatpush2.msra.mxu0 0.0
    %1627 = vmatprep.subr.mxu0 0.0
    %1628 = vmatpush2.msra.mxu0 0.0
    %1629 = vmatprep.subr.mxu0 0.0
    %1630 = vmatpush2.msra.mxu0 0.0
    %1631 = vmatprep.subr.mxu0 0.0
    %1632 = vmatpush2.msra.mxu0 0.0
    %1633 = vmatprep.subr.mxu0 0.0
    %1634 = vmatpush2.msra.mxu0 0.0
    %1635 = vmatprep.subr.mxu0 0.0
    %1636 = vmatpush2.msra.mxu0 0.0
    %1637 = vmatprep.subr.mxu0 0.0
    %1638 = vmatpush2.msra.mxu0 0.0
    %1639 = vmatprep.subr.mxu0 0.0
    %1640 = vmatpush2.msra.mxu0 0.0
    %1641 = vmatprep.mubr.f32.mxu0 0.0
    %1642 = vmatmul.mubr.f32.gmra.mxu0 %v1575
    %v1643 = vpop.f32.mrf.mxu0
    %v1644 = vadd.f32 0.0, %v1643
    %v1645 = vpop.f32.mrf.mxu0
    %1646 = vdwg.mxu0
    %v1648 = vsel %vm1231, %v1396, 0
    %1650 = vmatprep.subr.mxu0 0.0
    %1651 = vmatpush1.msra.mxu0 0.0
    %1652 = vmatprep.subr.mxu0 0.0
    %1653 = vmatpush1.msra.mxu0 0.0
    %1654 = vmatprep.subr.mxu0 0.0
    %1655 = vmatpush1.msra.mxu0 0.0
    %1656 = vmatprep.subr.mxu0 0.0
    %1657 = vmatpush1.msra.mxu0 0.0
    %1658 = vmatprep.subr.mxu0 0.0
    %1659 = vmatpush1.msra.mxu0 0.0
    %1660 = vmatprep.subr.mxu0 0.0
    %1661 = vmatpush1.msra.mxu0 0.0
    %1662 = vmatprep.subr.mxu0 0.0
    %1663 = vmatpush1.msra.mxu0 0.0
    %1664 = vmatprep.subr.mxu0 0.0
    %1665 = vmatpush1.msra.mxu0 0.0
    %1666 = vmatprep.subr.mxu0 0.0
    %1667 = vmatpush1.msra.mxu0 0.0
    %1668 = vmatprep.subr.mxu0 0.0
    %1669 = vmatpush1.msra.mxu0 0.0
    %1670 = vmatprep.subr.mxu0 0.0
    %1671 = vmatpush1.msra.mxu0 0.0
    %1672 = vmatprep.subr.mxu0 0.0
    %1673 = vmatpush1.msra.mxu0 0.0
    %1674 = vmatprep.subr.mxu0 0.0
    %1675 = vmatpush1.msra.mxu0 %v1402
    %1676 = vmatprep.subr.mxu0 0.0
    %1677 = vmatpush1.msra.mxu0 %v1401
    %1678 = vmatprep.subr.mxu0 0.0
    %1679 = vmatpush1.msra.mxu0 %v1400
    %1680 = vmatprep.subr.mxu0 0.0
    %1681 = vmatpush1.msra.mxu0 %v1399
    %1682 = vmatprep.subr.mxu0 0.0
    %1683 = vmatpush2.msra.mxu0 0.0
    %1684 = vmatprep.subr.mxu0 0.0
    %1685 = vmatpush2.msra.mxu0 0.0
    %1686 = vmatprep.subr.mxu0 0.0
    %1687 = vmatpush2.msra.mxu0 0.0
    %1688 = vmatprep.subr.mxu0 0.0
    %1689 = vmatpush2.msra.mxu0 0.0
    %1690 = vmatprep.subr.mxu0 0.0
    %1691 = vmatpush2.msra.mxu0 0.0
    %1692 = vmatprep.subr.mxu0 0.0
    %1693 = vmatpush2.msra.mxu0 0.0
    %1694 = vmatprep.subr.mxu0 0.0
    %1695 = vmatpush2.msra.mxu0 0.0
    %1696 = vmatprep.subr.mxu0 0.0
    %1697 = vmatpush2.msra.mxu0 0.0
    %1698 = vmatprep.subr.mxu0 0.0
    %1699 = vmatpush2.msra.mxu0 0.0
    %1700 = vmatprep.subr.mxu0 0.0
    %1701 = vmatpush2.msra.mxu0 0.0
    %1702 = vmatprep.subr.mxu0 0.0
    %1703 = vmatpush2.msra.mxu0 0.0
    %1704 = vmatprep.subr.mxu0 0.0
    %1705 = vmatpush2.msra.mxu0 0.0
    %1706 = vmatprep.subr.mxu0 0.0
    %1707 = vmatpush2.msra.mxu0 0.0
    %1708 = vmatprep.subr.mxu0 0.0
    %1709 = vmatpush2.msra.mxu0 0.0
    %1710 = vmatprep.subr.mxu0 0.0
    %1711 = vmatpush2.msra.mxu0 0.0
    %1712 = vmatprep.subr.mxu0 0.0
    %1713 = vmatpush2.msra.mxu0 0.0
    %1714 = vmatprep.mubr.f32.mxu0 0.0
    %1715 = vmatmul.mubr.f32.gmra.mxu0 %v1648
    %v1716 = vpop.f32.mrf.mxu0
    %v1717 = vadd.f32 %v1644, %v1716
    %v1718 = vpop.f32.mrf.mxu0
    %1719 = vdwg.mxu0
    %1720 = vrot.lane.b32.xlu0 %v1042, 64
    %v1721 = vpop.permute.xlu0 %1720
    %1722 = vrot.lane.b32.xlu0 %v1135, 64
    %v1723 = vpop.permute.xlu0 %1722
    %v1724 = vsel %vm1231, %v1721, 0
    %v1726 = vsel %vm1231, %v1723, 0
    %1728 = vmatprep.subr.mxu0 0.0
    %1729 = vmatpush1.xpose.msra.mxu0 0.0
    %1730 = vmatprep.subr.mxu0 0.0
    %1731 = vmatpush1.xpose.msra.mxu0 0.0
    %1732 = vmatprep.subr.mxu0 0.0
    %1733 = vmatpush1.xpose.msra.mxu0 0.0
    %1734 = vmatprep.subr.mxu0 0.0
    %1735 = vmatpush1.xpose.msra.mxu0 0.0
    %1736 = vmatprep.subr.mxu0 0.0
    %1737 = vmatpush1.xpose.msra.mxu0 0.0
    %1738 = vmatprep.subr.mxu0 0.0
    %1739 = vmatpush1.xpose.msra.mxu0 0.0
    %1740 = vmatprep.subr.mxu0 0.0
    %1741 = vmatpush1.xpose.msra.mxu0 0.0
    %1742 = vmatprep.subr.mxu0 0.0
    %1743 = vmatpush1.xpose.msra.mxu0 0.0
    %1744 = vmatprep.subr.mxu0 0.0
    %1745 = vmatpush1.xpose.msra.mxu0 0.0
    %1746 = vmatprep.subr.mxu0 0.0
    %1747 = vmatpush1.xpose.msra.mxu0 0.0
    %1748 = vmatprep.subr.mxu0 0.0
    %1749 = vmatpush1.xpose.msra.mxu0 0.0
    %1750 = vmatprep.subr.mxu0 0.0
    %1751 = vmatpush1.xpose.msra.mxu0 0.0
    %1752 = vmatprep.subr.mxu0 0.0
    %1753 = vmatpush1.xpose.msra.mxu0 0.0
    %1754 = vmatprep.subr.mxu0 0.0
    %1755 = vmatpush1.xpose.msra.mxu0 0.0
    %1756 = vmatprep.subr.mxu0 0.0
    %1757 = vmatpush1.xpose.msra.mxu0 0.0
    %1758 = vmatprep.subr.mxu0 0.0
    %1759 = vmatpush1.xpose.msra.mxu0 %v1726
    %1760 = vmatprep.subr.mxu0 0.0
    %1761 = vmatpush2.xpose.msra.mxu0 0.0
    %1762 = vmatprep.subr.mxu0 0.0
    %1763 = vmatpush2.xpose.msra.mxu0 0.0
    %1764 = vmatprep.subr.mxu0 0.0
    %1765 = vmatpush2.xpose.msra.mxu0 0.0
    %1766 = vmatprep.subr.mxu0 0.0
    %1767 = vmatpush2.xpose.msra.mxu0 0.0
    %1768 = vmatprep.subr.mxu0 0.0
    %1769 = vmatpush2.xpose.msra.mxu0 0.0
    %1770 = vmatprep.subr.mxu0 0.0
    %1771 = vmatpush2.xpose.msra.mxu0 0.0
    %1772 = vmatprep.subr.mxu0 0.0
    %1773 = vmatpush2.xpose.msra.mxu0 0.0
    %1774 = vmatprep.subr.mxu0 0.0
    %1775 = vmatpush2.xpose.msra.mxu0 0.0
    %1776 = vmatprep.subr.mxu0 0.0
    %1777 = vmatpush2.xpose.msra.mxu0 0.0
    %1778 = vmatprep.subr.mxu0 0.0
    %1779 = vmatpush2.xpose.msra.mxu0 0.0
    %1780 = vmatprep.subr.mxu0 0.0
    %1781 = vmatpush2.xpose.msra.mxu0 0.0
    %1782 = vmatprep.subr.mxu0 0.0
    %1783 = vmatpush2.xpose.msra.mxu0 0.0
    %1784 = vmatprep.subr.mxu0 0.0
    %1785 = vmatpush2.xpose.msra.mxu0 0.0
    %1786 = vmatprep.subr.mxu0 0.0
    %1787 = vmatpush2.xpose.msra.mxu0 0.0
    %1788 = vmatprep.subr.mxu0 0.0
    %1789 = vmatpush2.xpose.msra.mxu0 0.0
    %1790 = vmatprep.subr.mxu0 0.0
    %1791 = vmatpush2.xpose.msra.mxu0 0.0
    %1792 = vmatprep.mubr.f32.mxu0 0.0
    %1793 = vmatmul.mubr.f32.gmra.mxu0 %v1724
    %v1794 = vpop.f32.mrf.mxu0
    %v1795 = vadd.f32 0.0, %v1794
    %v1796 = vpop.f32.mrf.mxu0
    %1797 = vdwg.mxu0
    %v1798 = vmul.f32 %v1795, 0.17677669
    %v1799 = vsel %vm1309, %v1798, -inf
    %1800 = vmax.xlane.f32.xlu0 %v1799
    %v1801 = vpop.xlane.xlu0 %1800
    %v1802 = vsub.f32 %v1798, %v1801
    %v1803 = vmul.f32 %v1802, 1.442695
    %v1804 = vpow.pop %v1803
    %v1805 = vsel %vm1309, %v1804, 0.0
    %1806 = vadd.xlane.f32.xlu0 %v1805
    %v1807 = vpop.xlane.xlu0 %1806
    %v1808 = vrcp.pop %v1807
    %v1809 = vmul.f32 %v1804, %v1808
    %1810 = vrot.lane.b32.xlu0 %v1228, 64
    %v1811 = vpop.permute.xlu0 %1810
    %v1813 = vsel %vm1321, %v1809, 0
    %v1815 = vsel %vm1325, %v1811, 0
    %1817 = vmatprep.subr.mxu0 0.0
    %1818 = vmatpush1.msra.mxu0 0.0
    %1819 = vmatprep.subr.mxu0 0.0
    %1820 = vmatpush1.msra.mxu0 0.0
    %1821 = vmatprep.subr.mxu0 0.0
    %1822 = vmatpush1.msra.mxu0 0.0
    %1823 = vmatprep.subr.mxu0 0.0
    %1824 = vmatpush1.msra.mxu0 0.0
    %1825 = vmatprep.subr.mxu0 0.0
    %1826 = vmatpush1.msra.mxu0 0.0
    %1827 = vmatprep.subr.mxu0 0.0
    %1828 = vmatpush1.msra.mxu0 0.0
    %1829 = vmatprep.subr.mxu0 0.0
    %1830 = vmatpush1.msra.mxu0 0.0
    %1831 = vmatprep.subr.mxu0 0.0
    %1832 = vmatpush1.msra.mxu0 0.0
    %1833 = vmatprep.subr.mxu0 0.0
    %1834 = vmatpush1.msra.mxu0 0.0
    %1835 = vmatprep.subr.mxu0 0.0
    %1836 = vmatpush1.msra.mxu0 0.0
    %1837 = vmatprep.subr.mxu0 0.0
    %1838 = vmatpush1.msra.mxu0 0.0
    %1839 = vmatprep.subr.mxu0 0.0
    %1840 = vmatpush1.msra.mxu0 0.0
    %1841 = vmatprep.subr.mxu0 0.0
    %1842 = vmatpush1.msra.mxu0 0.0
    %1843 = vmatprep.subr.mxu0 0.0
    %1844 = vmatpush1.msra.mxu0 0.0
    %1845 = vmatprep.subr.mxu0 0.0
    %1846 = vmatpush1.msra.mxu0 0.0
    %1847 = vmatprep.subr.mxu0 0.0
    %1848 = vmatpush1.msra.mxu0 %v1815
    %1849 = vmatprep.subr.mxu0 0.0
    %1850 = vmatpush2.msra.mxu0 0.0
    %1851 = vmatprep.subr.mxu0 0.0
    %1852 = vmatpush2.msra.mxu0 0.0
    %1853 = vmatprep.subr.mxu0 0.0
    %1854 = vmatpush2.msra.mxu0 0.0
    %1855 = vmatprep.subr.mxu0 0.0
    %1856 = vmatpush2.msra.mxu0 0.0
    %1857 = vmatprep.subr.mxu0 0.0
    %1858 = vmatpush2.msra.mxu0 0.0
    %1859 = vmatprep.subr.mxu0 0.0
    %1860 = vmatpush2.msra.mxu0 0.0
    %1861 = vmatprep.subr.mxu0 0.0
    %1862 = vmatpush2.msra.mxu0 0.0
    %1863 = vmatprep.subr.mxu0 0.0
    %1864 = vmatpush2.msra.mxu0 0.0
    %1865 = vmatprep.subr.mxu0 0.0
    %1866 = vmatpush2.msra.mxu0 0.0
    %1867 = vmatprep.subr.mxu0 0.0
    %1868 = vmatpush2.msra.mxu0 0.0
    %1869 = vmatprep.subr.mxu0 0.0
    %1870 = vmatpush2.msra.mxu0 0.0
    %1871 = vmatprep.subr.mxu0 0.0
    %1872 = vmatpush2.msra.mxu0 0.0
    %1873 = vmatprep.subr.mxu0 0.0
    %1874 = vmatpush2.msra.mxu0 0.0
    %1875 = vmatprep.subr.mxu0 0.0
    %1876 = vmatpush2.msra.mxu0 0.0
    %1877 = vmatprep.subr.mxu0 0.0
    %1878 = vmatpush2.msra.mxu0 0.0
    %1879 = vmatprep.subr.mxu0 0.0
    %1880 = vmatpush2.msra.mxu0 0.0
    %1881 = vmatprep.mubr.f32.mxu0 0.0
    %1882 = vmatmul.mubr.f32.gmra.mxu0 %v1813
    %v1883 = vpop.f32.mrf.mxu0
    %v1884 = vadd.f32 0.0, %v1883
    %v1885 = vpop.f32.mrf.mxu0
    %1886 = vdwg.mxu0
    %v1887 = vld [vmem:[#allocation10 + $0x40] sm:$0xff]
    %v1888 = vld [vmem:[#allocation10 + $0x48] sm:$0xff]
    %v1889 = vld [vmem:[#allocation10 + $0x50] sm:$0xff]
    %v1890 = vld [vmem:[#allocation10 + $0x58] sm:$0xff]
    %v1892 = vsel %vm1231, %v1884, 0
    %1894 = vmatprep.subr.mxu0 0.0
    %1895 = vmatpush1.msra.mxu0 0.0
    %1896 = vmatprep.subr.mxu0 0.0
    %1897 = vmatpush1.msra.mxu0 0.0
    %1898 = vmatprep.subr.mxu0 0.0
    %1899 = vmatpush1.msra.mxu0 0.0
    %1900 = vmatprep.subr.mxu0 0.0
    %1901 = vmatpush1.msra.mxu0 0.0
    %1902 = vmatprep.subr.mxu0 0.0
    %1903 = vmatpush1.msra.mxu0 0.0
    %1904 = vmatprep.subr.mxu0 0.0
    %1905 = vmatpush1.msra.mxu0 0.0
    %1906 = vmatprep.subr.mxu0 0.0
    %1907 = vmatpush1.msra.mxu0 0.0
    %1908 = vmatprep.subr.mxu0 0.0
    %1909 = vmatpush1.msra.mxu0 0.0
    %1910 = vmatprep.subr.mxu0 0.0
    %1911 = vmatpush1.msra.mxu0 0.0
    %1912 = vmatprep.subr.mxu0 0.0
    %1913 = vmatpush1.msra.mxu0 0.0
    %1914 = vmatprep.subr.mxu0 0.0
    %1915 = vmatpush1.msra.mxu0 0.0
    %1916 = vmatprep.subr.mxu0 0.0
    %1917 = vmatpush1.msra.mxu0 0.0
    %1918 = vmatprep.subr.mxu0 0.0
    %1919 = vmatpush1.msra.mxu0 %v1890
    %1920 = vmatprep.subr.mxu0 0.0
    %1921 = vmatpush1.msra.mxu0 %v1889
    %1922 = vmatprep.subr.mxu0 0.0
    %1923 = vmatpush1.msra.mxu0 %v1888
    %1924 = vmatprep.subr.mxu0 0.0
    %1925 = vmatpush1.msra.mxu0 %v1887
    %1926 = vmatprep.subr.mxu0 0.0
    %1927 = vmatpush2.msra.mxu0 0.0
    %1928 = vmatprep.subr.mxu0 0.0
    %1929 = vmatpush2.msra.mxu0 0.0
    %1930 = vmatprep.subr.mxu0 0.0
    %1931 = vmatpush2.msra.mxu0 0.0
    %1932 = vmatprep.subr.mxu0 0.0
    %1933 = vmatpush2.msra.mxu0 0.0
    %1934 = vmatprep.subr.mxu0 0.0
    %1935 = vmatpush2.msra.mxu0 0.0
    %1936 = vmatprep.subr.mxu0 0.0
    %1937 = vmatpush2.msra.mxu0 0.0
    %1938 = vmatprep.subr.mxu0 0.0
    %1939 = vmatpush2.msra.mxu0 0.0
    %1940 = vmatprep.subr.mxu0 0.0
    %1941 = vmatpush2.msra.mxu0 0.0
    %1942 = vmatprep.subr.mxu0 0.0
    %1943 = vmatpush2.msra.mxu0 0.0
    %1944 = vmatprep.subr.mxu0 0.0
    %1945 = vmatpush2.msra.mxu0 0.0
    %1946 = vmatprep.subr.mxu0 0.0
    %1947 = vmatpush2.msra.mxu0 0.0
    %1948 = vmatprep.subr.mxu0 0.0
    %1949 = vmatpush2.msra.mxu0 0.0
    %1950 = vmatprep.subr.mxu0 0.0
    %1951 = vmatpush2.msra.mxu0 0.0
    %1952 = vmatprep.subr.mxu0 0.0
    %1953 = vmatpush2.msra.mxu0 0.0
    %1954 = vmatprep.subr.mxu0 0.0
    %1955 = vmatpush2.msra.mxu0 0.0
    %1956 = vmatprep.subr.mxu0 0.0
    %1957 = vmatpush2.msra.mxu0 0.0
    %1958 = vmatprep.mubr.f32.mxu0 0.0
    %1959 = vmatmul.mubr.f32.gmra.mxu0 %v1892
    %v1960 = vpop.f32.mrf.mxu0
    %v1961 = vadd.f32 0.0, %v1960
    %v1962 = vpop.f32.mrf.mxu0
    %1963 = vdwg.mxu0
    %v1964 = vadd.f32 %v1717, %v1961
    %1965 = vrot.lane.b32.xlu0 %v1042, 32
    %v1966 = vpop.permute.xlu0 %1965
    %1967 = vrot.lane.b32.xlu0 %v1135, 32
    %v1968 = vpop.permute.xlu0 %1967
    %v1969 = vsel %vm1231, %v1966, 0
    %v1971 = vsel %vm1231, %v1968, 0
    %1973 = vmatprep.subr.mxu0 0.0
    %1974 = vmatpush1.xpose.msra.mxu0 0.0
    %1975 = vmatprep.subr.mxu0 0.0
    %1976 = vmatpush1.xpose.msra.mxu0 0.0
    %1977 = vmatprep.subr.mxu0 0.0
    %1978 = vmatpush1.xpose.msra.mxu0 0.0
    %1979 = vmatprep.subr.mxu0 0.0
    %1980 = vmatpush1.xpose.msra.mxu0 0.0
    %1981 = vmatprep.subr.mxu0 0.0
    %1982 = vmatpush1.xpose.msra.mxu0 0.0
    %1983 = vmatprep.subr.mxu0 0.0
    %1984 = vmatpush1.xpose.msra.mxu0 0.0
    %1985 = vmatprep.subr.mxu0 0.0
    %1986 = vmatpush1.xpose.msra.mxu0 0.0
    %1987 = vmatprep.subr.mxu0 0.0
    %1988 = vmatpush1.xpose.msra.mxu0 0.0
    %1989 = vmatprep.subr.mxu0 0.0
    %1990 = vmatpush1.xpose.msra.mxu0 0.0
    %1991 = vmatprep.subr.mxu0 0.0
    %1992 = vmatpush1.xpose.msra.mxu0 0.0
    %1993 = vmatprep.subr.mxu0 0.0
    %1994 = vmatpush1.xpose.msra.mxu0 0.0
    %1995 = vmatprep.subr.mxu0 0.0
    %1996 = vmatpush1.xpose.msra.mxu0 0.0
    %1997 = vmatprep.subr.mxu0 0.0
    %1998 = vmatpush1.xpose.msra.mxu0 0.0
    %1999 = vmatprep.subr.mxu0 0.0
    %2000 = vmatpush1.xpose.msra.mxu0 0.0
    %2001 = vmatprep.subr.mxu0 0.0
    %2002 = vmatpush1.xpose.msra.mxu0 0.0
    %2003 = vmatprep.subr.mxu0 0.0
    %2004 = vmatpush1.xpose.msra.mxu0 %v1971
    %2005 = vmatprep.subr.mxu0 0.0
    %2006 = vmatpush2.xpose.msra.mxu0 0.0
    %2007 = vmatprep.subr.mxu0 0.0
    %2008 = vmatpush2.xpose.msra.mxu0 0.0
    %2009 = vmatprep.subr.mxu0 0.0
    %2010 = vmatpush2.xpose.msra.mxu0 0.0
    %2011 = vmatprep.subr.mxu0 0.0
    %2012 = vmatpush2.xpose.msra.mxu0 0.0
    %2013 = vmatprep.subr.mxu0 0.0
    %2014 = vmatpush2.xpose.msra.mxu0 0.0
    %2015 = vmatprep.subr.mxu0 0.0
    %2016 = vmatpush2.xpose.msra.mxu0 0.0
    %2017 = vmatprep.subr.mxu0 0.0
    %2018 = vmatpush2.xpose.msra.mxu0 0.0
    %2019 = vmatprep.subr.mxu0 0.0
    %2020 = vmatpush2.xpose.msra.mxu0 0.0
    %2021 = vmatprep.subr.mxu0 0.0
    %2022 = vmatpush2.xpose.msra.mxu0 0.0
    %2023 = vmatprep.subr.mxu0 0.0
    %2024 = vmatpush2.xpose.msra.mxu0 0.0
    %2025 = vmatprep.subr.mxu0 0.0
    %2026 = vmatpush2.xpose.msra.mxu0 0.0
    %2027 = vmatprep.subr.mxu0 0.0
    %2028 = vmatpush2.xpose.msra.mxu0 0.0
    %2029 = vmatprep.subr.mxu0 0.0
    %2030 = vmatpush2.xpose.msra.mxu0 0.0
    %2031 = vmatprep.subr.mxu0 0.0
    %2032 = vmatpush2.xpose.msra.mxu0 0.0
    %2033 = vmatprep.subr.mxu0 0.0
    %2034 = vmatpush2.xpose.msra.mxu0 0.0
    %2035 = vmatprep.subr.mxu0 0.0
    %2036 = vmatpush2.xpose.msra.mxu0 0.0
    %2037 = vmatprep.mubr.f32.mxu0 0.0
    %2038 = vmatmul.mubr.f32.gmra.mxu0 %v1969
    %v2039 = vpop.f32.mrf.mxu0
    %v2040 = vadd.f32 0.0, %v2039
    %v2041 = vpop.f32.mrf.mxu0
    %2042 = vdwg.mxu0
    %v2043 = vmul.f32 %v2040, 0.17677669
    %v2044 = vsel %vm1309, %v2043, -inf
    %2045 = vmax.xlane.f32.xlu0 %v2044
    %v2046 = vpop.xlane.xlu0 %2045
    %v2047 = vsub.f32 %v2043, %v2046
    %v2048 = vmul.f32 %v2047, 1.442695
    %v2049 = vpow.pop %v2048
    %v2050 = vsel %vm1309, %v2049, 0.0
    %2051 = vadd.xlane.f32.xlu0 %v2050
    %v2052 = vpop.xlane.xlu0 %2051
    %v2053 = vrcp.pop %v2052
    %v2054 = vmul.f32 %v2049, %v2053
    %2055 = vrot.lane.b32.xlu0 %v1228, 32
    %v2056 = vpop.permute.xlu0 %2055
    %v2058 = vsel %vm1321, %v2054, 0
    %v2060 = vsel %vm1325, %v2056, 0
    %2062 = vmatprep.subr.mxu0 0.0
    %2063 = vmatpush1.msra.mxu0 0.0
    %2064 = vmatprep.subr.mxu0 0.0
    %2065 = vmatpush1.msra.mxu0 0.0
    %2066 = vmatprep.subr.mxu0 0.0
    %2067 = vmatpush1.msra.mxu0 0.0
    %2068 = vmatprep.subr.mxu0 0.0
    %2069 = vmatpush1.msra.mxu0 0.0
    %2070 = vmatprep.subr.mxu0 0.0
    %2071 = vmatpush1.msra.mxu0 0.0
    %2072 = vmatprep.subr.mxu0 0.0
    %2073 = vmatpush1.msra.mxu0 0.0
    %2074 = vmatprep.subr.mxu0 0.0
    %2075 = vmatpush1.msra.mxu0 0.0
    %2076 = vmatprep.subr.mxu0 0.0
    %2077 = vmatpush1.msra.mxu0 0.0
    %2078 = vmatprep.subr.mxu0 0.0
    %2079 = vmatpush1.msra.mxu0 0.0
    %2080 = vmatprep.subr.mxu0 0.0
    %2081 = vmatpush1.msra.mxu0 0.0
    %2082 = vmatprep.subr.mxu0 0.0
    %2083 = vmatpush1.msra.mxu0 0.0
    %2084 = vmatprep.subr.mxu0 0.0
    %2085 = vmatpush1.msra.mxu0 0.0
    %2086 = vmatprep.subr.mxu0 0.0
    %2087 = vmatpush1.msra.mxu0 0.0
    %2088 = vmatprep.subr.mxu0 0.0
    %2089 = vmatpush1.msra.mxu0 0.0
    %2090 = vmatprep.subr.mxu0 0.0
    %2091 = vmatpush1.msra.mxu0 0.0
    %2092 = vmatprep.subr.mxu0 0.0
    %2093 = vmatpush1.msra.mxu0 %v2060
    %2094 = vmatprep.subr.mxu0 0.0
    %2095 = vmatpush2.msra.mxu0 0.0
    %2096 = vmatprep.subr.mxu0 0.0
    %2097 = vmatpush2.msra.mxu0 0.0
    %2098 = vmatprep.subr.mxu0 0.0
    %2099 = vmatpush2.msra.mxu0 0.0
    %2100 = vmatprep.subr.mxu0 0.0
    %2101 = vmatpush2.msra.mxu0 0.0
    %2102 = vmatprep.subr.mxu0 0.0
    %2103 = vmatpush2.msra.mxu0 0.0
    %2104 = vmatprep.subr.mxu0 0.0
    %2105 = vmatpush2.msra.mxu0 0.0
    %2106 = vmatprep.subr.mxu0 0.0
    %2107 = vmatpush2.msra.mxu0 0.0
    %2108 = vmatprep.subr.mxu0 0.0
    %2109 = vmatpush2.msra.mxu0 0.0
    %2110 = vmatprep.subr.mxu0 0.0
    %2111 = vmatpush2.msra.mxu0 0.0
    %2112 = vmatprep.subr.mxu0 0.0
    %2113 = vmatpush2.msra.mxu0 0.0
    %2114 = vmatprep.subr.mxu0 0.0
    %2115 = vmatpush2.msra.mxu0 0.0
    %2116 = vmatprep.subr.mxu0 0.0
    %2117 = vmatpush2.msra.mxu0 0.0
    %2118 = vmatprep.subr.mxu0 0.0
    %2119 = vmatpush2.msra.mxu0 0.0
    %2120 = vmatprep.subr.mxu0 0.0
    %2121 = vmatpush2.msra.mxu0 0.0
    %2122 = vmatprep.subr.mxu0 0.0
    %2123 = vmatpush2.msra.mxu0 0.0
    %2124 = vmatprep.subr.mxu0 0.0
    %2125 = vmatpush2.msra.mxu0 0.0
    %2126 = vmatprep.mubr.f32.mxu0 0.0
    %2127 = vmatmul.mubr.f32.gmra.mxu0 %v2058
    %v2128 = vpop.f32.mrf.mxu0
    %v2129 = vadd.f32 0.0, %v2128
    %v2130 = vpop.f32.mrf.mxu0
    %2131 = vdwg.mxu0
    %v2132 = vld [vmem:[#allocation10 + $0x60] sm:$0xff]
    %v2133 = vld [vmem:[#allocation10 + $0x68] sm:$0xff]
    %v2134 = vld [vmem:[#allocation10 + $0x70] sm:$0xff]
    %v2135 = vld [vmem:[#allocation10 + $0x78] sm:$0xff]
    %v2137 = vsel %vm1231, %v2129, 0
    %2139 = vmatprep.subr.mxu0 0.0
    %2140 = vmatpush1.msra.mxu0 0.0
    %2141 = vmatprep.subr.mxu0 0.0
    %2142 = vmatpush1.msra.mxu0 0.0
    %2143 = vmatprep.subr.mxu0 0.0
    %2144 = vmatpush1.msra.mxu0 0.0
    %2145 = vmatprep.subr.mxu0 0.0
    %2146 = vmatpush1.msra.mxu0 0.0
    %2147 = vmatprep.subr.mxu0 0.0
    %2148 = vmatpush1.msra.mxu0 0.0
    %2149 = vmatprep.subr.mxu0 0.0
    %2150 = vmatpush1.msra.mxu0 0.0
    %2151 = vmatprep.subr.mxu0 0.0
    %2152 = vmatpush1.msra.mxu0 0.0
    %2153 = vmatprep.subr.mxu0 0.0
    %2154 = vmatpush1.msra.mxu0 0.0
    %2155 = vmatprep.subr.mxu0 0.0
    %2156 = vmatpush1.msra.mxu0 0.0
    %2157 = vmatprep.subr.mxu0 0.0
    %2158 = vmatpush1.msra.mxu0 0.0
    %2159 = vmatprep.subr.mxu0 0.0
    %2160 = vmatpush1.msra.mxu0 0.0
    %2161 = vmatprep.subr.mxu0 0.0
    %2162 = vmatpush1.msra.mxu0 0.0
    %2163 = vmatprep.subr.mxu0 0.0
    %2164 = vmatpush1.msra.mxu0 %v2135
    %2165 = vmatprep.subr.mxu0 0.0
    %2166 = vmatpush1.msra.mxu0 %v2134
    %2167 = vmatprep.subr.mxu0 0.0
    %2168 = vmatpush1.msra.mxu0 %v2133
    %2169 = vmatprep.subr.mxu0 0.0
    %2170 = vmatpush1.msra.mxu0 %v2132
    %2171 = vmatprep.subr.mxu0 0.0
    %2172 = vmatpush2.msra.mxu0 0.0
    %2173 = vmatprep.subr.mxu0 0.0
    %2174 = vmatpush2.msra.mxu0 0.0
    %2175 = vmatprep.subr.mxu0 0.0
    %2176 = vmatpush2.msra.mxu0 0.0
    %2177 = vmatprep.subr.mxu0 0.0
    %2178 = vmatpush2.msra.mxu0 0.0
    %2179 = vmatprep.subr.mxu0 0.0
    %2180 = vmatpush2.msra.mxu0 0.0
    %2181 = vmatprep.subr.mxu0 0.0
    %2182 = vmatpush2.msra.mxu0 0.0
    %2183 = vmatprep.subr.mxu0 0.0
    %2184 = vmatpush2.msra.mxu0 0.0
    %2185 = vmatprep.subr.mxu0 0.0
    %2186 = vmatpush2.msra.mxu0 0.0
    %2187 = vmatprep.subr.mxu0 0.0
    %2188 = vmatpush2.msra.mxu0 0.0
    %2189 = vmatprep.subr.mxu0 0.0
    %2190 = vmatpush2.msra.mxu0 0.0
    %2191 = vmatprep.subr.mxu0 0.0
    %2192 = vmatpush2.msra.mxu0 0.0
    %2193 = vmatprep.subr.mxu0 0.0
    %2194 = vmatpush2.msra.mxu0 0.0
    %2195 = vmatprep.subr.mxu0 0.0
    %2196 = vmatpush2.msra.mxu0 0.0
    %2197 = vmatprep.subr.mxu0 0.0
    %2198 = vmatpush2.msra.mxu0 0.0
    %2199 = vmatprep.subr.mxu0 0.0
    %2200 = vmatpush2.msra.mxu0 0.0
    %2201 = vmatprep.subr.mxu0 0.0
    %2202 = vmatpush2.msra.mxu0 0.0
    %2203 = vmatprep.mubr.f32.mxu0 0.0
    %2204 = vmatmul.mubr.f32.gmra.mxu0 %v2137
    %v2205 = vpop.f32.mrf.mxu0
    %v2206 = vadd.f32 0.0, %v2205
    %v2207 = vpop.f32.mrf.mxu0
    %2208 = vdwg.mxu0
    %v2209 = vadd.f32 %v1964, %v2206
    %v2210 = vrot.slane %v1042, 4
    %v2211 = vrot.slane %v1135, 4
    %v2212 = vsel %vm1231, %v2210, 0
    %v2214 = vsel %vm1231, %v2211, 0
    %2216 = vmatprep.subr.mxu0 0.0
    %2217 = vmatpush1.xpose.msra.mxu0 0.0
    %2218 = vmatprep.subr.mxu0 0.0
    %2219 = vmatpush1.xpose.msra.mxu0 0.0
    %2220 = vmatprep.subr.mxu0 0.0
    %2221 = vmatpush1.xpose.msra.mxu0 0.0
    %2222 = vmatprep.subr.mxu0 0.0
    %2223 = vmatpush1.xpose.msra.mxu0 0.0
    %2224 = vmatprep.subr.mxu0 0.0
    %2225 = vmatpush1.xpose.msra.mxu0 0.0
    %2226 = vmatprep.subr.mxu0 0.0
    %2227 = vmatpush1.xpose.msra.mxu0 0.0
    %2228 = vmatprep.subr.mxu0 0.0
    %2229 = vmatpush1.xpose.msra.mxu0 0.0
    %2230 = vmatprep.subr.mxu0 0.0
    %2231 = vmatpush1.xpose.msra.mxu0 0.0
    %2232 = vmatprep.subr.mxu0 0.0
    %2233 = vmatpush1.xpose.msra.mxu0 0.0
    %2234 = vmatprep.subr.mxu0 0.0
    %2235 = vmatpush1.xpose.msra.mxu0 0.0
    %2236 = vmatprep.subr.mxu0 0.0
    %2237 = vmatpush1.xpose.msra.mxu0 0.0
    %2238 = vmatprep.subr.mxu0 0.0
    %2239 = vmatpush1.xpose.msra.mxu0 0.0
    %2240 = vmatprep.subr.mxu0 0.0
    %2241 = vmatpush1.xpose.msra.mxu0 0.0
    %2242 = vmatprep.subr.mxu0 0.0
    %2243 = vmatpush1.xpose.msra.mxu0 0.0
    %2244 = vmatprep.subr.mxu0 0.0
    %2245 = vmatpush1.xpose.msra.mxu0 0.0
    %2246 = vmatprep.subr.mxu0 0.0
    %2247 = vmatpush1.xpose.msra.mxu0 %v2214
    %2248 = vmatprep.subr.mxu0 0.0
    %2249 = vmatpush2.xpose.msra.mxu0 0.0
    %2250 = vmatprep.subr.mxu0 0.0
    %2251 = vmatpush2.xpose.msra.mxu0 0.0
    %2252 = vmatprep.subr.mxu0 0.0
    %2253 = vmatpush2.xpose.msra.mxu0 0.0
    %2254 = vmatprep.subr.mxu0 0.0
    %2255 = vmatpush2.xpose.msra.mxu0 0.0
    %2256 = vmatprep.subr.mxu0 0.0
    %2257 = vmatpush2.xpose.msra.mxu0 0.0
    %2258 = vmatprep.subr.mxu0 0.0
    %2259 = vmatpush2.xpose.msra.mxu0 0.0
    %2260 = vmatprep.subr.mxu0 0.0
    %2261 = vmatpush2.xpose.msra.mxu0 0.0
    %2262 = vmatprep.subr.mxu0 0.0
    %2263 = vmatpush2.xpose.msra.mxu0 0.0
    %2264 = vmatprep.subr.mxu0 0.0
    %2265 = vmatpush2.xpose.msra.mxu0 0.0
    %2266 = vmatprep.subr.mxu0 0.0
    %2267 = vmatpush2.xpose.msra.mxu0 0.0
    %2268 = vmatprep.subr.mxu0 0.0
    %2269 = vmatpush2.xpose.msra.mxu0 0.0
    %2270 = vmatprep.subr.mxu0 0.0
    %2271 = vmatpush2.xpose.msra.mxu0 0.0
    %2272 = vmatprep.subr.mxu0 0.0
    %2273 = vmatpush2.xpose.msra.mxu0 0.0
    %2274 = vmatprep.subr.mxu0 0.0
    %2275 = vmatpush2.xpose.msra.mxu0 0.0
    %2276 = vmatprep.subr.mxu0 0.0
    %2277 = vmatpush2.xpose.msra.mxu0 0.0
    %2278 = vmatprep.subr.mxu0 0.0
    %2279 = vmatpush2.xpose.msra.mxu0 0.0
    %2280 = vmatprep.mubr.f32.mxu0 0.0
    %2281 = vmatmul.mubr.f32.gmra.mxu0 %v2212
    %v2282 = vpop.f32.mrf.mxu0
    %v2283 = vadd.f32 0.0, %v2282
    %v2284 = vpop.f32.mrf.mxu0
    %2285 = vdwg.mxu0
    %v2286 = vmul.f32 %v2283, 0.17677669
    %v2287 = vsel %vm1309, %v2286, -inf
    %2288 = vmax.xlane.f32.xlu0 %v2287
    %v2289 = vpop.xlane.xlu0 %2288
    %v2290 = vsub.f32 %v2286, %v2289
    %v2291 = vmul.f32 %v2290, 1.442695
    %v2292 = vpow.pop %v2291
    %v2293 = vsel %vm1309, %v2292, 0.0
    %2294 = vadd.xlane.f32.xlu0 %v2293
    %v2295 = vpop.xlane.xlu0 %2294
    %v2296 = vrcp.pop %v2295
    %v2297 = vmul.f32 %v2292, %v2296
    %v2298 = vrot.slane %v1228, 4
    %v2300 = vsel %vm1321, %v2297, 0
    %v2302 = vsel %vm1325, %v2298, 0
    %2304 = vmatprep.subr.mxu0 0.0
    %2305 = vmatpush1.msra.mxu0 0.0
    %2306 = vmatprep.subr.mxu0 0.0
    %2307 = vmatpush1.msra.mxu0 0.0
    %2308 = vmatprep.subr.mxu0 0.0
    %2309 = vmatpush1.msra.mxu0 0.0
    %2310 = vmatprep.subr.mxu0 0.0
    %2311 = vmatpush1.msra.mxu0 0.0
    %2312 = vmatprep.subr.mxu0 0.0
    %2313 = vmatpush1.msra.mxu0 0.0
    %2314 = vmatprep.subr.mxu0 0.0
    %2315 = vmatpush1.msra.mxu0 0.0
    %2316 = vmatprep.subr.mxu0 0.0
    %2317 = vmatpush1.msra.mxu0 0.0
    %2318 = vmatprep.subr.mxu0 0.0
    %2319 = vmatpush1.msra.mxu0 0.0
    %2320 = vmatprep.subr.mxu0 0.0
    %2321 = vmatpush1.msra.mxu0 0.0
    %2322 = vmatprep.subr.mxu0 0.0
    %2323 = vmatpush1.msra.mxu0 0.0
    %2324 = vmatprep.subr.mxu0 0.0
    %2325 = vmatpush1.msra.mxu0 0.0
    %2326 = vmatprep.subr.mxu0 0.0
    %2327 = vmatpush1.msra.mxu0 0.0
    %2328 = vmatprep.subr.mxu0 0.0
    %2329 = vmatpush1.msra.mxu0 0.0
    %2330 = vmatprep.subr.mxu0 0.0
    %2331 = vmatpush1.msra.mxu0 0.0
    %2332 = vmatprep.subr.mxu0 0.0
    %2333 = vmatpush1.msra.mxu0 0.0
    %2334 = vmatprep.subr.mxu0 0.0
    %2335 = vmatpush1.msra.mxu0 %v2302
    %2336 = vmatprep.subr.mxu0 0.0
    %2337 = vmatpush2.msra.mxu0 0.0
    %2338 = vmatprep.subr.mxu0 0.0
    %2339 = vmatpush2.msra.mxu0 0.0
    %2340 = vmatprep.subr.mxu0 0.0
    %2341 = vmatpush2.msra.mxu0 0.0
    %2342 = vmatprep.subr.mxu0 0.0
    %2343 = vmatpush2.msra.mxu0 0.0
    %2344 = vmatprep.subr.mxu0 0.0
    %2345 = vmatpush2.msra.mxu0 0.0
    %2346 = vmatprep.subr.mxu0 0.0
    %2347 = vmatpush2.msra.mxu0 0.0
    %2348 = vmatprep.subr.mxu0 0.0
    %2349 = vmatpush2.msra.mxu0 0.0
    %2350 = vmatprep.subr.mxu0 0.0
    %2351 = vmatpush2.msra.mxu0 0.0
    %2352 = vmatprep.subr.mxu0 0.0
    %2353 = vmatpush2.msra.mxu0 0.0
    %2354 = vmatprep.subr.mxu0 0.0
    %2355 = vmatpush2.msra.mxu0 0.0
    %2356 = vmatprep.subr.mxu0 0.0
    %2357 = vmatpush2.msra.mxu0 0.0
    %2358 = vmatprep.subr.mxu0 0.0
    %2359 = vmatpush2.msra.mxu0 0.0
    %2360 = vmatprep.subr.mxu0 0.0
    %2361 = vmatpush2.msra.mxu0 0.0
    %2362 = vmatprep.subr.mxu0 0.0
    %2363 = vmatpush2.msra.mxu0 0.0
    %2364 = vmatprep.subr.mxu0 0.0
    %2365 = vmatpush2.msra.mxu0 0.0
    %2366 = vmatprep.subr.mxu0 0.0
    %2367 = vmatpush2.msra.mxu0 0.0
    %2368 = vmatprep.mubr.f32.mxu0 0.0
    %2369 = vmatmul.mubr.f32.gmra.mxu0 %v2300
    %v2370 = vpop.f32.mrf.mxu0
    %v2371 = vadd.f32 0.0, %v2370
    %v2372 = vpop.f32.mrf.mxu0
    %2373 = vdwg.mxu0
    %2374 = vrot.lane.b32.xlu0 %v2210, 96
    %v2375 = vpop.permute.xlu0 %2374
    %2376 = vrot.lane.b32.xlu0 %v2211, 96
    %v2377 = vpop.permute.xlu0 %2376
    %v2378 = vsel %vm1231, %v2375, 0
    %v2380 = vsel %vm1231, %v2377, 0
    %2382 = vmatprep.subr.mxu0 0.0
    %2383 = vmatpush1.xpose.msra.mxu0 0.0
    %2384 = vmatprep.subr.mxu0 0.0
    %2385 = vmatpush1.xpose.msra.mxu0 0.0
    %2386 = vmatprep.subr.mxu0 0.0
    %2387 = vmatpush1.xpose.msra.mxu0 0.0
    %2388 = vmatprep.subr.mxu0 0.0
    %2389 = vmatpush1.xpose.msra.mxu0 0.0
    %2390 = vmatprep.subr.mxu0 0.0
    %2391 = vmatpush1.xpose.msra.mxu0 0.0
    %2392 = vmatprep.subr.mxu0 0.0
    %2393 = vmatpush1.xpose.msra.mxu0 0.0
    %2394 = vmatprep.subr.mxu0 0.0
    %2395 = vmatpush1.xpose.msra.mxu0 0.0
    %2396 = vmatprep.subr.mxu0 0.0
    %2397 = vmatpush1.xpose.msra.mxu0 0.0
    %2398 = vmatprep.subr.mxu0 0.0
    %2399 = vmatpush1.xpose.msra.mxu0 0.0
    %2400 = vmatprep.subr.mxu0 0.0
    %2401 = vmatpush1.xpose.msra.mxu0 0.0
    %2402 = vmatprep.subr.mxu0 0.0
    %2403 = vmatpush1.xpose.msra.mxu0 0.0
    %2404 = vmatprep.subr.mxu0 0.0
    %2405 = vmatpush1.xpose.msra.mxu0 0.0
    %2406 = vmatprep.subr.mxu0 0.0
    %2407 = vmatpush1.xpose.msra.mxu0 0.0
    %2408 = vmatprep.subr.mxu0 0.0
    %2409 = vmatpush1.xpose.msra.mxu0 0.0
    %2410 = vmatprep.subr.mxu0 0.0
    %2411 = vmatpush1.xpose.msra.mxu0 0.0
    %2412 = vmatprep.subr.mxu0 0.0
    %2413 = vmatpush1.xpose.msra.mxu0 %v2380
    %2414 = vmatprep.subr.mxu0 0.0
    %2415 = vmatpush2.xpose.msra.mxu0 0.0
    %2416 = vmatprep.subr.mxu0 0.0
    %2417 = vmatpush2.xpose.msra.mxu0 0.0
    %2418 = vmatprep.subr.mxu0 0.0
    %2419 = vmatpush2.xpose.msra.mxu0 0.0
    %2420 = vmatprep.subr.mxu0 0.0
    %2421 = vmatpush2.xpose.msra.mxu0 0.0
    %2422 = vmatprep.subr.mxu0 0.0
    %2423 = vmatpush2.xpose.msra.mxu0 0.0
    %2424 = vmatprep.subr.mxu0 0.0
    %2425 = vmatpush2.xpose.msra.mxu0 0.0
    %2426 = vmatprep.subr.mxu0 0.0
    %2427 = vmatpush2.xpose.msra.mxu0 0.0
    %2428 = vmatprep.subr.mxu0 0.0
    %2429 = vmatpush2.xpose.msra.mxu0 0.0
    %2430 = vmatprep.subr.mxu0 0.0
    %2431 = vmatpush2.xpose.msra.mxu0 0.0
    %2432 = vmatprep.subr.mxu0 0.0
    %2433 = vmatpush2.xpose.msra.mxu0 0.0
    %2434 = vmatprep.subr.mxu0 0.0
    %2435 = vmatpush2.xpose.msra.mxu0 0.0
    %2436 = vmatprep.subr.mxu0 0.0
    %2437 = vmatpush2.xpose.msra.mxu0 0.0
    %2438 = vmatprep.subr.mxu0 0.0
    %2439 = vmatpush2.xpose.msra.mxu0 0.0
    %2440 = vmatprep.subr.mxu0 0.0
    %2441 = vmatpush2.xpose.msra.mxu0 0.0
    %2442 = vmatprep.subr.mxu0 0.0
    %2443 = vmatpush2.xpose.msra.mxu0 0.0
    %2444 = vmatprep.subr.mxu0 0.0
    %2445 = vmatpush2.xpose.msra.mxu0 0.0
    %2446 = vmatprep.mubr.f32.mxu0 0.0
    %2447 = vmatmul.mubr.f32.gmra.mxu0 %v2378
    %v2448 = vpop.f32.mrf.mxu0
    %v2449 = vadd.f32 0.0, %v2448
    %v2450 = vpop.f32.mrf.mxu0
    %2451 = vdwg.mxu0
    %v2452 = vmul.f32 %v2449, 0.17677669
    %v2453 = vsel %vm1309, %v2452, -inf
    %2454 = vmax.xlane.f32.xlu0 %v2453
    %v2455 = vpop.xlane.xlu0 %2454
    %v2456 = vsub.f32 %v2452, %v2455
    %v2457 = vmul.f32 %v2456, 1.442695
    %v2458 = vpow.pop %v2457
    %v2459 = vsel %vm1309, %v2458, 0.0
    %2460 = vadd.xlane.f32.xlu0 %v2459
    %v2461 = vpop.xlane.xlu0 %2460
    %v2462 = vrcp.pop %v2461
    %v2463 = vmul.f32 %v2458, %v2462
    %2464 = vrot.lane.b32.xlu0 %v2298, 96
    %v2465 = vpop.permute.xlu0 %2464
    %v2467 = vsel %vm1321, %v2463, 0
    %v2469 = vsel %vm1325, %v2465, 0
    %2471 = vmatprep.subr.mxu0 0.0
    %2472 = vmatpush1.msra.mxu0 0.0
    %2473 = vmatprep.subr.mxu0 0.0
    %2474 = vmatpush1.msra.mxu0 0.0
    %2475 = vmatprep.subr.mxu0 0.0
    %2476 = vmatpush1.msra.mxu0 0.0
    %2477 = vmatprep.subr.mxu0 0.0
    %2478 = vmatpush1.msra.mxu0 0.0
    %2479 = vmatprep.subr.mxu0 0.0
    %2480 = vmatpush1.msra.mxu0 0.0
    %2481 = vmatprep.subr.mxu0 0.0
    %2482 = vmatpush1.msra.mxu0 0.0
    %2483 = vmatprep.subr.mxu0 0.0
    %2484 = vmatpush1.msra.mxu0 0.0
    %2485 = vmatprep.subr.mxu0 0.0
    %2486 = vmatpush1.msra.mxu0 0.0
    %2487 = vmatprep.subr.mxu0 0.0
    %2488 = vmatpush1.msra.mxu0 0.0
    %2489 = vmatprep.subr.mxu0 0.0
    %2490 = vmatpush1.msra.mxu0 0.0
    %2491 = vmatprep.subr.mxu0 0.0
    %2492 = vmatpush1.msra.mxu0 0.0
    %2493 = vmatprep.subr.mxu0 0.0
    %2494 = vmatpush1.msra.mxu0 0.0
    %2495 = vmatprep.subr.mxu0 0.0
    %2496 = vmatpush1.msra.mxu0 0.0
    %2497 = vmatprep.subr.mxu0 0.0
    %2498 = vmatpush1.msra.mxu0 0.0
    %2499 = vmatprep.subr.mxu0 0.0
    %2500 = vmatpush1.msra.mxu0 0.0
    %2501 = vmatprep.subr.mxu0 0.0
    %2502 = vmatpush1.msra.mxu0 %v2469
    %2503 = vmatprep.subr.mxu0 0.0
    %2504 = vmatpush2.msra.mxu0 0.0
    %2505 = vmatprep.subr.mxu0 0.0
    %2506 = vmatpush2.msra.mxu0 0.0
    %2507 = vmatprep.subr.mxu0 0.0
    %2508 = vmatpush2.msra.mxu0 0.0
    %2509 = vmatprep.subr.mxu0 0.0
    %2510 = vmatpush2.msra.mxu0 0.0
    %2511 = vmatprep.subr.mxu0 0.0
    %2512 = vmatpush2.msra.mxu0 0.0
    %2513 = vmatprep.subr.mxu0 0.0
    %2514 = vmatpush2.msra.mxu0 0.0
    %2515 = vmatprep.subr.mxu0 0.0
    %2516 = vmatpush2.msra.mxu0 0.0
    %2517 = vmatprep.subr.mxu0 0.0
    %2518 = vmatpush2.msra.mxu0 0.0
    %2519 = vmatprep.subr.mxu0 0.0
    %2520 = vmatpush2.msra.mxu0 0.0
    %2521 = vmatprep.subr.mxu0 0.0
    %2522 = vmatpush2.msra.mxu0 0.0
    %2523 = vmatprep.subr.mxu0 0.0
    %2524 = vmatpush2.msra.mxu0 0.0
    %2525 = vmatprep.subr.mxu0 0.0
    %2526 = vmatpush2.msra.mxu0 0.0
    %2527 = vmatprep.subr.mxu0 0.0
    %2528 = vmatpush2.msra.mxu0 0.0
    %2529 = vmatprep.subr.mxu0 0.0
    %2530 = vmatpush2.msra.mxu0 0.0
    %2531 = vmatprep.subr.mxu0 0.0
    %2532 = vmatpush2.msra.mxu0 0.0
    %2533 = vmatprep.subr.mxu0 0.0
    %2534 = vmatpush2.msra.mxu0 0.0
    %2535 = vmatprep.mubr.f32.mxu0 0.0
    %2536 = vmatmul.mubr.f32.gmra.mxu0 %v2467
    %v2537 = vpop.f32.mrf.mxu0
    %v2538 = vadd.f32 0.0, %v2537
    %v2539 = vpop.f32.mrf.mxu0
    %2540 = vdwg.mxu0
    %v2542 = vsel %vm1231, %v2538, 0
    %2544 = vmatprep.subr.mxu0 0.0
    %2545 = vmatpush1.msra.mxu0 0.0
    %2546 = vmatprep.subr.mxu0 0.0
    %2547 = vmatpush1.msra.mxu0 0.0
    %2548 = vmatprep.subr.mxu0 0.0
    %2549 = vmatpush1.msra.mxu0 0.0
    %2550 = vmatprep.subr.mxu0 0.0
    %2551 = vmatpush1.msra.mxu0 0.0
    %2552 = vmatprep.subr.mxu0 0.0
    %2553 = vmatpush1.msra.mxu0 0.0
    %2554 = vmatprep.subr.mxu0 0.0
    %2555 = vmatpush1.msra.mxu0 0.0
    %2556 = vmatprep.subr.mxu0 0.0
    %2557 = vmatpush1.msra.mxu0 0.0
    %2558 = vmatprep.subr.mxu0 0.0
    %2559 = vmatpush1.msra.mxu0 0.0
    %2560 = vmatprep.subr.mxu0 0.0
    %2561 = vmatpush1.msra.mxu0 0.0
    %2562 = vmatprep.subr.mxu0 0.0
    %2563 = vmatpush1.msra.mxu0 0.0
    %2564 = vmatprep.subr.mxu0 0.0
    %2565 = vmatpush1.msra.mxu0 0.0
    %2566 = vmatprep.subr.mxu0 0.0
    %2567 = vmatpush1.msra.mxu0 0.0
    %2568 = vmatprep.subr.mxu0 0.0
    %2569 = vmatpush1.msra.mxu0 %v1573
    %2570 = vmatprep.subr.mxu0 0.0
    %2571 = vmatpush1.msra.mxu0 %v1572
    %2572 = vmatprep.subr.mxu0 0.0
    %2573 = vmatpush1.msra.mxu0 %v1571
    %2574 = vmatprep.subr.mxu0 0.0
    %2575 = vmatpush1.msra.mxu0 %v1570
    %2576 = vmatprep.subr.mxu0 0.0
    %2577 = vmatpush2.msra.mxu0 0.0
    %2578 = vmatprep.subr.mxu0 0.0
    %2579 = vmatpush2.msra.mxu0 0.0
    %2580 = vmatprep.subr.mxu0 0.0
    %2581 = vmatpush2.msra.mxu0 0.0
    %2582 = vmatprep.subr.mxu0 0.0
    %2583 = vmatpush2.msra.mxu0 0.0
    %2584 = vmatprep.subr.mxu0 0.0
    %2585 = vmatpush2.msra.mxu0 0.0
    %2586 = vmatprep.subr.mxu0 0.0
    %2587 = vmatpush2.msra.mxu0 0.0
    %2588 = vmatprep.subr.mxu0 0.0
    %2589 = vmatpush2.msra.mxu0 0.0
    %2590 = vmatprep.subr.mxu0 0.0
    %2591 = vmatpush2.msra.mxu0 0.0
    %2592 = vmatprep.subr.mxu0 0.0
    %2593 = vmatpush2.msra.mxu0 0.0
    %2594 = vmatprep.subr.mxu0 0.0
    %2595 = vmatpush2.msra.mxu0 0.0
    %2596 = vmatprep.subr.mxu0 0.0
    %2597 = vmatpush2.msra.mxu0 0.0
    %2598 = vmatprep.subr.mxu0 0.0
    %2599 = vmatpush2.msra.mxu0 0.0
    %2600 = vmatprep.subr.mxu0 0.0
    %2601 = vmatpush2.msra.mxu0 0.0
    %2602 = vmatprep.subr.mxu0 0.0
    %2603 = vmatpush2.msra.mxu0 0.0
    %2604 = vmatprep.subr.mxu0 0.0
    %2605 = vmatpush2.msra.mxu0 0.0
    %2606 = vmatprep.subr.mxu0 0.0
    %2607 = vmatpush2.msra.mxu0 0.0
    %2608 = vmatprep.mubr.f32.mxu0 0.0
    %2609 = vmatmul.mubr.f32.gmra.mxu0 %v2542
    %v2610 = vpop.f32.mrf.mxu0
    %v2611 = vadd.f32 0.0, %v2610
    %v2612 = vpop.f32.mrf.mxu0
    %2613 = vdwg.mxu0
    %v2615 = vsel %vm1231, %v2371, 0
    %2617 = vmatprep.subr.mxu0 0.0
    %2618 = vmatpush1.msra.mxu0 0.0
    %2619 = vmatprep.subr.mxu0 0.0
    %2620 = vmatpush1.msra.mxu0 0.0
    %2621 = vmatprep.subr.mxu0 0.0
    %2622 = vmatpush1.msra.mxu0 0.0
    %2623 = vmatprep.subr.mxu0 0.0
    %2624 = vmatpush1.msra.mxu0 0.0
    %2625 = vmatprep.subr.mxu0 0.0
    %2626 = vmatpush1.msra.mxu0 0.0
    %2627 = vmatprep.subr.mxu0 0.0
    %2628 = vmatpush1.msra.mxu0 0.0
    %2629 = vmatprep.subr.mxu0 0.0
    %2630 = vmatpush1.msra.mxu0 0.0
    %2631 = vmatprep.subr.mxu0 0.0
    %2632 = vmatpush1.msra.mxu0 0.0
    %2633 = vmatprep.subr.mxu0 0.0
    %2634 = vmatpush1.msra.mxu0 0.0
    %2635 = vmatprep.subr.mxu0 0.0
    %2636 = vmatpush1.msra.mxu0 0.0
    %2637 = vmatprep.subr.mxu0 0.0
    %2638 = vmatpush1.msra.mxu0 0.0
    %2639 = vmatprep.subr.mxu0 0.0
    %2640 = vmatpush1.msra.mxu0 0.0
    %2641 = vmatprep.subr.mxu0 0.0
    %2642 = vmatpush1.msra.mxu0 %v1402
    %2643 = vmatprep.subr.mxu0 0.0
    %2644 = vmatpush1.msra.mxu0 %v1401
    %2645 = vmatprep.subr.mxu0 0.0
    %2646 = vmatpush1.msra.mxu0 %v1400
    %2647 = vmatprep.subr.mxu0 0.0
    %2648 = vmatpush1.msra.mxu0 %v1399
    %2649 = vmatprep.subr.mxu0 0.0
    %2650 = vmatpush2.msra.mxu0 0.0
    %2651 = vmatprep.subr.mxu0 0.0
    %2652 = vmatpush2.msra.mxu0 0.0
    %2653 = vmatprep.subr.mxu0 0.0
    %2654 = vmatpush2.msra.mxu0 0.0
    %2655 = vmatprep.subr.mxu0 0.0
    %2656 = vmatpush2.msra.mxu0 0.0
    %2657 = vmatprep.subr.mxu0 0.0
    %2658 = vmatpush2.msra.mxu0 0.0
    %2659 = vmatprep.subr.mxu0 0.0
    %2660 = vmatpush2.msra.mxu0 0.0
    %2661 = vmatprep.subr.mxu0 0.0
    %2662 = vmatpush2.msra.mxu0 0.0
    %2663 = vmatprep.subr.mxu0 0.0
    %2664 = vmatpush2.msra.mxu0 0.0
    %2665 = vmatprep.subr.mxu0 0.0
    %2666 = vmatpush2.msra.mxu0 0.0
    %2667 = vmatprep.subr.mxu0 0.0
    %2668 = vmatpush2.msra.mxu0 0.0
    %2669 = vmatprep.subr.mxu0 0.0
    %2670 = vmatpush2.msra.mxu0 0.0
    %2671 = vmatprep.subr.mxu0 0.0
    %2672 = vmatpush2.msra.mxu0 0.0
    %2673 = vmatprep.subr.mxu0 0.0
    %2674 = vmatpush2.msra.mxu0 0.0
    %2675 = vmatprep.subr.mxu0 0.0
    %2676 = vmatpush2.msra.mxu0 0.0
    %2677 = vmatprep.subr.mxu0 0.0
    %2678 = vmatpush2.msra.mxu0 0.0
    %2679 = vmatprep.subr.mxu0 0.0
    %2680 = vmatpush2.msra.mxu0 0.0
    %2681 = vmatprep.mubr.f32.mxu0 0.0
    %2682 = vmatmul.mubr.f32.gmra.mxu0 %v2615
    %v2683 = vpop.f32.mrf.mxu0
    %v2684 = vadd.f32 %v2611, %v2683
    %v2685 = vpop.f32.mrf.mxu0
    %2686 = vdwg.mxu0
    %2687 = vrot.lane.b32.xlu0 %v2210, 64
    %v2688 = vpop.permute.xlu0 %2687
    %2689 = vrot.lane.b32.xlu0 %v2211, 64
    %v2690 = vpop.permute.xlu0 %2689
    %v2691 = vsel %vm1231, %v2688, 0
    %v2693 = vsel %vm1231, %v2690, 0
    %2695 = vmatprep.subr.mxu0 0.0
    %2696 = vmatpush1.xpose.msra.mxu0 0.0
    %2697 = vmatprep.subr.mxu0 0.0
    %2698 = vmatpush1.xpose.msra.mxu0 0.0
    %2699 = vmatprep.subr.mxu0 0.0
    %2700 = vmatpush1.xpose.msra.mxu0 0.0
    %2701 = vmatprep.subr.mxu0 0.0
    %2702 = vmatpush1.xpose.msra.mxu0 0.0
    %2703 = vmatprep.subr.mxu0 0.0
    %2704 = vmatpush1.xpose.msra.mxu0 0.0
    %2705 = vmatprep.subr.mxu0 0.0
    %2706 = vmatpush1.xpose.msra.mxu0 0.0
    %2707 = vmatprep.subr.mxu0 0.0
    %2708 = vmatpush1.xpose.msra.mxu0 0.0
    %2709 = vmatprep.subr.mxu0 0.0
    %2710 = vmatpush1.xpose.msra.mxu0 0.0
    %2711 = vmatprep.subr.mxu0 0.0
    %2712 = vmatpush1.xpose.msra.mxu0 0.0
    %2713 = vmatprep.subr.mxu0 0.0
    %2714 = vmatpush1.xpose.msra.mxu0 0.0
    %2715 = vmatprep.subr.mxu0 0.0
    %2716 = vmatpush1.xpose.msra.mxu0 0.0
    %2717 = vmatprep.subr.mxu0 0.0
    %2718 = vmatpush1.xpose.msra.mxu0 0.0
    %2719 = vmatprep.subr.mxu0 0.0
    %2720 = vmatpush1.xpose.msra.mxu0 0.0
    %2721 = vmatprep.subr.mxu0 0.0
    %2722 = vmatpush1.xpose.msra.mxu0 0.0
    %2723 = vmatprep.subr.mxu0 0.0
    %2724 = vmatpush1.xpose.msra.mxu0 0.0
    %2725 = vmatprep.subr.mxu0 0.0
    %2726 = vmatpush1.xpose.msra.mxu0 %v2693
    %2727 = vmatprep.subr.mxu0 0.0
    %2728 = vmatpush2.xpose.msra.mxu0 0.0
    %2729 = vmatprep.subr.mxu0 0.0
    %2730 = vmatpush2.xpose.msra.mxu0 0.0
    %2731 = vmatprep.subr.mxu0 0.0
    %2732 = vmatpush2.xpose.msra.mxu0 0.0
    %2733 = vmatprep.subr.mxu0 0.0
    %2734 = vmatpush2.xpose.msra.mxu0 0.0
    %2735 = vmatprep.subr.mxu0 0.0
    %2736 = vmatpush2.xpose.msra.mxu0 0.0
    %2737 = vmatprep.subr.mxu0 0.0
    %2738 = vmatpush2.xpose.msra.mxu0 0.0
    %2739 = vmatprep.subr.mxu0 0.0
    %2740 = vmatpush2.xpose.msra.mxu0 0.0
    %2741 = vmatprep.subr.mxu0 0.0
    %2742 = vmatpush2.xpose.msra.mxu0 0.0
    %2743 = vmatprep.subr.mxu0 0.0
    %2744 = vmatpush2.xpose.msra.mxu0 0.0
    %2745 = vmatprep.subr.mxu0 0.0
    %2746 = vmatpush2.xpose.msra.mxu0 0.0
    %2747 = vmatprep.subr.mxu0 0.0
    %2748 = vmatpush2.xpose.msra.mxu0 0.0
    %2749 = vmatprep.subr.mxu0 0.0
    %2750 = vmatpush2.xpose.msra.mxu0 0.0
    %2751 = vmatprep.subr.mxu0 0.0
    %2752 = vmatpush2.xpose.msra.mxu0 0.0
    %2753 = vmatprep.subr.mxu0 0.0
    %2754 = vmatpush2.xpose.msra.mxu0 0.0
    %2755 = vmatprep.subr.mxu0 0.0
    %2756 = vmatpush2.xpose.msra.mxu0 0.0
    %2757 = vmatprep.subr.mxu0 0.0
    %2758 = vmatpush2.xpose.msra.mxu0 0.0
    %2759 = vmatprep.mubr.f32.mxu0 0.0
    %2760 = vmatmul.mubr.f32.gmra.mxu0 %v2691
    %v2761 = vpop.f32.mrf.mxu0
    %v2762 = vadd.f32 0.0, %v2761
    %v2763 = vpop.f32.mrf.mxu0
    %2764 = vdwg.mxu0
    %v2765 = vmul.f32 %v2762, 0.17677669
    %v2766 = vsel %vm1309, %v2765, -inf
    %2767 = vmax.xlane.f32.xlu0 %v2766
    %v2768 = vpop.xlane.xlu0 %2767
    %v2769 = vsub.f32 %v2765, %v2768
    %v2770 = vmul.f32 %v2769, 1.442695
    %v2771 = vpow.pop %v2770
    %v2772 = vsel %vm1309, %v2771, 0.0
    %2773 = vadd.xlane.f32.xlu0 %v2772
    %v2774 = vpop.xlane.xlu0 %2773
    %v2775 = vrcp.pop %v2774
    %v2776 = vmul.f32 %v2771, %v2775
    %2777 = vrot.lane.b32.xlu0 %v2298, 64
    %v2778 = vpop.permute.xlu0 %2777
    %v2780 = vsel %vm1321, %v2776, 0
    %v2782 = vsel %vm1325, %v2778, 0
    %2784 = vmatprep.subr.mxu0 0.0
    %2785 = vmatpush1.msra.mxu0 0.0
    %2786 = vmatprep.subr.mxu0 0.0
    %2787 = vmatpush1.msra.mxu0 0.0
    %2788 = vmatprep.subr.mxu0 0.0
    %2789 = vmatpush1.msra.mxu0 0.0
    %2790 = vmatprep.subr.mxu0 0.0
    %2791 = vmatpush1.msra.mxu0 0.0
    %2792 = vmatprep.subr.mxu0 0.0
    %2793 = vmatpush1.msra.mxu0 0.0
    %2794 = vmatprep.subr.mxu0 0.0
    %2795 = vmatpush1.msra.mxu0 0.0
    %2796 = vmatprep.subr.mxu0 0.0
    %2797 = vmatpush1.msra.mxu0 0.0
    %2798 = vmatprep.subr.mxu0 0.0
    %2799 = vmatpush1.msra.mxu0 0.0
    %2800 = vmatprep.subr.mxu0 0.0
    %2801 = vmatpush1.msra.mxu0 0.0
    %2802 = vmatprep.subr.mxu0 0.0
    %2803 = vmatpush1.msra.mxu0 0.0
    %2804 = vmatprep.subr.mxu0 0.0
    %2805 = vmatpush1.msra.mxu0 0.0
    %2806 = vmatprep.subr.mxu0 0.0
    %2807 = vmatpush1.msra.mxu0 0.0
    %2808 = vmatprep.subr.mxu0 0.0
    %2809 = vmatpush1.msra.mxu0 0.0
    %2810 = vmatprep.subr.mxu0 0.0
    %2811 = vmatpush1.msra.mxu0 0.0
    %2812 = vmatprep.subr.mxu0 0.0
    %2813 = vmatpush1.msra.mxu0 0.0
    %2814 = vmatprep.subr.mxu0 0.0
    %2815 = vmatpush1.msra.mxu0 %v2782
    %2816 = vmatprep.subr.mxu0 0.0
    %2817 = vmatpush2.msra.mxu0 0.0
    %2818 = vmatprep.subr.mxu0 0.0
    %2819 = vmatpush2.msra.mxu0 0.0
    %2820 = vmatprep.subr.mxu0 0.0
    %2821 = vmatpush2.msra.mxu0 0.0
    %2822 = vmatprep.subr.mxu0 0.0
    %2823 = vmatpush2.msra.mxu0 0.0
    %2824 = vmatprep.subr.mxu0 0.0
    %2825 = vmatpush2.msra.mxu0 0.0
    %2826 = vmatprep.subr.mxu0 0.0
    %2827 = vmatpush2.msra.mxu0 0.0
    %2828 = vmatprep.subr.mxu0 0.0
    %2829 = vmatpush2.msra.mxu0 0.0
    %2830 = vmatprep.subr.mxu0 0.0
    %2831 = vmatpush2.msra.mxu0 0.0
    %2832 = vmatprep.subr.mxu0 0.0
    %2833 = vmatpush2.msra.mxu0 0.0
    %2834 = vmatprep.subr.mxu0 0.0
    %2835 = vmatpush2.msra.mxu0 0.0
    %2836 = vmatprep.subr.mxu0 0.0
    %2837 = vmatpush2.msra.mxu0 0.0
    %2838 = vmatprep.subr.mxu0 0.0
    %2839 = vmatpush2.msra.mxu0 0.0
    %2840 = vmatprep.subr.mxu0 0.0
    %2841 = vmatpush2.msra.mxu0 0.0
    %2842 = vmatprep.subr.mxu0 0.0
    %2843 = vmatpush2.msra.mxu0 0.0
    %2844 = vmatprep.subr.mxu0 0.0
    %2845 = vmatpush2.msra.mxu0 0.0
    %2846 = vmatprep.subr.mxu0 0.0
    %2847 = vmatpush2.msra.mxu0 0.0
    %2848 = vmatprep.mubr.f32.mxu0 0.0
    %2849 = vmatmul.mubr.f32.gmra.mxu0 %v2780
    %v2850 = vpop.f32.mrf.mxu0
    %v2851 = vadd.f32 0.0, %v2850
    %v2852 = vpop.f32.mrf.mxu0
    %2853 = vdwg.mxu0
    %v2855 = vsel %vm1231, %v2851, 0
    %2857 = vmatprep.subr.mxu0 0.0
    %2858 = vmatpush1.msra.mxu0 0.0
    %2859 = vmatprep.subr.mxu0 0.0
    %2860 = vmatpush1.msra.mxu0 0.0
    %2861 = vmatprep.subr.mxu0 0.0
    %2862 = vmatpush1.msra.mxu0 0.0
    %2863 = vmatprep.subr.mxu0 0.0
    %2864 = vmatpush1.msra.mxu0 0.0
    %2865 = vmatprep.subr.mxu0 0.0
    %2866 = vmatpush1.msra.mxu0 0.0
    %2867 = vmatprep.subr.mxu0 0.0
    %2868 = vmatpush1.msra.mxu0 0.0
    %2869 = vmatprep.subr.mxu0 0.0
    %2870 = vmatpush1.msra.mxu0 0.0
    %2871 = vmatprep.subr.mxu0 0.0
    %2872 = vmatpush1.msra.mxu0 0.0
    %2873 = vmatprep.subr.mxu0 0.0
    %2874 = vmatpush1.msra.mxu0 0.0
    %2875 = vmatprep.subr.mxu0 0.0
    %2876 = vmatpush1.msra.mxu0 0.0
    %2877 = vmatprep.subr.mxu0 0.0
    %2878 = vmatpush1.msra.mxu0 0.0
    %2879 = vmatprep.subr.mxu0 0.0
    %2880 = vmatpush1.msra.mxu0 0.0
    %2881 = vmatprep.subr.mxu0 0.0
    %2882 = vmatpush1.msra.mxu0 %v1890
    %2883 = vmatprep.subr.mxu0 0.0
    %2884 = vmatpush1.msra.mxu0 %v1889
    %2885 = vmatprep.subr.mxu0 0.0
    %2886 = vmatpush1.msra.mxu0 %v1888
    %2887 = vmatprep.subr.mxu0 0.0
    %2888 = vmatpush1.msra.mxu0 %v1887
    %2889 = vmatprep.subr.mxu0 0.0
    %2890 = vmatpush2.msra.mxu0 0.0
    %2891 = vmatprep.subr.mxu0 0.0
    %2892 = vmatpush2.msra.mxu0 0.0
    %2893 = vmatprep.subr.mxu0 0.0
    %2894 = vmatpush2.msra.mxu0 0.0
    %2895 = vmatprep.subr.mxu0 0.0
    %2896 = vmatpush2.msra.mxu0 0.0
    %2897 = vmatprep.subr.mxu0 0.0
    %2898 = vmatpush2.msra.mxu0 0.0
    %2899 = vmatprep.subr.mxu0 0.0
    %2900 = vmatpush2.msra.mxu0 0.0
    %2901 = vmatprep.subr.mxu0 0.0
    %2902 = vmatpush2.msra.mxu0 0.0
    %2903 = vmatprep.subr.mxu0 0.0
    %2904 = vmatpush2.msra.mxu0 0.0
    %2905 = vmatprep.subr.mxu0 0.0
    %2906 = vmatpush2.msra.mxu0 0.0
    %2907 = vmatprep.subr.mxu0 0.0
    %2908 = vmatpush2.msra.mxu0 0.0
    %2909 = vmatprep.subr.mxu0 0.0
    %2910 = vmatpush2.msra.mxu0 0.0
    %2911 = vmatprep.subr.mxu0 0.0
    %2912 = vmatpush2.msra.mxu0 0.0
    %2913 = vmatprep.subr.mxu0 0.0
    %2914 = vmatpush2.msra.mxu0 0.0
    %2915 = vmatprep.subr.mxu0 0.0
    %2916 = vmatpush2.msra.mxu0 0.0
    %2917 = vmatprep.subr.mxu0 0.0
    %2918 = vmatpush2.msra.mxu0 0.0
    %2919 = vmatprep.subr.mxu0 0.0
    %2920 = vmatpush2.msra.mxu0 0.0
    %2921 = vmatprep.mubr.f32.mxu0 0.0
    %2922 = vmatmul.mubr.f32.gmra.mxu0 %v2855
    %v2923 = vpop.f32.mrf.mxu0
    %v2924 = vadd.f32 0.0, %v2923
    %v2925 = vpop.f32.mrf.mxu0
    %2926 = vdwg.mxu0
    %v2927 = vadd.f32 %v2684, %v2924
    %2928 = vrot.lane.b32.xlu0 %v2210, 32
    %v2929 = vpop.permute.xlu0 %2928
    %2930 = vrot.lane.b32.xlu0 %v2211, 32
    %v2931 = vpop.permute.xlu0 %2930
    %v2932 = vsel %vm1231, %v2929, 0
    %v2934 = vsel %vm1231, %v2931, 0
    %2936 = vmatprep.subr.mxu0 0.0
    %2937 = vmatpush1.xpose.msra.mxu0 0.0
    %2938 = vmatprep.subr.mxu0 0.0
    %2939 = vmatpush1.xpose.msra.mxu0 0.0
    %2940 = vmatprep.subr.mxu0 0.0
    %2941 = vmatpush1.xpose.msra.mxu0 0.0
    %2942 = vmatprep.subr.mxu0 0.0
    %2943 = vmatpush1.xpose.msra.mxu0 0.0
    %2944 = vmatprep.subr.mxu0 0.0
    %2945 = vmatpush1.xpose.msra.mxu0 0.0
    %2946 = vmatprep.subr.mxu0 0.0
    %2947 = vmatpush1.xpose.msra.mxu0 0.0
    %2948 = vmatprep.subr.mxu0 0.0
    %2949 = vmatpush1.xpose.msra.mxu0 0.0
    %2950 = vmatprep.subr.mxu0 0.0
    %2951 = vmatpush1.xpose.msra.mxu0 0.0
    %2952 = vmatprep.subr.mxu0 0.0
    %2953 = vmatpush1.xpose.msra.mxu0 0.0
    %2954 = vmatprep.subr.mxu0 0.0
    %2955 = vmatpush1.xpose.msra.mxu0 0.0
    %2956 = vmatprep.subr.mxu0 0.0
    %2957 = vmatpush1.xpose.msra.mxu0 0.0
    %2958 = vmatprep.subr.mxu0 0.0
    %2959 = vmatpush1.xpose.msra.mxu0 0.0
    %2960 = vmatprep.subr.mxu0 0.0
    %2961 = vmatpush1.xpose.msra.mxu0 0.0
    %2962 = vmatprep.subr.mxu0 0.0
    %2963 = vmatpush1.xpose.msra.mxu0 0.0
    %2964 = vmatprep.subr.mxu0 0.0
    %2965 = vmatpush1.xpose.msra.mxu0 0.0
    %2966 = vmatprep.subr.mxu0 0.0
    %2967 = vmatpush1.xpose.msra.mxu0 %v2934
    %2968 = vmatprep.subr.mxu0 0.0
    %2969 = vmatpush2.xpose.msra.mxu0 0.0
    %2970 = vmatprep.subr.mxu0 0.0
    %2971 = vmatpush2.xpose.msra.mxu0 0.0
    %2972 = vmatprep.subr.mxu0 0.0
    %2973 = vmatpush2.xpose.msra.mxu0 0.0
    %2974 = vmatprep.subr.mxu0 0.0
    %2975 = vmatpush2.xpose.msra.mxu0 0.0
    %2976 = vmatprep.subr.mxu0 0.0
    %2977 = vmatpush2.xpose.msra.mxu0 0.0
    %2978 = vmatprep.subr.mxu0 0.0
    %2979 = vmatpush2.xpose.msra.mxu0 0.0
    %2980 = vmatprep.subr.mxu0 0.0
    %2981 = vmatpush2.xpose.msra.mxu0 0.0
    %2982 = vmatprep.subr.mxu0 0.0
    %2983 = vmatpush2.xpose.msra.mxu0 0.0
    %2984 = vmatprep.subr.mxu0 0.0
    %2985 = vmatpush2.xpose.msra.mxu0 0.0
    %2986 = vmatprep.subr.mxu0 0.0
    %2987 = vmatpush2.xpose.msra.mxu0 0.0
    %2988 = vmatprep.subr.mxu0 0.0
    %2989 = vmatpush2.xpose.msra.mxu0 0.0
    %2990 = vmatprep.subr.mxu0 0.0
    %2991 = vmatpush2.xpose.msra.mxu0 0.0
    %2992 = vmatprep.subr.mxu0 0.0
    %2993 = vmatpush2.xpose.msra.mxu0 0.0
    %2994 = vmatprep.subr.mxu0 0.0
    %2995 = vmatpush2.xpose.msra.mxu0 0.0
    %2996 = vmatprep.subr.mxu0 0.0
    %2997 = vmatpush2.xpose.msra.mxu0 0.0
    %2998 = vmatprep.subr.mxu0 0.0
    %2999 = vmatpush2.xpose.msra.mxu0 0.0
    %3000 = vmatprep.mubr.f32.mxu0 0.0
    %3001 = vmatmul.mubr.f32.gmra.mxu0 %v2932
    %v3002 = vpop.f32.mrf.mxu0
    %v3003 = vadd.f32 0.0, %v3002
    %v3004 = vpop.f32.mrf.mxu0
    %3005 = vdwg.mxu0
    %v3006 = vmul.f32 %v3003, 0.17677669
    %v3007 = vsel %vm1309, %v3006, -inf
    %3008 = vmax.xlane.f32.xlu0 %v3007
    %v3009 = vpop.xlane.xlu0 %3008
    %v3010 = vsub.f32 %v3006, %v3009
    %v3011 = vmul.f32 %v3010, 1.442695
    %v3012 = vpow.pop %v3011
    %v3013 = vsel %vm1309, %v3012, 0.0
    %3014 = vadd.xlane.f32.xlu0 %v3013
    %v3015 = vpop.xlane.xlu0 %3014
    %v3016 = vrcp.pop %v3015
    %v3017 = vmul.f32 %v3012, %v3016
    %3018 = vrot.lane.b32.xlu0 %v2298, 32
    %v3019 = vpop.permute.xlu0 %3018
    %v3021 = vsel %vm1321, %v3017, 0
    %v3023 = vsel %vm1325, %v3019, 0
    %3025 = vmatprep.subr.mxu0 0.0
    %3026 = vmatpush1.msra.mxu0 0.0
    %3027 = vmatprep.subr.mxu0 0.0
    %3028 = vmatpush1.msra.mxu0 0.0
    %3029 = vmatprep.subr.mxu0 0.0
    %3030 = vmatpush1.msra.mxu0 0.0
    %3031 = vmatprep.subr.mxu0 0.0
    %3032 = vmatpush1.msra.mxu0 0.0
    %3033 = vmatprep.subr.mxu0 0.0
    %3034 = vmatpush1.msra.mxu0 0.0
    %3035 = vmatprep.subr.mxu0 0.0
    %3036 = vmatpush1.msra.mxu0 0.0
    %3037 = vmatprep.subr.mxu0 0.0
    %3038 = vmatpush1.msra.mxu0 0.0
    %3039 = vmatprep.subr.mxu0 0.0
    %3040 = vmatpush1.msra.mxu0 0.0
    %3041 = vmatprep.subr.mxu0 0.0
    %3042 = vmatpush1.msra.mxu0 0.0
    %3043 = vmatprep.subr.mxu0 0.0
    %3044 = vmatpush1.msra.mxu0 0.0
    %3045 = vmatprep.subr.mxu0 0.0
    %3046 = vmatpush1.msra.mxu0 0.0
    %3047 = vmatprep.subr.mxu0 0.0
    %3048 = vmatpush1.msra.mxu0 0.0
    %3049 = vmatprep.subr.mxu0 0.0
    %3050 = vmatpush1.msra.mxu0 0.0
    %3051 = vmatprep.subr.mxu0 0.0
    %3052 = vmatpush1.msra.mxu0 0.0
    %3053 = vmatprep.subr.mxu0 0.0
    %3054 = vmatpush1.msra.mxu0 0.0
    %3055 = vmatprep.subr.mxu0 0.0
    %3056 = vmatpush1.msra.mxu0 %v3023
    %3057 = vmatprep.subr.mxu0 0.0
    %3058 = vmatpush2.msra.mxu0 0.0
    %3059 = vmatprep.subr.mxu0 0.0
    %3060 = vmatpush2.msra.mxu0 0.0
    %3061 = vmatprep.subr.mxu0 0.0
    %3062 = vmatpush2.msra.mxu0 0.0
    %3063 = vmatprep.subr.mxu0 0.0
    %3064 = vmatpush2.msra.mxu0 0.0
    %3065 = vmatprep.subr.mxu0 0.0
    %3066 = vmatpush2.msra.mxu0 0.0
    %3067 = vmatprep.subr.mxu0 0.0
    %3068 = vmatpush2.msra.mxu0 0.0
    %3069 = vmatprep.subr.mxu0 0.0
    %3070 = vmatpush2.msra.mxu0 0.0
    %3071 = vmatprep.subr.mxu0 0.0
    %3072 = vmatpush2.msra.mxu0 0.0
    %3073 = vmatprep.subr.mxu0 0.0
    %3074 = vmatpush2.msra.mxu0 0.0
    %3075 = vmatprep.subr.mxu0 0.0
    %3076 = vmatpush2.msra.mxu0 0.0
    %3077 = vmatprep.subr.mxu0 0.0
    %3078 = vmatpush2.msra.mxu0 0.0
    %3079 = vmatprep.subr.mxu0 0.0
    %3080 = vmatpush2.msra.mxu0 0.0
    %3081 = vmatprep.subr.mxu0 0.0
    %3082 = vmatpush2.msra.mxu0 0.0
    %3083 = vmatprep.subr.mxu0 0.0
    %3084 = vmatpush2.msra.mxu0 0.0
    %3085 = vmatprep.subr.mxu0 0.0
    %3086 = vmatpush2.msra.mxu0 0.0
    %3087 = vmatprep.subr.mxu0 0.0
    %3088 = vmatpush2.msra.mxu0 0.0
    %3089 = vmatprep.mubr.f32.mxu0 0.0
    %3090 = vmatmul.mubr.f32.gmra.mxu0 %v3021
    %v3091 = vpop.f32.mrf.mxu0
    %v3092 = vadd.f32 0.0, %v3091
    %v3093 = vpop.f32.mrf.mxu0
    %3094 = vdwg.mxu0
    %v3096 = vsel %vm1231, %v3092, 0
    %3098 = vmatprep.subr.mxu0 0.0
    %3099 = vmatpush1.msra.mxu0 0.0
    %3100 = vmatprep.subr.mxu0 0.0
    %3101 = vmatpush1.msra.mxu0 0.0
    %3102 = vmatprep.subr.mxu0 0.0
    %3103 = vmatpush1.msra.mxu0 0.0
    %3104 = vmatprep.subr.mxu0 0.0
    %3105 = vmatpush1.msra.mxu0 0.0
    %3106 = vmatprep.subr.mxu0 0.0
    %3107 = vmatpush1.msra.mxu0 0.0
    %3108 = vmatprep.subr.mxu0 0.0
    %3109 = vmatpush1.msra.mxu0 0.0
    %3110 = vmatprep.subr.mxu0 0.0
    %3111 = vmatpush1.msra.mxu0 0.0
    %3112 = vmatprep.subr.mxu0 0.0
    %3113 = vmatpush1.msra.mxu0 0.0
    %3114 = vmatprep.subr.mxu0 0.0
    %3115 = vmatpush1.msra.mxu0 0.0
    %3116 = vmatprep.subr.mxu0 0.0
    %3117 = vmatpush1.msra.mxu0 0.0
    %3118 = vmatprep.subr.mxu0 0.0
    %3119 = vmatpush1.msra.mxu0 0.0
    %3120 = vmatprep.subr.mxu0 0.0
    %3121 = vmatpush1.msra.mxu0 0.0
    %3122 = vmatprep.subr.mxu0 0.0
    %3123 = vmatpush1.msra.mxu0 %v2135
    %3124 = vmatprep.subr.mxu0 0.0
    %3125 = vmatpush1.msra.mxu0 %v2134
    %3126 = vmatprep.subr.mxu0 0.0
    %3127 = vmatpush1.msra.mxu0 %v2133
    %3128 = vmatprep.subr.mxu0 0.0
    %3129 = vmatpush1.msra.mxu0 %v2132
    %3130 = vmatprep.subr.mxu0 0.0
    %3131 = vmatpush2.msra.mxu0 0.0
    %3132 = vmatprep.subr.mxu0 0.0
    %3133 = vmatpush2.msra.mxu0 0.0
    %3134 = vmatprep.subr.mxu0 0.0
    %3135 = vmatpush2.msra.mxu0 0.0
    %3136 = vmatprep.subr.mxu0 0.0
    %3137 = vmatpush2.msra.mxu0 0.0
    %3138 = vmatprep.subr.mxu0 0.0
    %3139 = vmatpush2.msra.mxu0 0.0
    %3140 = vmatprep.subr.mxu0 0.0
    %3141 = vmatpush2.msra.mxu0 0.0
    %3142 = vmatprep.subr.mxu0 0.0
    %3143 = vmatpush2.msra.mxu0 0.0
    %3144 = vmatprep.subr.mxu0 0.0
    %3145 = vmatpush2.msra.mxu0 0.0
    %3146 = vmatprep.subr.mxu0 0.0
    %3147 = vmatpush2.msra.mxu0 0.0
    %3148 = vmatprep.subr.mxu0 0.0
    %3149 = vmatpush2.msra.mxu0 0.0
    %3150 = vmatprep.subr.mxu0 0.0
    %3151 = vmatpush2.msra.mxu0 0.0
    %3152 = vmatprep.subr.mxu0 0.0
    %3153 = vmatpush2.msra.mxu0 0.0
    %3154 = vmatprep.subr.mxu0 0.0
    %3155 = vmatpush2.msra.mxu0 0.0
    %3156 = vmatprep.subr.mxu0 0.0
    %3157 = vmatpush2.msra.mxu0 0.0
    %3158 = vmatprep.subr.mxu0 0.0
    %3159 = vmatpush2.msra.mxu0 0.0
    %3160 = vmatprep.subr.mxu0 0.0
    %3161 = vmatpush2.msra.mxu0 0.0
    %3162 = vmatprep.mubr.f32.mxu0 0.0
    %3163 = vmatmul.mubr.f32.gmra.mxu0 %v3096
    %v3164 = vpop.f32.mrf.mxu0
    %v3165 = vadd.f32 0.0, %v3164
    %v3166 = vpop.f32.mrf.mxu0
    %3167 = vdwg.mxu0
    %v3168 = vadd.f32 %v2927, %v3165
    %v3170 = vrot.slane %v3168, 4
    %v3172 = vsel %vm1325, %v2209, %v3170
    %v3173 = vld [vmem:[%s12] sm:$0x1]
    %v3175 = vlaneseq
    %v3176 = vshrl.u32 %v3175, 7
    %v3177 = vsub.s32 0, %v3176
    %v3178 = vrot.slane %v3173, %v3177
    %v3180 = vadd.f32 %v3172, %v3178
    %v3181 = vadd.f32 %v915, %v3180
    %v3182 = vld [vmem:[%s19] sm:$0x1]
    %v3183 = vld [vmem:[%s20] sm:$0x1]
    %3184 = vadd.xlane.f32.xlu0 %v3181
    %v3185 = vpop.xlane.xlu0 %3184
    %v3186 = vmul.f32 %v3185, %v920
    %v3187 = vsub.f32 %v3181, %v3186
    %v3188 = vmul.f32 %v3187, %v3187
    %3189 = vadd.xlane.f32.xlu0 %v3188
    %v3190 = vpop.xlane.xlu0 %3189
    %v3191 = vmul.f32 %v3190, %v926
    %v3192 = vrsqrt.pop %v3191
    %v3193 = vmul.f32 %v3191, %v3192
    %vm3194 = vcmp.eq.f32.partialorder %v3191, inf
    %v3195 = vsel %vm3194, %v3191, %v3193
    %vm3196 = vcmp.eq.f32.partialorder %v3191, 0.0
    %v3197 = vand.u32 %v3191, 2147483648
    %v3198 = vsel %vm3196, %v3197, %v3195
    %v3200 = vlaneseq
    %v3201 = vshrl.u32 %v3200, 7
    %v3202 = vsub.s32 0, %v3201
    %v3203 = vrot.slane %v3182, %v3202
    %v3205 = vmul.f32 %v3203, %v3187
    %v3206 = vadd.f32 %v3198, 1e-06
    %v3207 = vrcp.pop %v3206
    %v3208 = vmul.f32 %v3205, %v3207
    %v3210 = vlaneseq
    %v3211 = vshrl.u32 %v3210, 7
    %v3212 = vsub.s32 0, %v3211
    %v3213 = vrot.slane %v3183, %v3212
    %v3215 = vadd.f32 %v3208, %v3213
    %v3216 = vld [vmem:[%s13] sm:$0xff]
    %v3217 = vld [vmem:[%s13 + $0x8] sm:$0xff]
    %v3218 = vld [vmem:[%s13 + $0x10] sm:$0xff]
    %v3219 = vld [vmem:[%s13 + $0x18] sm:$0xff]
    %v3220 = vld [vmem:[%s13 + $0x20] sm:$0xff]
    %v3221 = vld [vmem:[%s13 + $0x28] sm:$0xff]
    %v3222 = vld [vmem:[%s13 + $0x30] sm:$0xff]
    %v3223 = vld [vmem:[%s13 + $0x38] sm:$0xff]
    %v3224 = vld [vmem:[%s13 + $0x40] sm:$0xff]
    %v3225 = vld [vmem:[%s13 + $0x48] sm:$0xff]
    %v3226 = vld [vmem:[%s13 + $0x50] sm:$0xff]
    %v3227 = vld [vmem:[%s13 + $0x58] sm:$0xff]
    %v3228 = vld [vmem:[%s13 + $0x60] sm:$0xff]
    %v3229 = vld [vmem:[%s13 + $0x68] sm:$0xff]
    %v3230 = vld [vmem:[%s13 + $0x70] sm:$0xff]
    %v3231 = vld [vmem:[%s13 + $0x78] sm:$0xff]
    %v3232 = vld [vmem:[%s13 + $0x80] sm:$0xff]
    %v3233 = vld [vmem:[%s13 + $0x88] sm:$0xff]
    %v3234 = vld [vmem:[%s13 + $0x90] sm:$0xff]
    %v3235 = vld [vmem:[%s13 + $0x98] sm:$0xff]
    %v3236 = vld [vmem:[%s13 + $0xa0] sm:$0xff]
    %v3237 = vld [vmem:[%s13 + $0xa8] sm:$0xff]
    %v3238 = vld [vmem:[%s13 + $0xb0] sm:$0xff]
    %v3239 = vld [vmem:[%s13 + $0xb8] sm:$0xff]
    %v3240 = vld [vmem:[%s13 + $0xc0] sm:$0xff]
    %v3241 = vld [vmem:[%s13 + $0xc8] sm:$0xff]
    %v3242 = vld [vmem:[%s13 + $0xd0] sm:$0xff]
    %v3243 = vld [vmem:[%s13 + $0xd8] sm:$0xff]
    %v3244 = vld [vmem:[%s13 + $0xe0] sm:$0xff]
    %v3245 = vld [vmem:[%s13 + $0xe8] sm:$0xff]
    %v3246 = vld [vmem:[%s13 + $0xf0] sm:$0xff]
    %v3247 = vld [vmem:[%s13 + $0xf8] sm:$0xff]
    %v3248 = vld [vmem:[%s13 + $0x100] sm:$0xff]
    %v3249 = vld [vmem:[%s13 + $0x108] sm:$0xff]
    %v3250 = vld [vmem:[%s13 + $0x110] sm:$0xff]
    %v3251 = vld [vmem:[%s13 + $0x118] sm:$0xff]
    %v3252 = vld [vmem:[%s13 + $0x120] sm:$0xff]
    %v3253 = vld [vmem:[%s13 + $0x128] sm:$0xff]
    %v3254 = vld [vmem:[%s13 + $0x130] sm:$0xff]
    %v3255 = vld [vmem:[%s13 + $0x138] sm:$0xff]
    %v3256 = vld [vmem:[%s13 + $0x140] sm:$0xff]
    %v3257 = vld [vmem:[%s13 + $0x148] sm:$0xff]
    %v3258 = vld [vmem:[%s13 + $0x150] sm:$0xff]
    %v3259 = vld [vmem:[%s13 + $0x158] sm:$0xff]
    %v3260 = vld [vmem:[%s13 + $0x160] sm:$0xff]
    %v3261 = vld [vmem:[%s13 + $0x168] sm:$0xff]
    %v3262 = vld [vmem:[%s13 + $0x170] sm:$0xff]
    %v3263 = vld [vmem:[%s13 + $0x178] sm:$0xff]
    %v3264 = vld [vmem:[%s13 + $0x180] sm:$0xff]
    %v3265 = vld [vmem:[%s13 + $0x188] sm:$0xff]
    %v3266 = vld [vmem:[%s13 + $0x190] sm:$0xff]
    %v3267 = vld [vmem:[%s13 + $0x198] sm:$0xff]
    %v3268 = vld [vmem:[%s13 + $0x1a0] sm:$0xff]
    %v3269 = vld [vmem:[%s13 + $0x1a8] sm:$0xff]
    %v3270 = vld [vmem:[%s13 + $0x1b0] sm:$0xff]
    %v3271 = vld [vmem:[%s13 + $0x1b8] sm:$0xff]
    %v3272 = vld [vmem:[%s13 + $0x1c0] sm:$0xff]
    %v3273 = vld [vmem:[%s13 + $0x1c8] sm:$0xff]
    %v3274 = vld [vmem:[%s13 + $0x1d0] sm:$0xff]
    %v3275 = vld [vmem:[%s13 + $0x1d8] sm:$0xff]
    %v3276 = vld [vmem:[%s13 + $0x1e0] sm:$0xff]
    %v3277 = vld [vmem:[%s13 + $0x1e8] sm:$0xff]
    %v3278 = vld [vmem:[%s13 + $0x1f0] sm:$0xff]
    %v3279 = vld [vmem:[%s13 + $0x1f8] sm:$0xff]
    %v3280 = vld [vmem:[%s14] sm:$0xf]
    %v3282 = vlaneseq
    %v3283 = vshrl.u32 %v3282, 7
    %v3284 = vsub.s32 0, %v3283
    %v3285 = vrot.slane %v3280, %v3284
    %v3286 = vlaneseq
    %v3287 = vshrl.u32 %v3286, 7
    %v3288 = vsub.s32 1, %v3287
    %v3289 = vrot.slane %v3280, %v3288
    %v3290 = vlaneseq
    %v3291 = vshrl.u32 %v3290, 7
    %v3292 = vsub.s32 2, %v3291
    %v3293 = vrot.slane %v3280, %v3292
    %v3294 = vlaneseq
    %v3295 = vshrl.u32 %v3294, 7
    %v3296 = vsub.s32 3, %v3295
    %v3297 = vrot.slane %v3280, %v3296
    %3302 = vmatprep.subr.mxu0 %v3277
    %3303 = vmatpush1.msra.mxu0 %v3276
    %3304 = vmatprep.subr.mxu0 %v3273
    %3305 = vmatpush1.msra.mxu0 %v3272
    %3306 = vmatprep.subr.mxu0 %v3269
    %3307 = vmatpush1.msra.mxu0 %v3268
    %3308 = vmatprep.subr.mxu0 %v3265
    %3309 = vmatpush1.msra.mxu0 %v3264
    %3310 = vmatprep.subr.mxu0 %v3261
    %3311 = vmatpush1.msra.mxu0 %v3260
    %3312 = vmatprep.subr.mxu0 %v3257
    %3313 = vmatpush1.msra.mxu0 %v3256
    %3314 = vmatprep.subr.mxu0 %v3253
    %3315 = vmatpush1.msra.mxu0 %v3252
    %3316 = vmatprep.subr.mxu0 %v3249
    %3317 = vmatpush1.msra.mxu0 %v3248
    %3318 = vmatprep.subr.mxu0 %v3245
    %3319 = vmatpush1.msra.mxu0 %v3244
    %3320 = vmatprep.subr.mxu0 %v3241
    %3321 = vmatpush1.msra.mxu0 %v3240
    %3322 = vmatprep.subr.mxu0 %v3237
    %3323 = vmatpush1.msra.mxu0 %v3236
    %3324 = vmatprep.subr.mxu0 %v3233
    %3325 = vmatpush1.msra.mxu0 %v3232
    %3326 = vmatprep.subr.mxu0 %v3229
    %3327 = vmatpush1.msra.mxu0 %v3228
    %3328 = vmatprep.subr.mxu0 %v3225
    %3329 = vmatpush1.msra.mxu0 %v3224
    %3330 = vmatprep.subr.mxu0 %v3221
    %3331 = vmatpush1.msra.mxu0 %v3220
    %3332 = vmatprep.subr.mxu0 %v3217
    %3333 = vmatpush1.msra.mxu0 %v3216
    %3334 = vmatprep.subr.mxu0 0.0
    %3335 = vmatpush2.msra.mxu0 0.0
    %3336 = vmatprep.subr.mxu0 0.0
    %3337 = vmatpush2.msra.mxu0 0.0
    %3338 = vmatprep.subr.mxu0 0.0
    %3339 = vmatpush2.msra.mxu0 0.0
    %3340 = vmatprep.subr.mxu0 0.0
    %3341 = vmatpush2.msra.mxu0 0.0
    %3342 = vmatprep.subr.mxu0 0.0
    %3343 = vmatpush2.msra.mxu0 0.0
    %3344 = vmatprep.subr.mxu0 0.0
    %3345 = vmatpush2.msra.mxu0 0.0
    %3346 = vmatprep.subr.mxu0 0.0
    %3347 = vmatpush2.msra.mxu0 0.0
    %3348 = vmatprep.subr.mxu0 0.0
    %3349 = vmatpush2.msra.mxu0 0.0
    %3350 = vmatprep.subr.mxu0 0.0
    %3351 = vmatpush2.msra.mxu0 0.0
    %3352 = vmatprep.subr.mxu0 0.0
    %3353 = vmatpush2.msra.mxu0 0.0
    %3354 = vmatprep.subr.mxu0 0.0
    %3355 = vmatpush2.msra.mxu0 0.0
    %3356 = vmatprep.subr.mxu0 0.0
    %3357 = vmatpush2.msra.mxu0 0.0
    %3358 = vmatprep.subr.mxu0 0.0
    %3359 = vmatpush2.msra.mxu0 0.0
    %3360 = vmatprep.subr.mxu0 0.0
    %3361 = vmatpush2.msra.mxu0 0.0
    %3362 = vmatprep.subr.mxu0 0.0
    %3363 = vmatpush2.msra.mxu0 0.0
    %3364 = vmatprep.subr.mxu0 0.0
    %3365 = vmatpush2.msra.mxu0 0.0
    %3366 = vmatprep.mubr.f32.mxu0 0.0
    %3367 = vmatmul.mubr.f32.gmra.mxu0 %v3215
    %v3368 = vpop.f32.mrf.mxu0
    %v3369 = vadd.f32 %v3285, %v3368
    %v3370 = vpop.f32.mrf.mxu0
    %v3371 = vadd.f32 %v3289, %v3370
    %3372 = vdwg.mxu0
    %3373 = vmatprep.subr.mxu0 %v3279
    %3374 = vmatpush1.msra.mxu0 %v3278
    %3375 = vmatprep.subr.mxu0 %v3275
    %3376 = vmatpush1.msra.mxu0 %v3274
    %3377 = vmatprep.subr.mxu0 %v3271
    %3378 = vmatpush1.msra.mxu0 %v3270
    %3379 = vmatprep.subr.mxu0 %v3267
    %3380 = vmatpush1.msra.mxu0 %v3266
    %3381 = vmatprep.subr.mxu0 %v3263
    %3382 = vmatpush1.msra.mxu0 %v3262
    %3383 = vmatprep.subr.mxu0 %v3259
    %3384 = vmatpush1.msra.mxu0 %v3258
    %3385 = vmatprep.subr.mxu0 %v3255
    %3386 = vmatpush1.msra.mxu0 %v3254
    %3387 = vmatprep.subr.mxu0 %v3251
    %3388 = vmatpush1.msra.mxu0 %v3250
    %3389 = vmatprep.subr.mxu0 %v3247
    %3390 = vmatpush1.msra.mxu0 %v3246
    %3391 = vmatprep.subr.mxu0 %v3243
    %3392 = vmatpush1.msra.mxu0 %v3242
    %3393 = vmatprep.subr.mxu0 %v3239
    %3394 = vmatpush1.msra.mxu0 %v3238
    %3395 = vmatprep.subr.mxu0 %v3235
    %3396 = vmatpush1.msra.mxu0 %v3234
    %3397 = vmatprep.subr.mxu0 %v3231
    %3398 = vmatpush1.msra.mxu0 %v3230
    %3399 = vmatprep.subr.mxu0 %v3227
    %3400 = vmatpush1.msra.mxu0 %v3226
    %3401 = vmatprep.subr.mxu0 %v3223
    %3402 = vmatpush1.msra.mxu0 %v3222
    %3403 = vmatprep.subr.mxu0 %v3219
    %3404 = vmatpush1.msra.mxu0 %v3218
    %3405 = vmatprep.subr.mxu0 0.0
    %3406 = vmatpush2.msra.mxu0 0.0
    %3407 = vmatprep.subr.mxu0 0.0
    %3408 = vmatpush2.msra.mxu0 0.0
    %3409 = vmatprep.subr.mxu0 0.0
    %3410 = vmatpush2.msra.mxu0 0.0
    %3411 = vmatprep.subr.mxu0 0.0
    %3412 = vmatpush2.msra.mxu0 0.0
    %3413 = vmatprep.subr.mxu0 0.0
    %3414 = vmatpush2.msra.mxu0 0.0
    %3415 = vmatprep.subr.mxu0 0.0
    %3416 = vmatpush2.msra.mxu0 0.0
    %3417 = vmatprep.subr.mxu0 0.0
    %3418 = vmatpush2.msra.mxu0 0.0
    %3419 = vmatprep.subr.mxu0 0.0
    %3420 = vmatpush2.msra.mxu0 0.0
    %3421 = vmatprep.subr.mxu0 0.0
    %3422 = vmatpush2.msra.mxu0 0.0
    %3423 = vmatprep.subr.mxu0 0.0
    %3424 = vmatpush2.msra.mxu0 0.0
    %3425 = vmatprep.subr.mxu0 0.0
    %3426 = vmatpush2.msra.mxu0 0.0
    %3427 = vmatprep.subr.mxu0 0.0
    %3428 = vmatpush2.msra.mxu0 0.0
    %3429 = vmatprep.subr.mxu0 0.0
    %3430 = vmatpush2.msra.mxu0 0.0
    %3431 = vmatprep.subr.mxu0 0.0
    %3432 = vmatpush2.msra.mxu0 0.0
    %3433 = vmatprep.subr.mxu0 0.0
    %3434 = vmatpush2.msra.mxu0 0.0
    %3435 = vmatprep.subr.mxu0 0.0
    %3436 = vmatpush2.msra.mxu0 0.0
    %3437 = vmatprep.mubr.f32.mxu0 0.0
    %3438 = vmatmul.mubr.f32.gmra.mxu0 %v3215
    %v3439 = vpop.f32.mrf.mxu0
    %v3440 = vadd.f32 %v3293, %v3439
    %v3441 = vpop.f32.mrf.mxu0
    %v3442 = vadd.f32 %v3297, %v3441
    %3443 = vdwg.mxu0
    %v3444 = vmax.f32 %v3369, 0.0
    %v3445 = vmax.f32 %v3371, 0.0
    %v3446 = vmax.f32 %v3440, 0.0
    %v3447 = vmax.f32 %v3442, 0.0
    %v3448 = vld [vmem:[#allocation11] sm:$0xff]
    %v3449 = vld [vmem:[#allocation11 + $0x8] sm:$0xff]
    %v3450 = vld [vmem:[#allocation11 + $0x10] sm:$0xff]
    %v3451 = vld [vmem:[#allocation11 + $0x18] sm:$0xff]
    %v3452 = vld [vmem:[#allocation11 + $0x20] sm:$0xff]
    %v3453 = vld [vmem:[#allocation11 + $0x28] sm:$0xff]
    %v3454 = vld [vmem:[#allocation11 + $0x30] sm:$0xff]
    %v3455 = vld [vmem:[#allocation11 + $0x38] sm:$0xff]
    %v3456 = vld [vmem:[#allocation11 + $0x40] sm:$0xff]
    %v3457 = vld [vmem:[#allocation11 + $0x48] sm:$0xff]
    %v3458 = vld [vmem:[#allocation11 + $0x50] sm:$0xff]
    %v3459 = vld [vmem:[#allocation11 + $0x58] sm:$0xff]
    %v3460 = vld [vmem:[#allocation11 + $0x60] sm:$0xff]
    %v3461 = vld [vmem:[#allocation11 + $0x68] sm:$0xff]
    %v3462 = vld [vmem:[#allocation11 + $0x70] sm:$0xff]
    %v3463 = vld [vmem:[#allocation11 + $0x78] sm:$0xff]
    %v3464 = vld [vmem:[#allocation11 + $0x80] sm:$0xff]
    %v3465 = vld [vmem:[#allocation11 + $0x88] sm:$0xff]
    %v3466 = vld [vmem:[#allocation11 + $0x90] sm:$0xff]
    %v3467 = vld [vmem:[#allocation11 + $0x98] sm:$0xff]
    %v3468 = vld [vmem:[#allocation11 + $0xa0] sm:$0xff]
    %v3469 = vld [vmem:[#allocation11 + $0xa8] sm:$0xff]
    %v3470 = vld [vmem:[#allocation11 + $0xb0] sm:$0xff]
    %v3471 = vld [vmem:[#allocation11 + $0xb8] sm:$0xff]
    %v3472 = vld [vmem:[#allocation11 + $0xc0] sm:$0xff]
    %v3473 = vld [vmem:[#allocation11 + $0xc8] sm:$0xff]
    %v3474 = vld [vmem:[#allocation11 + $0xd0] sm:$0xff]
    %v3475 = vld [vmem:[#allocation11 + $0xd8] sm:$0xff]
    %v3476 = vld [vmem:[#allocation11 + $0xe0] sm:$0xff]
    %v3477 = vld [vmem:[#allocation11 + $0xe8] sm:$0xff]
    %v3478 = vld [vmem:[#allocation11 + $0xf0] sm:$0xff]
    %v3479 = vld [vmem:[#allocation11 + $0xf8] sm:$0xff]
    %v3480 = vld [vmem:[#allocation11 + $0x100] sm:$0xff]
    %v3481 = vld [vmem:[#allocation11 + $0x108] sm:$0xff]
    %v3482 = vld [vmem:[#allocation11 + $0x110] sm:$0xff]
    %v3483 = vld [vmem:[#allocation11 + $0x118] sm:$0xff]
    %v3484 = vld [vmem:[#allocation11 + $0x120] sm:$0xff]
    %v3485 = vld [vmem:[#allocation11 + $0x128] sm:$0xff]
    %v3486 = vld [vmem:[#allocation11 + $0x130] sm:$0xff]
    %v3487 = vld [vmem:[#allocation11 + $0x138] sm:$0xff]
    %v3488 = vld [vmem:[#allocation11 + $0x140] sm:$0xff]
    %v3489 = vld [vmem:[#allocation11 + $0x148] sm:$0xff]
    %v3490 = vld [vmem:[#allocation11 + $0x150] sm:$0xff]
    %v3491 = vld [vmem:[#allocation11 + $0x158] sm:$0xff]
    %v3492 = vld [vmem:[#allocation11 + $0x160] sm:$0xff]
    %v3493 = vld [vmem:[#allocation11 + $0x168] sm:$0xff]
    %v3494 = vld [vmem:[#allocation11 + $0x170] sm:$0xff]
    %v3495 = vld [vmem:[#allocation11 + $0x178] sm:$0xff]
    %v3496 = vld [vmem:[#allocation11 + $0x180] sm:$0xff]
    %v3497 = vld [vmem:[#allocation11 + $0x188] sm:$0xff]
    %v3498 = vld [vmem:[#allocation11 + $0x190] sm:$0xff]
    %v3499 = vld [vmem:[#allocation11 + $0x198] sm:$0xff]
    %v3500 = vld [vmem:[#allocation11 + $0x1a0] sm:$0xff]
    %v3501 = vld [vmem:[#allocation11 + $0x1a8] sm:$0xff]
    %v3502 = vld [vmem:[#allocation11 + $0x1b0] sm:$0xff]
    %v3503 = vld [vmem:[#allocation11 + $0x1b8] sm:$0xff]
    %v3504 = vld [vmem:[#allocation11 + $0x1c0] sm:$0xff]
    %v3505 = vld [vmem:[#allocation11 + $0x1c8] sm:$0xff]
    %v3506 = vld [vmem:[#allocation11 + $0x1d0] sm:$0xff]
    %v3507 = vld [vmem:[#allocation11 + $0x1d8] sm:$0xff]
    %v3508 = vld [vmem:[#allocation11 + $0x1e0] sm:$0xff]
    %v3509 = vld [vmem:[#allocation11 + $0x1e8] sm:$0xff]
    %v3510 = vld [vmem:[#allocation11 + $0x1f0] sm:$0xff]
    %v3511 = vld [vmem:[#allocation11 + $0x1f8] sm:$0xff]
    %3512 = vmatprep.subr.mxu0 0.0
    %3513 = vmatpush1.msra.mxu0 %v3463
    %3514 = vmatprep.subr.mxu0 0.0
    %3515 = vmatpush1.msra.mxu0 %v3462
    %3516 = vmatprep.subr.mxu0 0.0
    %3517 = vmatpush1.msra.mxu0 %v3461
    %3518 = vmatprep.subr.mxu0 0.0
    %3519 = vmatpush1.msra.mxu0 %v3460
    %3520 = vmatprep.subr.mxu0 0.0
    %3521 = vmatpush1.msra.mxu0 %v3459
    %3522 = vmatprep.subr.mxu0 0.0
    %3523 = vmatpush1.msra.mxu0 %v3458
    %3524 = vmatprep.subr.mxu0 0.0
    %3525 = vmatpush1.msra.mxu0 %v3457
    %3526 = vmatprep.subr.mxu0 0.0
    %3527 = vmatpush1.msra.mxu0 %v3456
    %3528 = vmatprep.subr.mxu0 0.0
    %3529 = vmatpush1.msra.mxu0 %v3455
    %3530 = vmatprep.subr.mxu0 0.0
    %3531 = vmatpush1.msra.mxu0 %v3454
    %3532 = vmatprep.subr.mxu0 0.0
    %3533 = vmatpush1.msra.mxu0 %v3453
    %3534 = vmatprep.subr.mxu0 0.0
    %3535 = vmatpush1.msra.mxu0 %v3452
    %3536 = vmatprep.subr.mxu0 0.0
    %3537 = vmatpush1.msra.mxu0 %v3451
    %3538 = vmatprep.subr.mxu0 0.0
    %3539 = vmatpush1.msra.mxu0 %v3450
    %3540 = vmatprep.subr.mxu0 0.0
    %3541 = vmatpush1.msra.mxu0 %v3449
    %3542 = vmatprep.subr.mxu0 0.0
    %3543 = vmatpush1.msra.mxu0 %v3448
    %3544 = vmatprep.subr.mxu0 0.0
    %3545 = vmatpush2.msra.mxu0 %v3479
    %3546 = vmatprep.subr.mxu0 0.0
    %3547 = vmatpush2.msra.mxu0 %v3478
    %3548 = vmatprep.subr.mxu0 0.0
    %3549 = vmatpush2.msra.mxu0 %v3477
    %3550 = vmatprep.subr.mxu0 0.0
    %3551 = vmatpush2.msra.mxu0 %v3476
    %3552 = vmatprep.subr.mxu0 0.0
    %3553 = vmatpush2.msra.mxu0 %v3475
    %3554 = vmatprep.subr.mxu0 0.0
    %3555 = vmatpush2.msra.mxu0 %v3474
    %3556 = vmatprep.subr.mxu0 0.0
    %3557 = vmatpush2.msra.mxu0 %v3473
    %3558 = vmatprep.subr.mxu0 0.0
    %3559 = vmatpush2.msra.mxu0 %v3472
    %3560 = vmatprep.subr.mxu0 0.0
    %3561 = vmatpush2.msra.mxu0 %v3471
    %3562 = vmatprep.subr.mxu0 0.0
    %3563 = vmatpush2.msra.mxu0 %v3470
    %3564 = vmatprep.subr.mxu0 0.0
    %3565 = vmatpush2.msra.mxu0 %v3469
    %3566 = vmatprep.subr.mxu0 0.0
    %3567 = vmatpush2.msra.mxu0 %v3468
    %3568 = vmatprep.subr.mxu0 0.0
    %3569 = vmatpush2.msra.mxu0 %v3467
    %3570 = vmatprep.subr.mxu0 0.0
    %3571 = vmatpush2.msra.mxu0 %v3466
    %3572 = vmatprep.subr.mxu0 0.0
    %3573 = vmatpush2.msra.mxu0 %v3465
    %3574 = vmatprep.subr.mxu0 0.0
    %3575 = vmatpush2.msra.mxu0 %v3464
    %3576 = vmatprep.mubr.f32.mxu0 %v3445
    %3577 = vmatmul.mubr.f32.gmra.mxu0 %v3444
    %v3578 = vpop.f32.mrf.mxu0
    %v3579 = vadd.f32 0.0, %v3578
    %v3580 = vpop.f32.mrf.mxu0
    %3581 = vdwg.mxu0
    %3582 = vmatprep.subr.mxu0 0.0
    %3583 = vmatpush1.msra.mxu0 %v3495
    %3584 = vmatprep.subr.mxu0 0.0
    %3585 = vmatpush1.msra.mxu0 %v3494
    %3586 = vmatprep.subr.mxu0 0.0
    %3587 = vmatpush1.msra.mxu0 %v3493
    %3588 = vmatprep.subr.mxu0 0.0
    %3589 = vmatpush1.msra.mxu0 %v3492
    %3590 = vmatprep.subr.mxu0 0.0
    %3591 = vmatpush1.msra.mxu0 %v3491
    %3592 = vmatprep.subr.mxu0 0.0
    %3593 = vmatpush1.msra.mxu0 %v3490
    %3594 = vmatprep.subr.mxu0 0.0
    %3595 = vmatpush1.msra.mxu0 %v3489
    %3596 = vmatprep.subr.mxu0 0.0
    %3597 = vmatpush1.msra.mxu0 %v3488
    %3598 = vmatprep.subr.mxu0 0.0
    %3599 = vmatpush1.msra.mxu0 %v3487
    %3600 = vmatprep.subr.mxu0 0.0
    %3601 = vmatpush1.msra.mxu0 %v3486
    %3602 = vmatprep.subr.mxu0 0.0
    %3603 = vmatpush1.msra.mxu0 %v3485
    %3604 = vmatprep.subr.mxu0 0.0
    %3605 = vmatpush1.msra.mxu0 %v3484
    %3606 = vmatprep.subr.mxu0 0.0
    %3607 = vmatpush1.msra.mxu0 %v3483
    %3608 = vmatprep.subr.mxu0 0.0
    %3609 = vmatpush1.msra.mxu0 %v3482
    %3610 = vmatprep.subr.mxu0 0.0
    %3611 = vmatpush1.msra.mxu0 %v3481
    %3612 = vmatprep.subr.mxu0 0.0
    %3613 = vmatpush1.msra.mxu0 %v3480
    %3614 = vmatprep.subr.mxu0 0.0
    %3615 = vmatpush2.msra.mxu0 %v3511
    %3616 = vmatprep.subr.mxu0 0.0
    %3617 = vmatpush2.msra.mxu0 %v3510
    %3618 = vmatprep.subr.mxu0 0.0
    %3619 = vmatpush2.msra.mxu0 %v3509
    %3620 = vmatprep.subr.mxu0 0.0
    %3621 = vmatpush2.msra.mxu0 %v3508
    %3622 = vmatprep.subr.mxu0 0.0
    %3623 = vmatpush2.msra.mxu0 %v3507
    %3624 = vmatprep.subr.mxu0 0.0
    %3625 = vmatpush2.msra.mxu0 %v3506
    %3626 = vmatprep.subr.mxu0 0.0
    %3627 = vmatpush2.msra.mxu0 %v3505
    %3628 = vmatprep.subr.mxu0 0.0
    %3629 = vmatpush2.msra.mxu0 %v3504
    %3630 = vmatprep.subr.mxu0 0.0
    %3631 = vmatpush2.msra.mxu0 %v3503
    %3632 = vmatprep.subr.mxu0 0.0
    %3633 = vmatpush2.msra.mxu0 %v3502
    %3634 = vmatprep.subr.mxu0 0.0
    %3635 = vmatpush2.msra.mxu0 %v3501
    %3636 = vmatprep.subr.mxu0 0.0
    %3637 = vmatpush2.msra.mxu0 %v3500
    %3638 = vmatprep.subr.mxu0 0.0
    %3639 = vmatpush2.msra.mxu0 %v3499
    %3640 = vmatprep.subr.mxu0 0.0
    %3641 = vmatpush2.msra.mxu0 %v3498
    %3642 = vmatprep.subr.mxu0 0.0
    %3643 = vmatpush2.msra.mxu0 %v3497
    %3644 = vmatprep.subr.mxu0 0.0
    %3645 = vmatpush2.msra.mxu0 %v3496
    %3646 = vmatprep.mubr.f32.mxu0 %v3447
    %3647 = vmatmul.mubr.f32.gmra.mxu0 %v3446
    %v3648 = vpop.f32.mrf.mxu0
    %v3649 = vadd.f32 %v3579, %v3648
    %v3650 = vpop.f32.mrf.mxu0
    %3651 = vdwg.mxu0
    %v3652 = vadd.f32 %v3181, %v3649
    %v3653 = vld [vmem:[%s16] sm:$0x1]
    %v3655 = vlaneseq
    %v3656 = vshrl.u32 %v3655, 7
    %v3657 = vsub.s32 0, %v3656
    %v3658 = vrot.slane %v3653, %v3657
    %v3660 = vadd.f32 %v3652, %v3658
    %v3661 = vld [vmem:[%s21] sm:$0x1]
    %v3662 = vld [vmem:[%s22] sm:$0x1]
    %3663 = vadd.xlane.f32.xlu0 %v3660
    %v3664 = vpop.xlane.xlu0 %3663
    %v3665 = vmul.f32 %v3664, %v920
    %v3666 = vsub.f32 %v3660, %v3665
    %v3667 = vmul.f32 %v3666, %v3666
    %3668 = vadd.xlane.f32.xlu0 %v3667
    %v3669 = vpop.xlane.xlu0 %3668
    %v3670 = vmul.f32 %v3669, %v926
    %v3671 = vrsqrt.pop %v3670
    %v3672 = vmul.f32 %v3670, %v3671
    %vm3673 = vcmp.eq.f32.partialorder %v3670, inf
    %v3674 = vsel %vm3673, %v3670, %v3672
    %vm3675 = vcmp.eq.f32.partialorder %v3670, 0.0
    %v3676 = vand.u32 %v3670, 2147483648
    %v3677 = vsel %vm3675, %v3676, %v3674
    %v3679 = vlaneseq
    %v3680 = vshrl.u32 %v3679, 7
    %v3681 = vsub.s32 0, %v3680
    %v3682 = vrot.slane %v3661, %v3681
    %v3684 = vmul.f32 %v3682, %v3666
    %v3685 = vadd.f32 %v3677, 1e-06
    %v3686 = vrcp.pop %v3685
    %v3687 = vmul.f32 %v3684, %v3686
    %v3689 = vlaneseq
    %v3690 = vshrl.u32 %v3689, 7
    %v3691 = vsub.s32 0, %v3690
    %v3692 = vrot.slane %v3662, %v3691
    %v3694 = vadd.f32 %v3687, %v3692
    %v3695 = vsel %vm1325, %v3694, 0.0
    %v3696 = vrot.slane %v3695, 4
    %v3697 = vadd.f32 %v3695, %v3696
    %v3698 = vrot.slane %v3697, 2
    %v3699 = vadd.f32 %v3697, %v3698
    %v3700 = vrot.slane %v3699, 1
    %v3701 = vadd.f32 %v3699, %v3700
    %v3702 = vrcp.pop 4.0
    %v3703 = vmul.f32 %v3701, %v3702
    %v3705 = vrot.slane %v3694, 4
    %v3707 = vsel %vm1325, %v3705, 0.0
    %v3708 = vrot.slane %v3707, 4
    %v3709 = vadd.f32 %v3707, %v3708
    %v3710 = vrot.slane %v3709, 2
    %v3711 = vadd.f32 %v3709, %v3710
    %v3712 = vrot.slane %v3711, 1
    %v3713 = vadd.f32 %v3711, %v3712
    %v3714 = vmul.f32 %v3713, %v3702
    %vm3715 = vcmask 1040384
    %v3716 = vsel %vm3715, %v3703, %v3714
    %v3717 = vld [vmem:[#allocation13] sm:$0xff]
    %v3718 = vld [vmem:[#allocation13 + $0x8] sm:$0xff]
    %v3719 = vld [vmem:[#allocation13 + $0x10] sm:$0xff]
    %v3720 = vld [vmem:[#allocation13 + $0x18] sm:$0xff]
    %v3721 = vld [vmem:[#allocation13 + $0x20] sm:$0xff]
    %v3722 = vld [vmem:[#allocation13 + $0x28] sm:$0xff]
    %v3723 = vld [vmem:[#allocation13 + $0x30] sm:$0xff]
    %v3724 = vld [vmem:[#allocation13 + $0x38] sm:$0xff]
    %v3725 = vld [vmem:[#allocation13 + $0x40] sm:$0xff]
    %v3726 = vld [vmem:[#allocation13 + $0x48] sm:$0xff]
    %v3727 = vld [vmem:[#allocation13 + $0x50] sm:$0xff]
    %v3728 = vld [vmem:[#allocation13 + $0x58] sm:$0xff]
    %v3729 = vld [vmem:[#allocation13 + $0x60] sm:$0xff]
    %v3730 = vld [vmem:[#allocation13 + $0x68] sm:$0xff]
    %v3731 = vld [vmem:[#allocation13 + $0x70] sm:$0xff]
    %v3732 = vld [vmem:[#allocation13 + $0x78] sm:$0xff]
    %v3733 = vld [vmem:[%s24] sm:$0x1]
    %v3735 = vlaneseq
    %v3736 = vshrl.u32 %v3735, 7
    %v3737 = vsub.s32 0, %v3736
    %v3738 = vrot.slane %v3733, %v3737
    %3740 = vmatprep.subr.mxu0 0.0
    %3741 = vmatpush1.msra.mxu0 %v3732
    %3742 = vmatprep.subr.mxu0 0.0
    %3743 = vmatpush1.msra.mxu0 %v3731
    %3744 = vmatprep.subr.mxu0 0.0
    %3745 = vmatpush1.msra.mxu0 %v3730
    %3746 = vmatprep.subr.mxu0 0.0
    %3747 = vmatpush1.msra.mxu0 %v3729
    %3748 = vmatprep.subr.mxu0 0.0
    %3749 = vmatpush1.msra.mxu0 %v3728
    %3750 = vmatprep.subr.mxu0 0.0
    %3751 = vmatpush1.msra.mxu0 %v3727
    %3752 = vmatprep.subr.mxu0 0.0
    %3753 = vmatpush1.msra.mxu0 %v3726
    %3754 = vmatprep.subr.mxu0 0.0
    %3755 = vmatpush1.msra.mxu0 %v3725
    %3756 = vmatprep.subr.mxu0 0.0
    %3757 = vmatpush1.msra.mxu0 %v3724
    %3758 = vmatprep.subr.mxu0 0.0
    %3759 = vmatpush1.msra.mxu0 %v3723
    %3760 = vmatprep.subr.mxu0 0.0
    %3761 = vmatpush1.msra.mxu0 %v3722
    %3762 = vmatprep.subr.mxu0 0.0
    %3763 = vmatpush1.msra.mxu0 %v3721
    %3764 = vmatprep.subr.mxu0 0.0
    %3765 = vmatpush1.msra.mxu0 %v3720
    %3766 = vmatprep.subr.mxu0 0.0
    %3767 = vmatpush1.msra.mxu0 %v3719
    %3768 = vmatprep.subr.mxu0 0.0
    %3769 = vmatpush1.msra.mxu0 %v3718
    %3770 = vmatprep.subr.mxu0 0.0
    %3771 = vmatpush1.msra.mxu0 %v3717
    %3772 = vmatprep.subr.mxu0 0.0
    %3773 = vmatpush2.msra.mxu0 0.0
    %3774 = vmatprep.subr.mxu0 0.0
    %3775 = vmatpush2.msra.mxu0 0.0
    %3776 = vmatprep.subr.mxu0 0.0
    %3777 = vmatpush2.msra.mxu0 0.0
    %3778 = vmatprep.subr.mxu0 0.0
    %3779 = vmatpush2.msra.mxu0 0.0
    %3780 = vmatprep.subr.mxu0 0.0
    %3781 = vmatpush2.msra.mxu0 0.0
    %3782 = vmatprep.subr.mxu0 0.0
    %3783 = vmatpush2.msra.mxu0 0.0
    %3784 = vmatprep.subr.mxu0 0.0
    %3785 = vmatpush2.msra.mxu0 0.0
    %3786 = vmatprep.subr.mxu0 0.0
    %3787 = vmatpush2.msra.mxu0 0.0
    %3788 = vmatprep.subr.mxu0 0.0
    %3789 = vmatpush2.msra.mxu0 0.0
    %3790 = vmatprep.subr.mxu0 0.0
    %3791 = vmatpush2.msra.mxu0 0.0
    %3792 = vmatprep.subr.mxu0 0.0
    %3793 = vmatpush2.msra.mxu0 0.0
    %3794 = vmatprep.subr.mxu0 0.0
    %3795 = vmatpush2.msra.mxu0 0.0
    %3796 = vmatprep.subr.mxu0 0.0
    %3797 = vmatpush2.msra.mxu0 0.0
    %3798 = vmatprep.subr.mxu0 0.0
    %3799 = vmatpush2.msra.mxu0 0.0
    %3800 = vmatprep.subr.mxu0 0.0
    %3801 = vmatpush2.msra.mxu0 0.0
    %3802 = vmatprep.subr.mxu0 0.0
    %3803 = vmatpush2.msra.mxu0 0.0
    %3804 = vmatprep.mubr.f32.mxu0 0.0
    %3805 = vmatmul.mubr.f32.gmra.mxu0 %v3716
    %v3806 = vpop.f32.mrf.mxu0
    %v3807 = vadd.f32 %v3738, %v3806
    %v3808 = vpop.f32.mrf.mxu0
    %3809 = vdwg.mxu0
    %vm3810 = vcmask 17408
    %3811 = vst.msk [vmem:[#allocation14] sm:$0x3] %vm3810, %v3807
    // Predicated region
    $region130: #{_lambda_.1} parent=1 // pred_check
      _
    $region131: #{_lambda_.1} parent=1 // pred_check_branch
      %3813 = sbr.rel (0) target = $region133
    $region132: #{_lambda_.1} parent=1 // pred_region
      %s3815 = ssub.s32 32, 32
      %3816 = vsyncadd [#allocation4], %s3815
      %s3818 = sshll.u32 [#allocation14], 4
      %s3819 = int_to_ptr.vmem [resolvable:$true] %s3818
      %3821 = dma.vmem_to_hbm [thread:$0]  %s3819, 32, %s25, [#allocation4]
    $region133: #{_lambda_.1} parent=1 // pred_fallthru
      _
    // Predicated region
    $region134: #{_lambda_.1} parent=1 // pred_check
      _
    $region135: #{_lambda_.1} parent=1 // pred_check_branch
      %3823 = sbr.rel (0) target = $region137
    $region136: #{_lambda_.1} parent=1 // pred_region
      %3824 = dma.done [#allocation4], 32
    $region137: #{_lambda_.1} parent=1 // pred_fallthru
      _
    %3825 = vsyncpa [#allocation3], 1
    %3826 = vsyncpa [#allocation6], 1
    %3827 = vsyncpa [#allocation9], 1
    %3828 = vsyncpa [#allocation12], 1
    %3829 = vsyncpa [#allocation4], 1

</llo_original>
